<compile_context>
chip_gen: v6e
topology: v6e:2x2x1
jax: 0.10.0
libtpu: 0.0.40
codegen_flags: <defaults>
</compile_context>

<pallas_src>
import jax
import jax.numpy as jnp
from jax import lax
from jax.experimental import pallas as pl
from jax.experimental.pallas import tpu as pltpu


# bf16 MXU operands on real TPUs; f32 everywhere else (CPU interpret cannot
# execute BF16 x BF16 = F32 dots).
_MM_DTYPE = jnp.bfloat16 if jax.default_backend() == "tpu" else jnp.float32


def _make_lstm_fc_kernel(H, Tc, T, mask_tail):
    """Builds the kernel closure with static sizes baked in."""

    def kernel(pg_ref, whh_ref, wfc_ref, bfc_ref, out_ref, h_sc, c_sc):
        # pg_ref  : (Tc, Bp, 4H) mm_dtype  pre-computed x@W_ih^T + b_ih + b_hh
        # whh_ref : (H, 4H)      mm_dtype  W_hh^T (resident, single-buffered)
        # wfc_ref : (H, Cp)      mm_dtype  W_fc^T, lane-padded
        # bfc_ref : (1, Cp)      f32       b_fc, lane-padded
        # out_ref : (Bp, Cp)     f32       logits (written on last chunk only)
        # h_sc/c_sc: (Bp, H)     f32       LSTM state, persists across the grid
        t_blk = pl.program_id(0)

        # h0 = c0 = 0 matches torch.zeros in forward().
        @pl.when(t_blk == 0)
        def _():
            h_sc[...] = jnp.zeros_like(h_sc)
            c_sc[...] = jnp.zeros_like(c_sc)

        def step(i, carry):
            h, c = carry  # f32 (Bp, H)
            # Feed the MXU straight from the ref (no hoisted VMEM copy).
            gates = pg_ref[i].astype(jnp.float32) + jnp.dot(
                h.astype(whh_ref.dtype), whh_ref[...],
                preferred_element_type=jnp.float32)
            # One fused sigmoid over the contiguous i|f slab.
            if_g = jax.nn.sigmoid(gates[:, : 2 * H])
            i_g = if_g[:, :H]
            f_g = if_g[:, H:]
            g_g = jnp.tanh(gates[:, 2 * H: 3 * H])
            o_g = jax.nn.sigmoid(gates[:, 3 * H:])
            c_new = f_g * c + i_g * g_g
            h_new = o_g * jnp.tanh(c_new)
            if mask_tail:
                valid = (t_blk * Tc + i) < T
                h_new = jnp.where(valid, h_new, h)
                c_new = jnp.where(valid, c_new, c)
            return h_new, c_new

        h, c = lax.fori_loop(0, Tc, step, (h_sc[...], c_sc[...]), unroll=True)
        h_sc[...] = h
        c_sc[...] = c

        # Final linear layer on the last valid timestep's hidden state.
        @pl.when(t_blk == pl.num_programs(0) - 1)
        def _():
            logits = jnp.dot(h.astype(wfc_ref.dtype), wfc_ref[...],
                             preferred_element_type=jnp.float32) + bfc_ref[...]
            out_ref[...] = logits.astype(out_ref.dtype)

    return kernel


def volleyball_lstm_forward(x, params, *, t_chunk=8):
    """x: (B, T, D) float32.  Returns logits (B, num_classes) float32."""
    w_ih, w_hh, b_ih, b_hh, w_fc, b_fc = (
        params["w_ih"], params["w_hh"], params["b_ih"],
        params["b_hh"], params["w_fc"], params["b_fc"])

    B, T, D = x.shape
    H = w_hh.shape[1]          # w_hh: (4H, H)
    C = w_fc.shape[0]          # w_fc: (C, H)
    C_pad = ((C + 127) // 128) * 128          # lane-dense logits
    Bp = ((B + 7) // 8) * 8                   # sublane-aligned batch
    mm_dtype = _MM_DTYPE
    mm_bytes = jnp.dtype(mm_dtype).itemsize

    # ---- VMEM budget & Tc selection (review: explicit per-generation budget).
    try:
        vmem_cap = int(pltpu.get_tpu_info().vmem_capacity_bytes)
    except Exception:
        vmem_cap = 64 << 20        # conservative (v7x per-TC VMEM)

    def footprint(tc, single_buffer_weights=True):
        wb = 1 if single_buffer_weights else 2
        pg = 2 * tc * Bp * 4 * H * mm_bytes        # streamed, double-buffered
        whh = wb * H * 4 * H * mm_bytes            # resident W_hh^T
        wfc = wb * H * C_pad * mm_bytes            # resident W_fc^T
        bfc = wb * C_pad * 4
        out = 2 * Bp * C_pad * 4
        state = 2 * Bp * H * 4                     # h/c scratch
        return pg + whh + wfc + bfc + out + state

    budget = max(vmem_cap - (16 << 20), 8 << 20)   # headroom for Mosaic scratch
    Tc = 1
    for cand in range(min(T, t_chunk), 0, -1):
        if footprint(cand) <= budget:
            Tc = cand
            break
    num_chunks = (T + Tc - 1) // Tc
    T_pad = num_chunks * Tc
    mask_tail = (T_pad != T)

    vmem_limit = int(min(vmem_cap, max(footprint(Tc) + (16 << 20), 32 << 20)))

    # ---- Pad batch, cast to the matmul dtype.
    x_p = x if Bp == B else jnp.pad(x, ((0, Bp - B), (0, 0), (0, 0)))
    x_mm = x_p.astype(mm_dtype)                                 # (Bp, T, D)
    wih_t = jnp.transpose(w_ih).astype(mm_dtype)                # (D, 4H)
    whh_t = jnp.transpose(w_hh).astype(mm_dtype)                # (H, 4H)
    bias = b_ih.astype(jnp.float32) + b_hh.astype(jnp.float32)  # (4H,)

    # Hoisted input projection: ONE big matmul instead of T tiny ones.
    pre_gates = (jnp.einsum('btd,dg->tbg', x_mm, wih_t,
                            preferred_element_type=jnp.float32)
                 + bias[None, None, :])                         # (T, Bp, 4H) f32
    pre_gates = pre_gates.astype(mm_dtype)                      # halve HBM stream
    if T_pad != T:
        pre_gates = jnp.pad(pre_gates, ((0, T_pad - T), (0, 0), (0, 0)))

    wfc_t = jnp.zeros((H, C_pad), mm_dtype)
    wfc_t = wfc_t.at[:, :C].set(jnp.transpose(w_fc).astype(mm_dtype))
    bfc_p = jnp.zeros((1, C_pad), jnp.float32)
    bfc_p = bfc_p.at[0, :C].set(b_fc.astype(jnp.float32))

    kernel = _make_lstm_fc_kernel(H, Tc, T, mask_tail)

    def build_and_run(single_buffer_weights):
        def resident(shape):
            idx = lambda t, _shape=shape: (0,) * len(_shape)
            if single_buffer_weights and hasattr(pl, "Buffered"):
                try:
                    # Constant index_map -> DMA'd exactly once; single buffer.
                    return pl.BlockSpec(shape, idx, pipeline_mode=pl.Buffered(1))
                except TypeError:
                    pass
            return pl.BlockSpec(shape, idx)

        grid_spec = pltpu.PrefetchScalarGridSpec(
            num_scalar_prefetch=0,
            grid=(num_chunks,),
            in_specs=[
                pl.BlockSpec((Tc, Bp, 4 * H), lambda t: (t, 0, 0)),  # pre-gates
                resident((H, 4 * H)),                                # W_hh^T
                resident((H, C_pad)),                                # W_fc^T
                resident((1, C_pad)),                                # b_fc
            ],
            out_specs=pl.BlockSpec((Bp, C_pad), lambda t: (0, 0)),   # logits
            scratch_shapes=[
                pltpu.VMEM((Bp, H), jnp.float32),                    # h state
                pltpu.VMEM((Bp, H), jnp.float32),                    # c state
            ],
        )
        out = pl.pallas_call(
            kernel,
            out_shape=jax.ShapeDtypeStruct((Bp, C_pad), jnp.float32),
            grid_spec=grid_spec,
            compiler_params=pltpu.CompilerParams(
                dimension_semantics=("arbitrary",),   # recurrence is sequential
                vmem_limit_bytes=vmem_limit,
            ),
        )(pre_gates, whh_t, wfc_t, bfc_p)
        return jax.block_until_ready(out)

    try:
        logits_padded = build_and_run(True)
    except Exception:
        # pipeline_mode=pl.Buffered(1) unsupported on this jax version/backend.
        logits_padded = build_and_run(False)

    return logits_padded[:B, :C]


# ------------------------- reference for verification -------------------------

def reference_forward_f32(x, params):
    """Pure-f32 JAX LSTM reference (PyTorch gate order i,f,g,o)."""
    w_ih, w_hh, b_ih, b_hh, w_fc, b_fc = (
        params["w_ih"], params["w_hh"], params["b_ih"],
        params["b_hh"], params["w_fc"], params["b_fc"])
    B, T, D = x.shape
    H = w_hh.shape[1]

    def step(carry, x_t):
        h, c = carry
        gates = x_t @ w_ih.T + b_ih + h @ w_hh.T + b_hh
        i = jax.nn.sigmoid(gates[:, 0 * H:1 * H])
        f = jax.nn.sigmoid(gates[:, 1 * H:2 * H])
        g = jnp.tanh(gates[:, 2 * H:3 * H])
        o = jax.nn.sigmoid(gates[:, 3 * H:4 * H])
        c_new = f * c + i * g
        h_new = o * jnp.tanh(c_new)
        return (h_new, c_new), None

    h0 = jnp.zeros((B, H), jnp.float32)
    c0 = jnp.zeros((B, H), jnp.float32)
    (h_last, _), _ = lax.scan(step, (h0, c0), jnp.transpose(x, (1, 0, 2)))
    return h_last @ w_fc.T + b_fc


if __name__ == "__main__":
    # Small shapes consistent with the module's structure
    # (module defaults: input_dim=2048, hidden_dim=1024, num_classes=8).
    B, T, D, H, C = 2, 8, 256, 128, 8

    key = jax.random.PRNGKey(0)
    k_x, k_wih, k_whh, k_bih, k_bhh, k_wfc, k_bfc = jax.random.split(key, 7)

    scale = 0.05
    params = {
        "w_ih": scale * jax.random.normal(k_wih, (4 * H, D), jnp.float32),
        "w_hh": scale * jax.random.normal(k_whh, (4 * H, H), jnp.float32),
        "b_ih": scale * jax.random.normal(k_bih, (4 * H,), jnp.float32),
        "b_hh": scale * jax.random.normal(k_bhh, (4 * H,), jnp.float32),
        "w_fc": scale * jax.random.normal(k_wfc, (C, H), jnp.float32),
        "b_fc": scale * jax.random.normal(k_bfc, (C,), jnp.float32),
    }
    x = jax.random.normal(k_x, (B, T, D), jnp.float32)

    out = jax.block_until_ready(volleyball_lstm_forward(x, params))
    ref = jax.block_until_ready(reference_forward_f32(x, params))

    assert out.shape == (B, C), out.shape
    # f32 path matches to ~1e-5; bf16 (real TPU) drifts at the ~1e-3 level.
    assert jnp.allclose(out, ref, atol=3e-2, rtol=3e-2), (out, ref)
    print("KERNEL_OK")
</pallas_src>

<mosaic_0001>
module attributes {stable_mosaic.version = 11 : i64} {
  func.func @kernel(%arg0: i32, %arg1: memref<8x8x512xf32, #tpu.memory_space<vmem>>, %arg2: memref<128x512xf32, #tpu.memory_space<vmem>>, %arg3: memref<128x128xf32, #tpu.memory_space<vmem>>, %arg4: memref<1x128xf32, #tpu.memory_space<vmem>>, %arg5: memref<8x128xf32, #tpu.memory_space<vmem>>, %arg6: memref<8x128xf32, #tpu.memory_space<vmem>>, %arg7: memref<8x128xf32, #tpu.memory_space<vmem>>) attributes {dimension_semantics = [#tpu.dimension_semantics<arbitrary>], iteration_bounds = array<i64: 1>, scalar_prefetch = 0 : i64, scratch_operands = 2 : i64, tpu.core_type = #tpu.core_type<tc>, window_params = [{transform_indices = @transform_0, window_bounds = array<i64: 8, 8, 512>}, {pipeline_mode = #tpu.pipeline_mode<synchronous>, transform_indices = @transform_1, window_bounds = array<i64: 128, 512>}, {pipeline_mode = #tpu.pipeline_mode<synchronous>, transform_indices = @transform_2, window_bounds = array<i64: 128, 128>}, {pipeline_mode = #tpu.pipeline_mode<synchronous>, transform_indices = @transform_3, window_bounds = array<i64: 1, 128>}, {pipeline_mode = #tpu.pipeline_mode<synchronous>, transform_indices = @transform_4, window_bounds = array<i64: 8, 128>}]} {
    %c0_i32 = arith.constant 0 : i32
    %0 = arith.cmpi eq, %arg0, %c0_i32 : i32
    %1 = arith.extui %0 : i1 to i32
    %c0_i32_0 = arith.constant 0 : i32
    %2 = arith.cmpi ne, %1, %c0_i32_0 : i32
    scf.if %2 {
      %cst_66 = arith.constant 0.000000e+00 : f32
      %226 = vector.broadcast %cst_66 : f32 to vector<8x128xf32>
      %c0_67 = arith.constant 0 : index
      %c0_68 = arith.constant 0 : index
      %227 = vector.load %arg6[%c0_67, %c0_68] : memref<8x128xf32, #tpu.memory_space<vmem>>, vector<8x128xf32>
      tpu.vector_store %arg6[%c0_67, %c0_68], %226 {strides = array<i32>} : memref<8x128xf32, #tpu.memory_space<vmem>>, vector<8x128xf32>,
      %cst_69 = arith.constant 0.000000e+00 : f32
      %228 = vector.broadcast %cst_69 : f32 to vector<8x128xf32>
      %c0_70 = arith.constant 0 : index
      %c0_71 = arith.constant 0 : index
      %229 = vector.load %arg7[%c0_70, %c0_71] : memref<8x128xf32, #tpu.memory_space<vmem>>, vector<8x128xf32>
      tpu.vector_store %arg7[%c0_70, %c0_71], %228 {strides = array<i32>} : memref<8x128xf32, #tpu.memory_space<vmem>>, vector<8x128xf32>,
    } else {
    }
    %c0 = arith.constant 0 : index
    %c0_1 = arith.constant 0 : index
    %3 = vector.load %arg6[%c0, %c0_1] : memref<8x128xf32, #tpu.memory_space<vmem>>, vector<8x128xf32>
    %c0_2 = arith.constant 0 : index
    %c0_3 = arith.constant 0 : index
    %4 = vector.load %arg7[%c0_2, %c0_3] : memref<8x128xf32, #tpu.memory_space<vmem>>, vector<8x128xf32>
    %c0_i32_4 = arith.constant 0 : i32
    %5 = arith.index_cast %c0_i32_4 : i32 to index
    %c0_5 = arith.constant 0 : index
    %c0_6 = arith.constant 0 : index
    %6 = vector.load %arg1[%5, %c0_5, %c0_6] : memref<8x8x512xf32, #tpu.memory_space<vmem>>, vector<1x8x512xf32>
    %7 = vector.shape_cast %6 : vector<1x8x512xf32> to vector<8x512xf32>
    %c0_7 = arith.constant 0 : index
    %c0_8 = arith.constant 0 : index
    %8 = vector.load %arg2[%c0_7, %c0_8] : memref<128x512xf32, #tpu.memory_space<vmem>>, vector<128x512xf32>
    %cst = arith.constant dense<0.000000e+00> : vector<8x512xf32>
    %9 = tpu.matmul %3, %8, %cst {dimension_numbers = #tpu.dot_dimension_numbers<[1], [0], [0], [1], [0, 0, 1, 1], [], []>} : vector<8x128xf32>, vector<128x512xf32>, vector<8x512xf32> -> vector<8x512xf32>
    %10 = arith.addf %7, %9 : vector<8x512xf32>
    %11 = vector.extract_strided_slice %10 {offsets = [0, 0], sizes = [8, 256], strides = [1, 1]} : vector<8x512xf32> to vector<8x256xf32>
    %12 = arith.negf %11 : vector<8x256xf32>
    %13 = math.exp %12 : vector<8x256xf32>
    %cst_9 = arith.constant 1.000000e+00 : f32
    %14 = vector.broadcast %cst_9 : f32 to vector<8x256xf32>
    %15 = arith.addf %14, %13 : vector<8x256xf32>
    %16 = arith.divf %14, %15 : vector<8x256xf32>
    %17 = vector.extract_strided_slice %16 {offsets = [0, 0], sizes = [8, 128], strides = [1, 1]} : vector<8x256xf32> to vector<8x128xf32>
    %18 = vector.extract_strided_slice %16 {offsets = [0, 128], sizes = [8, 128], strides = [1, 1]} : vector<8x256xf32> to vector<8x128xf32>
    %19 = vector.extract_strided_slice %10 {offsets = [0, 256], sizes = [8, 128], strides = [1, 1]} : vector<8x512xf32> to vector<8x128xf32>
    %20 = math.tanh %19 : vector<8x128xf32>
    %21 = vector.extract_strided_slice %10 {offsets = [0, 384], sizes = [8, 128], strides = [1, 1]} : vector<8x512xf32> to vector<8x128xf32>
    %22 = arith.negf %21 : vector<8x128xf32>
    %23 = math.exp %22 : vector<8x128xf32>
    %cst_10 = arith.constant 1.000000e+00 : f32
    %24 = vector.broadcast %cst_10 : f32 to vector<8x128xf32>
    %25 = arith.addf %24, %23 : vector<8x128xf32>
    %26 = arith.divf %24, %25 : vector<8x128xf32>
    %27 = arith.mulf %18, %4 : vector<8x128xf32>
    %28 = arith.mulf %17, %20 : vector<8x128xf32>
    %29 = arith.addf %27, %28 : vector<8x128xf32>
    %30 = math.tanh %29 : vector<8x128xf32>
    %31 = arith.mulf %26, %30 : vector<8x128xf32>
    %c1_i32 = arith.constant 1 : i32
    %32 = arith.index_cast %c1_i32 : i32 to index
    %c0_11 = arith.constant 0 : index
    %c0_12 = arith.constant 0 : index
    %33 = vector.load %arg1[%32, %c0_11, %c0_12] : memref<8x8x512xf32, #tpu.memory_space<vmem>>, vector<1x8x512xf32>
    %34 = vector.shape_cast %33 : vector<1x8x512xf32> to vector<8x512xf32>
    %c0_13 = arith.constant 0 : index
    %c0_14 = arith.constant 0 : index
    %35 = vector.load %arg2[%c0_13, %c0_14] : memref<128x512xf32, #tpu.memory_space<vmem>>, vector<128x512xf32>
    %cst_15 = arith.constant dense<0.000000e+00> : vector<8x512xf32>
    %36 = tpu.matmul %31, %35, %cst_15 {dimension_numbers = #tpu.dot_dimension_numbers<[1], [0], [0], [1], [0, 0, 1, 1], [], []>} : vector<8x128xf32>, vector<128x512xf32>, vector<8x512xf32> -> vector<8x512xf32>
    %37 = arith.addf %34, %36 : vector<8x512xf32>
    %38 = vector.extract_strided_slice %37 {offsets = [0, 0], sizes = [8, 256], strides = [1, 1]} : vector<8x512xf32> to vector<8x256xf32>
    %39 = arith.negf %38 : vector<8x256xf32>
    %40 = math.exp %39 : vector<8x256xf32>
    %cst_16 = arith.constant 1.000000e+00 : f32
    %41 = vector.broadcast %cst_16 : f32 to vector<8x256xf32>
    %42 = arith.addf %41, %40 : vector<8x256xf32>
    %43 = arith.divf %41, %42 : vector<8x256xf32>
    %44 = vector.extract_strided_slice %43 {offsets = [0, 0], sizes = [8, 128], strides = [1, 1]} : vector<8x256xf32> to vector<8x128xf32>
    %45 = vector.extract_strided_slice %43 {offsets = [0, 128], sizes = [8, 128], strides = [1, 1]} : vector<8x256xf32> to vector<8x128xf32>
    %46 = vector.extract_strided_slice %37 {offsets = [0, 256], sizes = [8, 128], strides = [1, 1]} : vector<8x512xf32> to vector<8x128xf32>
    %47 = math.tanh %46 : vector<8x128xf32>
    %48 = vector.extract_strided_slice %37 {offsets = [0, 384], sizes = [8, 128], strides = [1, 1]} : vector<8x512xf32> to vector<8x128xf32>
    %49 = arith.negf %48 : vector<8x128xf32>
    %50 = math.exp %49 : vector<8x128xf32>
    %cst_17 = arith.constant 1.000000e+00 : f32
    %51 = vector.broadcast %cst_17 : f32 to vector<8x128xf32>
    %52 = arith.addf %51, %50 : vector<8x128xf32>
    %53 = arith.divf %51, %52 : vector<8x128xf32>
    %54 = arith.mulf %45, %29 : vector<8x128xf32>
    %55 = arith.mulf %44, %47 : vector<8x128xf32>
    %56 = arith.addf %54, %55 : vector<8x128xf32>
    %57 = math.tanh %56 : vector<8x128xf32>
    %58 = arith.mulf %53, %57 : vector<8x128xf32>
    %c2_i32 = arith.constant 2 : i32
    %59 = arith.index_cast %c2_i32 : i32 to index
    %c0_18 = arith.constant 0 : index
    %c0_19 = arith.constant 0 : index
    %60 = vector.load %arg1[%59, %c0_18, %c0_19] : memref<8x8x512xf32, #tpu.memory_space<vmem>>, vector<1x8x512xf32>
    %61 = vector.shape_cast %60 : vector<1x8x512xf32> to vector<8x512xf32>
    %c0_20 = arith.constant 0 : index
    %c0_21 = arith.constant 0 : index
    %62 = vector.load %arg2[%c0_20, %c0_21] : memref<128x512xf32, #tpu.memory_space<vmem>>, vector<128x512xf32>
    %cst_22 = arith.constant dense<0.000000e+00> : vector<8x512xf32>
    %63 = tpu.matmul %58, %62, %cst_22 {dimension_numbers = #tpu.dot_dimension_numbers<[1], [0], [0], [1], [0, 0, 1, 1], [], []>} : vector<8x128xf32>, vector<128x512xf32>, vector<8x512xf32> -> vector<8x512xf32>
    %64 = arith.addf %61, %63 : vector<8x512xf32>
    %65 = vector.extract_strided_slice %64 {offsets = [0, 0], sizes = [8, 256], strides = [1, 1]} : vector<8x512xf32> to vector<8x256xf32>
    %66 = arith.negf %65 : vector<8x256xf32>
    %67 = math.exp %66 : vector<8x256xf32>
    %cst_23 = arith.constant 1.000000e+00 : f32
    %68 = vector.broadcast %cst_23 : f32 to vector<8x256xf32>
    %69 = arith.addf %68, %67 : vector<8x256xf32>
    %70 = arith.divf %68, %69 : vector<8x256xf32>
    %71 = vector.extract_strided_slice %70 {offsets = [0, 0], sizes = [8, 128], strides = [1, 1]} : vector<8x256xf32> to vector<8x128xf32>
    %72 = vector.extract_strided_slice %70 {offsets = [0, 128], sizes = [8, 128], strides = [1, 1]} : vector<8x256xf32> to vector<8x128xf32>
    %73 = vector.extract_strided_slice %64 {offsets = [0, 256], sizes = [8, 128], strides = [1, 1]} : vector<8x512xf32> to vector<8x128xf32>
    %74 = math.tanh %73 : vector<8x128xf32>
    %75 = vector.extract_strided_slice %64 {offsets = [0, 384], sizes = [8, 128], strides = [1, 1]} : vector<8x512xf32> to vector<8x128xf32>
    %76 = arith.negf %75 : vector<8x128xf32>
    %77 = math.exp %76 : vector<8x128xf32>
    %cst_24 = arith.constant 1.000000e+00 : f32
    %78 = vector.broadcast %cst_24 : f32 to vector<8x128xf32>
    %79 = arith.addf %78, %77 : vector<8x128xf32>
    %80 = arith.divf %78, %79 : vector<8x128xf32>
    %81 = arith.mulf %72, %56 : vector<8x128xf32>
    %82 = arith.mulf %71, %74 : vector<8x128xf32>
    %83 = arith.addf %81, %82 : vector<8x128xf32>
    %84 = math.tanh %83 : vector<8x128xf32>
    %85 = arith.mulf %80, %84 : vector<8x128xf32>
    %c3_i32 = arith.constant 3 : i32
    %86 = arith.index_cast %c3_i32 : i32 to index
    %c0_25 = arith.constant 0 : index
    %c0_26 = arith.constant 0 : index
    %87 = vector.load %arg1[%86, %c0_25, %c0_26] : memref<8x8x512xf32, #tpu.memory_space<vmem>>, vector<1x8x512xf32>
    %88 = vector.shape_cast %87 : vector<1x8x512xf32> to vector<8x512xf32>
    %c0_27 = arith.constant 0 : index
    %c0_28 = arith.constant 0 : index
    %89 = vector.load %arg2[%c0_27, %c0_28] : memref<128x512xf32, #tpu.memory_space<vmem>>, vector<128x512xf32>
    %cst_29 = arith.constant dense<0.000000e+00> : vector<8x512xf32>
    %90 = tpu.matmul %85, %89, %cst_29 {dimension_numbers = #tpu.dot_dimension_numbers<[1], [0], [0], [1], [0, 0, 1, 1], [], []>} : vector<8x128xf32>, vector<128x512xf32>, vector<8x512xf32> -> vector<8x512xf32>
    %91 = arith.addf %88, %90 : vector<8x512xf32>
    %92 = vector.extract_strided_slice %91 {offsets = [0, 0], sizes = [8, 256], strides = [1, 1]} : vector<8x512xf32> to vector<8x256xf32>
    %93 = arith.negf %92 : vector<8x256xf32>
    %94 = math.exp %93 : vector<8x256xf32>
    %cst_30 = arith.constant 1.000000e+00 : f32
    %95 = vector.broadcast %cst_30 : f32 to vector<8x256xf32>
    %96 = arith.addf %95, %94 : vector<8x256xf32>
    %97 = arith.divf %95, %96 : vector<8x256xf32>
    %98 = vector.extract_strided_slice %97 {offsets = [0, 0], sizes = [8, 128], strides = [1, 1]} : vector<8x256xf32> to vector<8x128xf32>
    %99 = vector.extract_strided_slice %97 {offsets = [0, 128], sizes = [8, 128], strides = [1, 1]} : vector<8x256xf32> to vector<8x128xf32>
    %100 = vector.extract_strided_slice %91 {offsets = [0, 256], sizes = [8, 128], strides = [1, 1]} : vector<8x512xf32> to vector<8x128xf32>
    %101 = math.tanh %100 : vector<8x128xf32>
    %102 = vector.extract_strided_slice %91 {offsets = [0, 384], sizes = [8, 128], strides = [1, 1]} : vector<8x512xf32> to vector<8x128xf32>
    %103 = arith.negf %102 : vector<8x128xf32>
    %104 = math.exp %103 : vector<8x128xf32>
    %cst_31 = arith.constant 1.000000e+00 : f32
    %105 = vector.broadcast %cst_31 : f32 to vector<8x128xf32>
    %106 = arith.addf %105, %104 : vector<8x128xf32>
    %107 = arith.divf %105, %106 : vector<8x128xf32>
    %108 = arith.mulf %99, %83 : vector<8x128xf32>
    %109 = arith.mulf %98, %101 : vector<8x128xf32>
    %110 = arith.addf %108, %109 : vector<8x128xf32>
    %111 = math.tanh %110 : vector<8x128xf32>
    %112 = arith.mulf %107, %111 : vector<8x128xf32>
    %c4_i32 = arith.constant 4 : i32
    %113 = arith.index_cast %c4_i32 : i32 to index
    %c0_32 = arith.constant 0 : index
    %c0_33 = arith.constant 0 : index
    %114 = vector.load %arg1[%113, %c0_32, %c0_33] : memref<8x8x512xf32, #tpu.memory_space<vmem>>, vector<1x8x512xf32>
    %115 = vector.shape_cast %114 : vector<1x8x512xf32> to vector<8x512xf32>
    %c0_34 = arith.constant 0 : index
    %c0_35 = arith.constant 0 : index
    %116 = vector.load %arg2[%c0_34, %c0_35] : memref<128x512xf32, #tpu.memory_space<vmem>>, vector<128x512xf32>
    %cst_36 = arith.constant dense<0.000000e+00> : vector<8x512xf32>
    %117 = tpu.matmul %112, %116, %cst_36 {dimension_numbers = #tpu.dot_dimension_numbers<[1], [0], [0], [1], [0, 0, 1, 1], [], []>} : vector<8x128xf32>, vector<128x512xf32>, vector<8x512xf32> -> vector<8x512xf32>
    %118 = arith.addf %115, %117 : vector<8x512xf32>
    %119 = vector.extract_strided_slice %118 {offsets = [0, 0], sizes = [8, 256], strides = [1, 1]} : vector<8x512xf32> to vector<8x256xf32>
    %120 = arith.negf %119 : vector<8x256xf32>
    %121 = math.exp %120 : vector<8x256xf32>
    %cst_37 = arith.constant 1.000000e+00 : f32
    %122 = vector.broadcast %cst_37 : f32 to vector<8x256xf32>
    %123 = arith.addf %122, %121 : vector<8x256xf32>
    %124 = arith.divf %122, %123 : vector<8x256xf32>
    %125 = vector.extract_strided_slice %124 {offsets = [0, 0], sizes = [8, 128], strides = [1, 1]} : vector<8x256xf32> to vector<8x128xf32>
    %126 = vector.extract_strided_slice %124 {offsets = [0, 128], sizes = [8, 128], strides = [1, 1]} : vector<8x256xf32> to vector<8x128xf32>
    %127 = vector.extract_strided_slice %118 {offsets = [0, 256], sizes = [8, 128], strides = [1, 1]} : vector<8x512xf32> to vector<8x128xf32>
    %128 = math.tanh %127 : vector<8x128xf32>
    %129 = vector.extract_strided_slice %118 {offsets = [0, 384], sizes = [8, 128], strides = [1, 1]} : vector<8x512xf32> to vector<8x128xf32>
    %130 = arith.negf %129 : vector<8x128xf32>
    %131 = math.exp %130 : vector<8x128xf32>
    %cst_38 = arith.constant 1.000000e+00 : f32
    %132 = vector.broadcast %cst_38 : f32 to vector<8x128xf32>
    %133 = arith.addf %132, %131 : vector<8x128xf32>
    %134 = arith.divf %132, %133 : vector<8x128xf32>
    %135 = arith.mulf %126, %110 : vector<8x128xf32>
    %136 = arith.mulf %125, %128 : vector<8x128xf32>
    %137 = arith.addf %135, %136 : vector<8x128xf32>
    %138 = math.tanh %137 : vector<8x128xf32>
    %139 = arith.mulf %134, %138 : vector<8x128xf32>
    %c5_i32 = arith.constant 5 : i32
    %140 = arith.index_cast %c5_i32 : i32 to index
    %c0_39 = arith.constant 0 : index
    %c0_40 = arith.constant 0 : index
    %141 = vector.load %arg1[%140, %c0_39, %c0_40] : memref<8x8x512xf32, #tpu.memory_space<vmem>>, vector<1x8x512xf32>
    %142 = vector.shape_cast %141 : vector<1x8x512xf32> to vector<8x512xf32>
    %c0_41 = arith.constant 0 : index
    %c0_42 = arith.constant 0 : index
    %143 = vector.load %arg2[%c0_41, %c0_42] : memref<128x512xf32, #tpu.memory_space<vmem>>, vector<128x512xf32>
    %cst_43 = arith.constant dense<0.000000e+00> : vector<8x512xf32>
    %144 = tpu.matmul %139, %143, %cst_43 {dimension_numbers = #tpu.dot_dimension_numbers<[1], [0], [0], [1], [0, 0, 1, 1], [], []>} : vector<8x128xf32>, vector<128x512xf32>, vector<8x512xf32> -> vector<8x512xf32>
    %145 = arith.addf %142, %144 : vector<8x512xf32>
    %146 = vector.extract_strided_slice %145 {offsets = [0, 0], sizes = [8, 256], strides = [1, 1]} : vector<8x512xf32> to vector<8x256xf32>
    %147 = arith.negf %146 : vector<8x256xf32>
    %148 = math.exp %147 : vector<8x256xf32>
    %cst_44 = arith.constant 1.000000e+00 : f32
    %149 = vector.broadcast %cst_44 : f32 to vector<8x256xf32>
    %150 = arith.addf %149, %148 : vector<8x256xf32>
    %151 = arith.divf %149, %150 : vector<8x256xf32>
    %152 = vector.extract_strided_slice %151 {offsets = [0, 0], sizes = [8, 128], strides = [1, 1]} : vector<8x256xf32> to vector<8x128xf32>
    %153 = vector.extract_strided_slice %151 {offsets = [0, 128], sizes = [8, 128], strides = [1, 1]} : vector<8x256xf32> to vector<8x128xf32>
    %154 = vector.extract_strided_slice %145 {offsets = [0, 256], sizes = [8, 128], strides = [1, 1]} : vector<8x512xf32> to vector<8x128xf32>
    %155 = math.tanh %154 : vector<8x128xf32>
    %156 = vector.extract_strided_slice %145 {offsets = [0, 384], sizes = [8, 128], strides = [1, 1]} : vector<8x512xf32> to vector<8x128xf32>
    %157 = arith.negf %156 : vector<8x128xf32>
    %158 = math.exp %157 : vector<8x128xf32>
    %cst_45 = arith.constant 1.000000e+00 : f32
    %159 = vector.broadcast %cst_45 : f32 to vector<8x128xf32>
    %160 = arith.addf %159, %158 : vector<8x128xf32>
    %161 = arith.divf %159, %160 : vector<8x128xf32>
    %162 = arith.mulf %153, %137 : vector<8x128xf32>
    %163 = arith.mulf %152, %155 : vector<8x128xf32>
    %164 = arith.addf %162, %163 : vector<8x128xf32>
    %165 = math.tanh %164 : vector<8x128xf32>
    %166 = arith.mulf %161, %165 : vector<8x128xf32>
    %c6_i32 = arith.constant 6 : i32
    %167 = arith.index_cast %c6_i32 : i32 to index
    %c0_46 = arith.constant 0 : index
    %c0_47 = arith.constant 0 : index
    %168 = vector.load %arg1[%167, %c0_46, %c0_47] : memref<8x8x512xf32, #tpu.memory_space<vmem>>, vector<1x8x512xf32>
    %169 = vector.shape_cast %168 : vector<1x8x512xf32> to vector<8x512xf32>
    %c0_48 = arith.constant 0 : index
    %c0_49 = arith.constant 0 : index
    %170 = vector.load %arg2[%c0_48, %c0_49] : memref<128x512xf32, #tpu.memory_space<vmem>>, vector<128x512xf32>
    %cst_50 = arith.constant dense<0.000000e+00> : vector<8x512xf32>
    %171 = tpu.matmul %166, %170, %cst_50 {dimension_numbers = #tpu.dot_dimension_numbers<[1], [0], [0], [1], [0, 0, 1, 1], [], []>} : vector<8x128xf32>, vector<128x512xf32>, vector<8x512xf32> -> vector<8x512xf32>
    %172 = arith.addf %169, %171 : vector<8x512xf32>
    %173 = vector.extract_strided_slice %172 {offsets = [0, 0], sizes = [8, 256], strides = [1, 1]} : vector<8x512xf32> to vector<8x256xf32>
    %174 = arith.negf %173 : vector<8x256xf32>
    %175 = math.exp %174 : vector<8x256xf32>
    %cst_51 = arith.constant 1.000000e+00 : f32
    %176 = vector.broadcast %cst_51 : f32 to vector<8x256xf32>
    %177 = arith.addf %176, %175 : vector<8x256xf32>
    %178 = arith.divf %176, %177 : vector<8x256xf32>
    %179 = vector.extract_strided_slice %178 {offsets = [0, 0], sizes = [8, 128], strides = [1, 1]} : vector<8x256xf32> to vector<8x128xf32>
    %180 = vector.extract_strided_slice %178 {offsets = [0, 128], sizes = [8, 128], strides = [1, 1]} : vector<8x256xf32> to vector<8x128xf32>
    %181 = vector.extract_strided_slice %172 {offsets = [0, 256], sizes = [8, 128], strides = [1, 1]} : vector<8x512xf32> to vector<8x128xf32>
    %182 = math.tanh %181 : vector<8x128xf32>
    %183 = vector.extract_strided_slice %172 {offsets = [0, 384], sizes = [8, 128], strides = [1, 1]} : vector<8x512xf32> to vector<8x128xf32>
    %184 = arith.negf %183 : vector<8x128xf32>
    %185 = math.exp %184 : vector<8x128xf32>
    %cst_52 = arith.constant 1.000000e+00 : f32
    %186 = vector.broadcast %cst_52 : f32 to vector<8x128xf32>
    %187 = arith.addf %186, %185 : vector<8x128xf32>
    %188 = arith.divf %186, %187 : vector<8x128xf32>
    %189 = arith.mulf %180, %164 : vector<8x128xf32>
    %190 = arith.mulf %179, %182 : vector<8x128xf32>
    %191 = arith.addf %189, %190 : vector<8x128xf32>
    %192 = math.tanh %191 : vector<8x128xf32>
    %193 = arith.mulf %188, %192 : vector<8x128xf32>
    %c7_i32 = arith.constant 7 : i32
    %194 = arith.index_cast %c7_i32 : i32 to index
    %c0_53 = arith.constant 0 : index
    %c0_54 = arith.constant 0 : index
    %195 = vector.load %arg1[%194, %c0_53, %c0_54] : memref<8x8x512xf32, #tpu.memory_space<vmem>>, vector<1x8x512xf32>
    %196 = vector.shape_cast %195 : vector<1x8x512xf32> to vector<8x512xf32>
    %c0_55 = arith.constant 0 : index
    %c0_56 = arith.constant 0 : index
    %197 = vector.load %arg2[%c0_55, %c0_56] : memref<128x512xf32, #tpu.memory_space<vmem>>, vector<128x512xf32>
    %cst_57 = arith.constant dense<0.000000e+00> : vector<8x512xf32>
    %198 = tpu.matmul %193, %197, %cst_57 {dimension_numbers = #tpu.dot_dimension_numbers<[1], [0], [0], [1], [0, 0, 1, 1], [], []>} : vector<8x128xf32>, vector<128x512xf32>, vector<8x512xf32> -> vector<8x512xf32>
    %199 = arith.addf %196, %198 : vector<8x512xf32>
    %200 = vector.extract_strided_slice %199 {offsets = [0, 0], sizes = [8, 256], strides = [1, 1]} : vector<8x512xf32> to vector<8x256xf32>
    %201 = arith.negf %200 : vector<8x256xf32>
    %202 = math.exp %201 : vector<8x256xf32>
    %cst_58 = arith.constant 1.000000e+00 : f32
    %203 = vector.broadcast %cst_58 : f32 to vector<8x256xf32>
    %204 = arith.addf %203, %202 : vector<8x256xf32>
    %205 = arith.divf %203, %204 : vector<8x256xf32>
    %206 = vector.extract_strided_slice %205 {offsets = [0, 0], sizes = [8, 128], strides = [1, 1]} : vector<8x256xf32> to vector<8x128xf32>
    %207 = vector.extract_strided_slice %205 {offsets = [0, 128], sizes = [8, 128], strides = [1, 1]} : vector<8x256xf32> to vector<8x128xf32>
    %208 = vector.extract_strided_slice %199 {offsets = [0, 256], sizes = [8, 128], strides = [1, 1]} : vector<8x512xf32> to vector<8x128xf32>
    %209 = math.tanh %208 : vector<8x128xf32>
    %210 = vector.extract_strided_slice %199 {offsets = [0, 384], sizes = [8, 128], strides = [1, 1]} : vector<8x512xf32> to vector<8x128xf32>
    %211 = arith.negf %210 : vector<8x128xf32>
    %212 = math.exp %211 : vector<8x128xf32>
    %cst_59 = arith.constant 1.000000e+00 : f32
    %213 = vector.broadcast %cst_59 : f32 to vector<8x128xf32>
    %214 = arith.addf %213, %212 : vector<8x128xf32>
    %215 = arith.divf %213, %214 : vector<8x128xf32>
    %216 = arith.mulf %207, %191 : vector<8x128xf32>
    %217 = arith.mulf %206, %209 : vector<8x128xf32>
    %218 = arith.addf %216, %217 : vector<8x128xf32>
    %219 = math.tanh %218 : vector<8x128xf32>
    %220 = arith.mulf %215, %219 : vector<8x128xf32>
    %c8_i32 = arith.constant 8 : i32
    %c0_60 = arith.constant 0 : index
    %c0_61 = arith.constant 0 : index
    %221 = vector.load %arg6[%c0_60, %c0_61] : memref<8x128xf32, #tpu.memory_space<vmem>>, vector<8x128xf32>
    tpu.vector_store %arg6[%c0_60, %c0_61], %220 {strides = array<i32>} : memref<8x128xf32, #tpu.memory_space<vmem>>, vector<8x128xf32>,
    %c0_62 = arith.constant 0 : index
    %c0_63 = arith.constant 0 : index
    %222 = vector.load %arg7[%c0_62, %c0_63] : memref<8x128xf32, #tpu.memory_space<vmem>>, vector<8x128xf32>
    tpu.vector_store %arg7[%c0_62, %c0_63], %218 {strides = array<i32>} : memref<8x128xf32, #tpu.memory_space<vmem>>, vector<8x128xf32>,
    %c0_i32_64 = arith.constant 0 : i32
    %223 = arith.cmpi eq, %arg0, %c0_i32_64 : i32
    %224 = arith.extui %223 : i1 to i32
    %c0_i32_65 = arith.constant 0 : i32
    %225 = arith.cmpi ne, %224, %c0_i32_65 : i32
    scf.if %225 {
      %c0_66 = arith.constant 0 : index
      %c0_67 = arith.constant 0 : index
      %226 = vector.load %arg3[%c0_66, %c0_67] : memref<128x128xf32, #tpu.memory_space<vmem>>, vector<128x128xf32>
      %cst_68 = arith.constant dense<0.000000e+00> : vector<8x128xf32>
      %227 = tpu.matmul %220, %226, %cst_68 {dimension_numbers = #tpu.dot_dimension_numbers<[1], [0], [0], [1], [0, 0, 1, 1], [], []>} : vector<8x128xf32>, vector<128x128xf32>, vector<8x128xf32> -> vector<8x128xf32>
      %c0_69 = arith.constant 0 : index
      %c0_70 = arith.constant 0 : index
      %228 = vector.load %arg4[%c0_69, %c0_70] : memref<1x128xf32, #tpu.memory_space<vmem>>, vector<1x128xf32>
      %229 = vector.broadcast %228 : vector<1x128xf32> to vector<8x128xf32>
      %230 = arith.addf %227, %229 : vector<8x128xf32>
      %c0_71 = arith.constant 0 : index
      %c0_72 = arith.constant 0 : index
      %231 = vector.load %arg5[%c0_71, %c0_72] : memref<8x128xf32, #tpu.memory_space<vmem>>, vector<8x128xf32>
      tpu.vector_store %arg5[%c0_71, %c0_72], %230 {strides = array<i32>} : memref<8x128xf32, #tpu.memory_space<vmem>>, vector<8x128xf32>,
    } else {
    }
    return
  }
  func.func @transform_0(%arg0: i32) -> (i32, i32, i32) {
    %c0_i32 = arith.constant 0 : i32
    %c0_i32_0 = arith.constant 0 : i32
    %c0_i32_1 = arith.constant 0 : i32
    return %arg0, %c0_i32, %c0_i32_0 : i32, i32, i32
  }
  func.func @transform_1(%arg0: i32) -> (i32, i32) {
    %c0_i32 = arith.constant 0 : i32
    %c0_i32_0 = arith.constant 0 : i32
    %c0_i32_1 = arith.constant 0 : i32
    return %c0_i32, %c0_i32_0 : i32, i32
  }
  func.func @transform_2(%arg0: i32) -> (i32, i32) {
    %c0_i32 = arith.constant 0 : i32
    %c0_i32_0 = arith.constant 0 : i32
    %c0_i32_1 = arith.constant 0 : i32
    return %c0_i32, %c0_i32_0 : i32, i32
  }
  func.func @transform_3(%arg0: i32) -> (i32, i32) {
    %c0_i32 = arith.constant 0 : i32
    %c0_i32_0 = arith.constant 0 : i32
    %c0_i32_1 = arith.constant 0 : i32
    return %c0_i32, %c0_i32_0 : i32, i32
  }
  func.func @transform_4(%arg0: i32) -> (i32, i32) {
    %c0_i32 = arith.constant 0 : i32
    %c0_i32_0 = arith.constant 0 : i32
    %c0_i32_1 = arith.constant 0 : i32
    return %c0_i32, %c0_i32_0 : i32, i32
  }
}

module attributes {stable_mosaic.version = 11 : i64} {
  func.func @kernel(%arg0: i32, %arg1: memref<8x8x512xf32, #tpu.memory_space<vmem>>, %arg2: memref<128x512xf32, #tpu.memory_space<vmem>>, %arg3: memref<128x128xf32, #tpu.memory_space<vmem>>, %arg4: memref<1x128xf32, #tpu.memory_space<vmem>>, %arg5: memref<8x128xf32, #tpu.memory_space<vmem>>, %arg6: memref<8x128xf32, #tpu.memory_space<vmem>>, %arg7: memref<8x128xf32, #tpu.memory_space<vmem>>) attributes {dimension_semantics = [#tpu.dimension_semantics<arbitrary>], iteration_bounds = array<i64: 1>, scalar_prefetch = 0 : i64, scratch_operands = 2 : i64, tpu.core_type = #tpu.core_type<tc>, window_params = [{transform_indices = @transform_0, window_bounds = array<i64: 8, 8, 512>}, {pipeline_mode = #tpu.pipeline_mode<synchronous>, transform_indices = @transform_1, window_bounds = array<i64: 128, 512>}, {pipeline_mode = #tpu.pipeline_mode<synchronous>, transform_indices = @transform_2, window_bounds = array<i64: 128, 128>}, {pipeline_mode = #tpu.pipeline_mode<synchronous>, transform_indices = @transform_3, window_bounds = array<i64: 1, 128>}, {pipeline_mode = #tpu.pipeline_mode<synchronous>, transform_indices = @transform_4, window_bounds = array<i64: 8, 128>}]} {
    %c0_i32 = arith.constant 0 : i32
    %0 = arith.cmpi eq, %arg0, %c0_i32 : i32
    %1 = arith.extui %0 : i1 to i32
    %c0_i32_0 = arith.constant 0 : i32
    %2 = arith.cmpi ne, %1, %c0_i32_0 : i32
    scf.if %2 {
      %cst_66 = arith.constant 0.000000e+00 : f32
      %226 = vector.broadcast %cst_66 : f32 to vector<8x128xf32>
      %c0_67 = arith.constant 0 : index
      %c0_68 = arith.constant 0 : index
      %227 = vector.load %arg6[%c0_67, %c0_68] : memref<8x128xf32, #tpu.memory_space<vmem>>, vector<8x128xf32>
      tpu.vector_store %arg6[%c0_67, %c0_68], %226 {strides = array<i32>} : memref<8x128xf32, #tpu.memory_space<vmem>>, vector<8x128xf32>,
      %cst_69 = arith.constant 0.000000e+00 : f32
      %228 = vector.broadcast %cst_69 : f32 to vector<8x128xf32>
      %c0_70 = arith.constant 0 : index
      %c0_71 = arith.constant 0 : index
      %229 = vector.load %arg7[%c0_70, %c0_71] : memref<8x128xf32, #tpu.memory_space<vmem>>, vector<8x128xf32>
      tpu.vector_store %arg7[%c0_70, %c0_71], %228 {strides = array<i32>} : memref<8x128xf32, #tpu.memory_space<vmem>>, vector<8x128xf32>,
    } else {
    }
    %c0 = arith.constant 0 : index
    %c0_1 = arith.constant 0 : index
    %3 = vector.load %arg6[%c0, %c0_1] : memref<8x128xf32, #tpu.memory_space<vmem>>, vector<8x128xf32>
    %c0_2 = arith.constant 0 : index
    %c0_3 = arith.constant 0 : index
    %4 = vector.load %arg7[%c0_2, %c0_3] : memref<8x128xf32, #tpu.memory_space<vmem>>, vector<8x128xf32>
    %c0_i32_4 = arith.constant 0 : i32
    %5 = arith.index_cast %c0_i32_4 : i32 to index
    %c0_5 = arith.constant 0 : index
    %c0_6 = arith.constant 0 : index
    %6 = vector.load %arg1[%5, %c0_5, %c0_6] : memref<8x8x512xf32, #tpu.memory_space<vmem>>, vector<1x8x512xf32>
    %7 = vector.shape_cast %6 : vector<1x8x512xf32> to vector<8x512xf32>
    %c0_7 = arith.constant 0 : index
    %c0_8 = arith.constant 0 : index
    %8 = vector.load %arg2[%c0_7, %c0_8] : memref<128x512xf32, #tpu.memory_space<vmem>>, vector<128x512xf32>
    %cst = arith.constant dense<0.000000e+00> : vector<8x512xf32>
    %9 = tpu.matmul %3, %8, %cst {dimension_numbers = #tpu.dot_dimension_numbers<[1], [0], [0], [1], [0, 0, 1, 1], [], []>} : vector<8x128xf32>, vector<128x512xf32>, vector<8x512xf32> -> vector<8x512xf32>
    %10 = arith.addf %7, %9 : vector<8x512xf32>
    %11 = vector.extract_strided_slice %10 {offsets = [0, 0], sizes = [8, 256], strides = [1, 1]} : vector<8x512xf32> to vector<8x256xf32>
    %12 = arith.negf %11 : vector<8x256xf32>
    %13 = math.exp %12 : vector<8x256xf32>
    %cst_9 = arith.constant 1.000000e+00 : f32
    %14 = vector.broadcast %cst_9 : f32 to vector<8x256xf32>
    %15 = arith.addf %14, %13 : vector<8x256xf32>
    %16 = arith.divf %14, %15 : vector<8x256xf32>
    %17 = vector.extract_strided_slice %16 {offsets = [0, 0], sizes = [8, 128], strides = [1, 1]} : vector<8x256xf32> to vector<8x128xf32>
    %18 = vector.extract_strided_slice %16 {offsets = [0, 128], sizes = [8, 128], strides = [1, 1]} : vector<8x256xf32> to vector<8x128xf32>
    %19 = vector.extract_strided_slice %10 {offsets = [0, 256], sizes = [8, 128], strides = [1, 1]} : vector<8x512xf32> to vector<8x128xf32>
    %20 = math.tanh %19 : vector<8x128xf32>
    %21 = vector.extract_strided_slice %10 {offsets = [0, 384], sizes = [8, 128], strides = [1, 1]} : vector<8x512xf32> to vector<8x128xf32>
    %22 = arith.negf %21 : vector<8x128xf32>
    %23 = math.exp %22 : vector<8x128xf32>
    %cst_10 = arith.constant 1.000000e+00 : f32
    %24 = vector.broadcast %cst_10 : f32 to vector<8x128xf32>
    %25 = arith.addf %24, %23 : vector<8x128xf32>
    %26 = arith.divf %24, %25 : vector<8x128xf32>
    %27 = arith.mulf %18, %4 : vector<8x128xf32>
    %28 = arith.mulf %17, %20 : vector<8x128xf32>
    %29 = arith.addf %27, %28 : vector<8x128xf32>
    %30 = math.tanh %29 : vector<8x128xf32>
    %31 = arith.mulf %26, %30 : vector<8x128xf32>
    %c1_i32 = arith.constant 1 : i32
    %32 = arith.index_cast %c1_i32 : i32 to index
    %c0_11 = arith.constant 0 : index
    %c0_12 = arith.constant 0 : index
    %33 = vector.load %arg1[%32, %c0_11, %c0_12] : memref<8x8x512xf32, #tpu.memory_space<vmem>>, vector<1x8x512xf32>
    %34 = vector.shape_cast %33 : vector<1x8x512xf32> to vector<8x512xf32>
    %c0_13 = arith.constant 0 : index
    %c0_14 = arith.constant 0 : index
    %35 = vector.load %arg2[%c0_13, %c0_14] : memref<128x512xf32, #tpu.memory_space<vmem>>, vector<128x512xf32>
    %cst_15 = arith.constant dense<0.000000e+00> : vector<8x512xf32>
    %36 = tpu.matmul %31, %35, %cst_15 {dimension_numbers = #tpu.dot_dimension_numbers<[1], [0], [0], [1], [0, 0, 1, 1], [], []>} : vector<8x128xf32>, vector<128x512xf32>, vector<8x512xf32> -> vector<8x512xf32>
    %37 = arith.addf %34, %36 : vector<8x512xf32>
    %38 = vector.extract_strided_slice %37 {offsets = [0, 0], sizes = [8, 256], strides = [1, 1]} : vector<8x512xf32> to vector<8x256xf32>
    %39 = arith.negf %38 : vector<8x256xf32>
    %40 = math.exp %39 : vector<8x256xf32>
    %cst_16 = arith.constant 1.000000e+00 : f32
    %41 = vector.broadcast %cst_16 : f32 to vector<8x256xf32>
    %42 = arith.addf %41, %40 : vector<8x256xf32>
    %43 = arith.divf %41, %42 : vector<8x256xf32>
    %44 = vector.extract_strided_slice %43 {offsets = [0, 0], sizes = [8, 128], strides = [1, 1]} : vector<8x256xf32> to vector<8x128xf32>
    %45 = vector.extract_strided_slice %43 {offsets = [0, 128], sizes = [8, 128], strides = [1, 1]} : vector<8x256xf32> to vector<8x128xf32>
    %46 = vector.extract_strided_slice %37 {offsets = [0, 256], sizes = [8, 128], strides = [1, 1]} : vector<8x512xf32> to vector<8x128xf32>
    %47 = math.tanh %46 : vector<8x128xf32>
    %48 = vector.extract_strided_slice %37 {offsets = [0, 384], sizes = [8, 128], strides = [1, 1]} : vector<8x512xf32> to vector<8x128xf32>
    %49 = arith.negf %48 : vector<8x128xf32>
    %50 = math.exp %49 : vector<8x128xf32>
    %cst_17 = arith.constant 1.000000e+00 : f32
    %51 = vector.broadcast %cst_17 : f32 to vector<8x128xf32>
    %52 = arith.addf %51, %50 : vector<8x128xf32>
    %53 = arith.divf %51, %52 : vector<8x128xf32>
    %54 = arith.mulf %45, %29 : vector<8x128xf32>
    %55 = arith.mulf %44, %47 : vector<8x128xf32>
    %56 = arith.addf %54, %55 : vector<8x128xf32>
    %57 = math.tanh %56 : vector<8x128xf32>
    %58 = arith.mulf %53, %57 : vector<8x128xf32>
    %c2_i32 = arith.constant 2 : i32
    %59 = arith.index_cast %c2_i32 : i32 to index
    %c0_18 = arith.constant 0 : index
    %c0_19 = arith.constant 0 : index
    %60 = vector.load %arg1[%59, %c0_18, %c0_19] : memref<8x8x512xf32, #tpu.memory_space<vmem>>, vector<1x8x512xf32>
    %61 = vector.shape_cast %60 : vector<1x8x512xf32> to vector<8x512xf32>
    %c0_20 = arith.constant 0 : index
    %c0_21 = arith.constant 0 : index
    %62 = vector.load %arg2[%c0_20, %c0_21] : memref<128x512xf32, #tpu.memory_space<vmem>>, vector<128x512xf32>
    %cst_22 = arith.constant dense<0.000000e+00> : vector<8x512xf32>
    %63 = tpu.matmul %58, %62, %cst_22 {dimension_numbers = #tpu.dot_dimension_numbers<[1], [0], [0], [1], [0, 0, 1, 1], [], []>} : vector<8x128xf32>, vector<128x512xf32>, vector<8x512xf32> -> vector<8x512xf32>
    %64 = arith.addf %61, %63 : vector<8x512xf32>
    %65 = vector.extract_strided_slice %64 {offsets = [0, 0], sizes = [8, 256], strides = [1, 1]} : vector<8x512xf32> to vector<8x256xf32>
    %66 = arith.negf %65 : vector<8x256xf32>
    %67 = math.exp %66 : vector<8x256xf32>
    %cst_23 = arith.constant 1.000000e+00 : f32
    %68 = vector.broadcast %cst_23 : f32 to vector<8x256xf32>
    %69 = arith.addf %68, %67 : vector<8x256xf32>
    %70 = arith.divf %68, %69 : vector<8x256xf32>
    %71 = vector.extract_strided_slice %70 {offsets = [0, 0], sizes = [8, 128], strides = [1, 1]} : vector<8x256xf32> to vector<8x128xf32>
    %72 = vector.extract_strided_slice %70 {offsets = [0, 128], sizes = [8, 128], strides = [1, 1]} : vector<8x256xf32> to vector<8x128xf32>
    %73 = vector.extract_strided_slice %64 {offsets = [0, 256], sizes = [8, 128], strides = [1, 1]} : vector<8x512xf32> to vector<8x128xf32>
    %74 = math.tanh %73 : vector<8x128xf32>
    %75 = vector.extract_strided_slice %64 {offsets = [0, 384], sizes = [8, 128], strides = [1, 1]} : vector<8x512xf32> to vector<8x128xf32>
    %76 = arith.negf %75 : vector<8x128xf32>
    %77 = math.exp %76 : vector<8x128xf32>
    %cst_24 = arith.constant 1.000000e+00 : f32
    %78 = vector.broadcast %cst_24 : f32 to vector<8x128xf32>
    %79 = arith.addf %78, %77 : vector<8x128xf32>
    %80 = arith.divf %78, %79 : vector<8x128xf32>
    %81 = arith.mulf %72, %56 : vector<8x128xf32>
    %82 = arith.mulf %71, %74 : vector<8x128xf32>
    %83 = arith.addf %81, %82 : vector<8x128xf32>
    %84 = math.tanh %83 : vector<8x128xf32>
    %85 = arith.mulf %80, %84 : vector<8x128xf32>
    %c3_i32 = arith.constant 3 : i32
    %86 = arith.index_cast %c3_i32 : i32 to index
    %c0_25 = arith.constant 0 : index
    %c0_26 = arith.constant 0 : index
    %87 = vector.load %arg1[%86, %c0_25, %c0_26] : memref<8x8x512xf32, #tpu.memory_space<vmem>>, vector<1x8x512xf32>
    %88 = vector.shape_cast %87 : vector<1x8x512xf32> to vector<8x512xf32>
    %c0_27 = arith.constant 0 : index
    %c0_28 = arith.constant 0 : index
    %89 = vector.load %arg2[%c0_27, %c0_28] : memref<128x512xf32, #tpu.memory_space<vmem>>, vector<128x512xf32>
    %cst_29 = arith.constant dense<0.000000e+00> : vector<8x512xf32>
    %90 = tpu.matmul %85, %89, %cst_29 {dimension_numbers = #tpu.dot_dimension_numbers<[1], [0], [0], [1], [0, 0, 1, 1], [], []>} : vector<8x128xf32>, vector<128x512xf32>, vector<8x512xf32> -> vector<8x512xf32>
    %91 = arith.addf %88, %90 : vector<8x512xf32>
    %92 = vector.extract_strided_slice %91 {offsets = [0, 0], sizes = [8, 256], strides = [1, 1]} : vector<8x512xf32> to vector<8x256xf32>
    %93 = arith.negf %92 : vector<8x256xf32>
    %94 = math.exp %93 : vector<8x256xf32>
    %cst_30 = arith.constant 1.000000e+00 : f32
    %95 = vector.broadcast %cst_30 : f32 to vector<8x256xf32>
    %96 = arith.addf %95, %94 : vector<8x256xf32>
    %97 = arith.divf %95, %96 : vector<8x256xf32>
    %98 = vector.extract_strided_slice %97 {offsets = [0, 0], sizes = [8, 128], strides = [1, 1]} : vector<8x256xf32> to vector<8x128xf32>
    %99 = vector.extract_strided_slice %97 {offsets = [0, 128], sizes = [8, 128], strides = [1, 1]} : vector<8x256xf32> to vector<8x128xf32>
    %100 = vector.extract_strided_slice %91 {offsets = [0, 256], sizes = [8, 128], strides = [1, 1]} : vector<8x512xf32> to vector<8x128xf32>
    %101 = math.tanh %100 : vector<8x128xf32>
    %102 = vector.extract_strided_slice %91 {offsets = [0, 384], sizes = [8, 128], strides = [1, 1]} : vector<8x512xf32> to vector<8x128xf32>
    %103 = arith.negf %102 : vector<8x128xf32>
    %104 = math.exp %103 : vector<8x128xf32>
    %cst_31 = arith.constant 1.000000e+00 : f32
    %105 = vector.broadcast %cst_31 : f32 to vector<8x128xf32>
    %106 = arith.addf %105, %104 : vector<8x128xf32>
    %107 = arith.divf %105, %106 : vector<8x128xf32>
    %108 = arith.mulf %99, %83 : vector<8x128xf32>
    %109 = arith.mulf %98, %101 : vector<8x128xf32>
    %110 = arith.addf %108, %109 : vector<8x128xf32>
    %111 = math.tanh %110 : vector<8x128xf32>
    %112 = arith.mulf %107, %111 : vector<8x128xf32>
    %c4_i32 = arith.constant 4 : i32
    %113 = arith.index_cast %c4_i32 : i32 to index
    %c0_32 = arith.constant 0 : index
    %c0_33 = arith.constant 0 : index
    %114 = vector.load %arg1[%113, %c0_32, %c0_33] : memref<8x8x512xf32, #tpu.memory_space<vmem>>, vector<1x8x512xf32>
    %115 = vector.shape_cast %114 : vector<1x8x512xf32> to vector<8x512xf32>
    %c0_34 = arith.constant 0 : index
    %c0_35 = arith.constant 0 : index
    %116 = vector.load %arg2[%c0_34, %c0_35] : memref<128x512xf32, #tpu.memory_space<vmem>>, vector<128x512xf32>
    %cst_36 = arith.constant dense<0.000000e+00> : vector<8x512xf32>
    %117 = tpu.matmul %112, %116, %cst_36 {dimension_numbers = #tpu.dot_dimension_numbers<[1], [0], [0], [1], [0, 0, 1, 1], [], []>} : vector<8x128xf32>, vector<128x512xf32>, vector<8x512xf32> -> vector<8x512xf32>
    %118 = arith.addf %115, %117 : vector<8x512xf32>
    %119 = vector.extract_strided_slice %118 {offsets = [0, 0], sizes = [8, 256], strides = [1, 1]} : vector<8x512xf32> to vector<8x256xf32>
    %120 = arith.negf %119 : vector<8x256xf32>
    %121 = math.exp %120 : vector<8x256xf32>
    %cst_37 = arith.constant 1.000000e+00 : f32
    %122 = vector.broadcast %cst_37 : f32 to vector<8x256xf32>
    %123 = arith.addf %122, %121 : vector<8x256xf32>
    %124 = arith.divf %122, %123 : vector<8x256xf32>
    %125 = vector.extract_strided_slice %124 {offsets = [0, 0], sizes = [8, 128], strides = [1, 1]} : vector<8x256xf32> to vector<8x128xf32>
    %126 = vector.extract_strided_slice %124 {offsets = [0, 128], sizes = [8, 128], strides = [1, 1]} : vector<8x256xf32> to vector<8x128xf32>
    %127 = vector.extract_strided_slice %118 {offsets = [0, 256], sizes = [8, 128], strides = [1, 1]} : vector<8x512xf32> to vector<8x128xf32>
    %128 = math.tanh %127 : vector<8x128xf32>
    %129 = vector.extract_strided_slice %118 {offsets = [0, 384], sizes = [8, 128], strides = [1, 1]} : vector<8x512xf32> to vector<8x128xf32>
    %130 = arith.negf %129 : vector<8x128xf32>
    %131 = math.exp %130 : vector<8x128xf32>
    %cst_38 = arith.constant 1.000000e+00 : f32
    %132 = vector.broadcast %cst_38 : f32 to vector<8x128xf32>
    %133 = arith.addf %132, %131 : vector<8x128xf32>
    %134 = arith.divf %132, %133 : vector<8x128xf32>
    %135 = arith.mulf %126, %110 : vector<8x128xf32>
    %136 = arith.mulf %125, %128 : vector<8x128xf32>
    %137 = arith.addf %135, %136 : vector<8x128xf32>
    %138 = math.tanh %137 : vector<8x128xf32>
    %139 = arith.mulf %134, %138 : vector<8x128xf32>
    %c5_i32 = arith.constant 5 : i32
    %140 = arith.index_cast %c5_i32 : i32 to index
    %c0_39 = arith.constant 0 : index
    %c0_40 = arith.constant 0 : index
    %141 = vector.load %arg1[%140, %c0_39, %c0_40] : memref<8x8x512xf32, #tpu.memory_space<vmem>>, vector<1x8x512xf32>
    %142 = vector.shape_cast %141 : vector<1x8x512xf32> to vector<8x512xf32>
    %c0_41 = arith.constant 0 : index
    %c0_42 = arith.constant 0 : index
    %143 = vector.load %arg2[%c0_41, %c0_42] : memref<128x512xf32, #tpu.memory_space<vmem>>, vector<128x512xf32>
    %cst_43 = arith.constant dense<0.000000e+00> : vector<8x512xf32>
    %144 = tpu.matmul %139, %143, %cst_43 {dimension_numbers = #tpu.dot_dimension_numbers<[1], [0], [0], [1], [0, 0, 1, 1], [], []>} : vector<8x128xf32>, vector<128x512xf32>, vector<8x512xf32> -> vector<8x512xf32>
    %145 = arith.addf %142, %144 : vector<8x512xf32>
    %146 = vector.extract_strided_slice %145 {offsets = [0, 0], sizes = [8, 256], strides = [1, 1]} : vector<8x512xf32> to vector<8x256xf32>
    %147 = arith.negf %146 : vector<8x256xf32>
    %148 = math.exp %147 : vector<8x256xf32>
    %cst_44 = arith.constant 1.000000e+00 : f32
    %149 = vector.broadcast %cst_44 : f32 to vector<8x256xf32>
    %150 = arith.addf %149, %148 : vector<8x256xf32>
    %151 = arith.divf %149, %150 : vector<8x256xf32>
    %152 = vector.extract_strided_slice %151 {offsets = [0, 0], sizes = [8, 128], strides = [1, 1]} : vector<8x256xf32> to vector<8x128xf32>
    %153 = vector.extract_strided_slice %151 {offsets = [0, 128], sizes = [8, 128], strides = [1, 1]} : vector<8x256xf32> to vector<8x128xf32>
    %154 = vector.extract_strided_slice %145 {offsets = [0, 256], sizes = [8, 128], strides = [1, 1]} : vector<8x512xf32> to vector<8x128xf32>
    %155 = math.tanh %154 : vector<8x128xf32>
    %156 = vector.extract_strided_slice %145 {offsets = [0, 384], sizes = [8, 128], strides = [1, 1]} : vector<8x512xf32> to vector<8x128xf32>
    %157 = arith.negf %156 : vector<8x128xf32>
    %158 = math.exp %157 : vector<8x128xf32>
    %cst_45 = arith.constant 1.000000e+00 : f32
    %159 = vector.broadcast %cst_45 : f32 to vector<8x128xf32>
    %160 = arith.addf %159, %158 : vector<8x128xf32>
    %161 = arith.divf %159, %160 : vector<8x128xf32>
    %162 = arith.mulf %153, %137 : vector<8x128xf32>
    %163 = arith.mulf %152, %155 : vector<8x128xf32>
    %164 = arith.addf %162, %163 : vector<8x128xf32>
    %165 = math.tanh %164 : vector<8x128xf32>
    %166 = arith.mulf %161, %165 : vector<8x128xf32>
    %c6_i32 = arith.constant 6 : i32
    %167 = arith.index_cast %c6_i32 : i32 to index
    %c0_46 = arith.constant 0 : index
    %c0_47 = arith.constant 0 : index
    %168 = vector.load %arg1[%167, %c0_46, %c0_47] : memref<8x8x512xf32, #tpu.memory_space<vmem>>, vector<1x8x512xf32>
    %169 = vector.shape_cast %168 : vector<1x8x512xf32> to vector<8x512xf32>
    %c0_48 = arith.constant 0 : index
    %c0_49 = arith.constant 0 : index
    %170 = vector.load %arg2[%c0_48, %c0_49] : memref<128x512xf32, #tpu.memory_space<vmem>>, vector<128x512xf32>
    %cst_50 = arith.constant dense<0.000000e+00> : vector<8x512xf32>
    %171 = tpu.matmul %166, %170, %cst_50 {dimension_numbers = #tpu.dot_dimension_numbers<[1], [0], [0], [1], [0, 0, 1, 1], [], []>} : vector<8x128xf32>, vector<128x512xf32>, vector<8x512xf32> -> vector<8x512xf32>
    %172 = arith.addf %169, %171 : vector<8x512xf32>
    %173 = vector.extract_strided_slice %172 {offsets = [0, 0], sizes = [8, 256], strides = [1, 1]} : vector<8x512xf32> to vector<8x256xf32>
    %174 = arith.negf %173 : vector<8x256xf32>
    %175 = math.exp %174 : vector<8x256xf32>
    %cst_51 = arith.constant 1.000000e+00 : f32
    %176 = vector.broadcast %cst_51 : f32 to vector<8x256xf32>
    %177 = arith.addf %176, %175 : vector<8x256xf32>
    %178 = arith.divf %176, %177 : vector<8x256xf32>
    %179 = vector.extract_strided_slice %178 {offsets = [0, 0], sizes = [8, 128], strides = [1, 1]} : vector<8x256xf32> to vector<8x128xf32>
    %180 = vector.extract_strided_slice %178 {offsets = [0, 128], sizes = [8, 128], strides = [1, 1]} : vector<8x256xf32> to vector<8x128xf32>
    %181 = vector.extract_strided_slice %172 {offsets = [0, 256], sizes = [8, 128], strides = [1, 1]} : vector<8x512xf32> to vector<8x128xf32>
    %182 = math.tanh %181 : vector<8x128xf32>
    %183 = vector.extract_strided_slice %172 {offsets = [0, 384], sizes = [8, 128], strides = [1, 1]} : vector<8x512xf32> to vector<8x128xf32>
    %184 = arith.negf %183 : vector<8x128xf32>
    %185 = math.exp %184 : vector<8x128xf32>
    %cst_52 = arith.constant 1.000000e+00 : f32
    %186 = vector.broadcast %cst_52 : f32 to vector<8x128xf32>
    %187 = arith.addf %186, %185 : vector<8x128xf32>
    %188 = arith.divf %186, %187 : vector<8x128xf32>
    %189 = arith.mulf %180, %164 : vector<8x128xf32>
    %190 = arith.mulf %179, %182 : vector<8x128xf32>
    %191 = arith.addf %189, %190 : vector<8x128xf32>
    %192 = math.tanh %191 : vector<8x128xf32>
    %193 = arith.mulf %188, %192 : vector<8x128xf32>
    %c7_i32 = arith.constant 7 : i32
    %194 = arith.index_cast %c7_i32 : i32 to index
    %c0_53 = arith.constant 0 : index
    %c0_54 = arith.constant 0 : index
    %195 = vector.load %arg1[%194, %c0_53, %c0_54] : memref<8x8x512xf32, #tpu.memory_space<vmem>>, vector<1x8x512xf32>
    %196 = vector.shape_cast %195 : vector<1x8x512xf32> to vector<8x512xf32>
    %c0_55 = arith.constant 0 : index
    %c0_56 = arith.constant 0 : index
    %197 = vector.load %arg2[%c0_55, %c0_56] : memref<128x512xf32, #tpu.memory_space<vmem>>, vector<128x512xf32>
    %cst_57 = arith.constant dense<0.000000e+00> : vector<8x512xf32>
    %198 = tpu.matmul %193, %197, %cst_57 {dimension_numbers = #tpu.dot_dimension_numbers<[1], [0], [0], [1], [0, 0, 1, 1], [], []>} : vector<8x128xf32>, vector<128x512xf32>, vector<8x512xf32> -> vector<8x512xf32>
    %199 = arith.addf %196, %198 : vector<8x512xf32>
    %200 = vector.extract_strided_slice %199 {offsets = [0, 0], sizes = [8, 256], strides = [1, 1]} : vector<8x512xf32> to vector<8x256xf32>
    %201 = arith.negf %200 : vector<8x256xf32>
    %202 = math.exp %201 : vector<8x256xf32>
    %cst_58 = arith.constant 1.000000e+00 : f32
    %203 = vector.broadcast %cst_58 : f32 to vector<8x256xf32>
    %204 = arith.addf %203, %202 : vector<8x256xf32>
    %205 = arith.divf %203, %204 : vector<8x256xf32>
    %206 = vector.extract_strided_slice %205 {offsets = [0, 0], sizes = [8, 128], strides = [1, 1]} : vector<8x256xf32> to vector<8x128xf32>
    %207 = vector.extract_strided_slice %205 {offsets = [0, 128], sizes = [8, 128], strides = [1, 1]} : vector<8x256xf32> to vector<8x128xf32>
    %208 = vector.extract_strided_slice %199 {offsets = [0, 256], sizes = [8, 128], strides = [1, 1]} : vector<8x512xf32> to vector<8x128xf32>
    %209 = math.tanh %208 : vector<8x128xf32>
    %210 = vector.extract_strided_slice %199 {offsets = [0, 384], sizes = [8, 128], strides = [1, 1]} : vector<8x512xf32> to vector<8x128xf32>
    %211 = arith.negf %210 : vector<8x128xf32>
    %212 = math.exp %211 : vector<8x128xf32>
    %cst_59 = arith.constant 1.000000e+00 : f32
    %213 = vector.broadcast %cst_59 : f32 to vector<8x128xf32>
    %214 = arith.addf %213, %212 : vector<8x128xf32>
    %215 = arith.divf %213, %214 : vector<8x128xf32>
    %216 = arith.mulf %207, %191 : vector<8x128xf32>
    %217 = arith.mulf %206, %209 : vector<8x128xf32>
    %218 = arith.addf %216, %217 : vector<8x128xf32>
    %219 = math.tanh %218 : vector<8x128xf32>
    %220 = arith.mulf %215, %219 : vector<8x128xf32>
    %c8_i32 = arith.constant 8 : i32
    %c0_60 = arith.constant 0 : index
    %c0_61 = arith.constant 0 : index
    %221 = vector.load %arg6[%c0_60, %c0_61] : memref<8x128xf32, #tpu.memory_space<vmem>>, vector<8x128xf32>
    tpu.vector_store %arg6[%c0_60, %c0_61], %220 {strides = array<i32>} : memref<8x128xf32, #tpu.memory_space<vmem>>, vector<8x128xf32>,
    %c0_62 = arith.constant 0 : index
    %c0_63 = arith.constant 0 : index
    %222 = vector.load %arg7[%c0_62, %c0_63] : memref<8x128xf32, #tpu.memory_space<vmem>>, vector<8x128xf32>
    tpu.vector_store %arg7[%c0_62, %c0_63], %218 {strides = array<i32>} : memref<8x128xf32, #tpu.memory_space<vmem>>, vector<8x128xf32>,
    %c0_i32_64 = arith.constant 0 : i32
    %223 = arith.cmpi eq, %arg0, %c0_i32_64 : i32
    %224 = arith.extui %223 : i1 to i32
    %c0_i32_65 = arith.constant 0 : i32
    %225 = arith.cmpi ne, %224, %c0_i32_65 : i32
    scf.if %225 {
      %c0_66 = arith.constant 0 : index
      %c0_67 = arith.constant 0 : index
      %226 = vector.load %arg3[%c0_66, %c0_67] : memref<128x128xf32, #tpu.memory_space<vmem>>, vector<128x128xf32>
      %cst_68 = arith.constant dense<0.000000e+00> : vector<8x128xf32>
      %227 = tpu.matmul %220, %226, %cst_68 {dimension_numbers = #tpu.dot_dimension_numbers<[1], [0], [0], [1], [0, 0, 1, 1], [], []>} : vector<8x128xf32>, vector<128x128xf32>, vector<8x128xf32> -> vector<8x128xf32>
      %c0_69 = arith.constant 0 : index
      %c0_70 = arith.constant 0 : index
      %228 = vector.load %arg4[%c0_69, %c0_70] : memref<1x128xf32, #tpu.memory_space<vmem>>, vector<1x128xf32>
      %229 = vector.broadcast %228 : vector<1x128xf32> to vector<8x128xf32>
      %230 = arith.addf %227, %229 : vector<8x128xf32>
      %c0_71 = arith.constant 0 : index
      %c0_72 = arith.constant 0 : index
      %231 = vector.load %arg5[%c0_71, %c0_72] : memref<8x128xf32, #tpu.memory_space<vmem>>, vector<8x128xf32>
      tpu.vector_store %arg5[%c0_71, %c0_72], %230 {strides = array<i32>} : memref<8x128xf32, #tpu.memory_space<vmem>>, vector<8x128xf32>,
    } else {
    }
    return
  }
  func.func @transform_0(%arg0: i32) -> (i32, i32, i32) {
    %c0_i32 = arith.constant 0 : i32
    %c0_i32_0 = arith.constant 0 : i32
    %c0_i32_1 = arith.constant 0 : i32
    return %arg0, %c0_i32, %c0_i32_0 : i32, i32, i32
  }
  func.func @transform_1(%arg0: i32) -> (i32, i32) {
    %c0_i32 = arith.constant 0 : i32
    %c0_i32_0 = arith.constant 0 : i32
    %c0_i32_1 = arith.constant 0 : i32
    return %c0_i32, %c0_i32_0 : i32, i32
  }
  func.func @transform_2(%arg0: i32) -> (i32, i32) {
    %c0_i32 = arith.constant 0 : i32
    %c0_i32_0 = arith.constant 0 : i32
    %c0_i32_1 = arith.constant 0 : i32
    return %c0_i32, %c0_i32_0 : i32, i32
  }
  func.func @transform_3(%arg0: i32) -> (i32, i32) {
    %c0_i32 = arith.constant 0 : i32
    %c0_i32_0 = arith.constant 0 : i32
    %c0_i32_1 = arith.constant 0 : i32
    return %c0_i32, %c0_i32_0 : i32, i32
  }
  func.func @transform_4(%arg0: i32) -> (i32, i32) {
    %c0_i32 = arith.constant 0 : i32
    %c0_i32_0 = arith.constant 0 : i32
    %c0_i32_1 = arith.constant 0 : i32
    return %c0_i32, %c0_i32_0 : i32, i32
  }
}

</mosaic_0001>

<llo_original>
// kernel: tpu_custom_call.1
$region0: #{tpu_custom_call.1}
  #allocation0 [shape = 'u32[]', space=smem, size = 0x4, offset = 0x4, fixed_abs, tag = 'smem constant byte address 0x4 - core index']
  #allocation1 [shape = 'u32[144,128]{1,0:T(1,128)}', space=vmem, size = 0x12000, scoped, tag = 'internal scratch']
  #allocation2 [shape = 'f32[8,128]{1,0:T(8,128)}', space=vmem, size = 0x1000, scoped, tag = 'scratch operand']
  #allocation3 [shape = 'f32[8,128]{1,0:T(8,128)}', space=vmem, size = 0x1000, scoped, tag = 'scratch operand']
  %s0 = inlined_call_operand.hbm [shape: f32[8,8,512], index: 0, kind: input, shape index: {}]
  %s1 = inlined_call_operand.hbm [shape: f32[128,512], index: 1, kind: input, shape index: {}]
  %s2 = inlined_call_operand.hbm [shape: f32[128,128], index: 2, kind: input, shape index: {}]
  %s3 = inlined_call_operand.vmem [shape: f32[1,128], index: 3, kind: input, shape index: {}]
  %s4 = inlined_call_operand.hbm [shape: f32[8,128], index: 4, kind: output, shape index: {}]
  %s5 = sld [smem:[#allocation0]]
  $region46: #{tpu_custom_call.1} parent=0
    _
  %s7 = ssub.s32 1, %s5
  %s8 = scalar_select 0, %s7, %s5
  $region1: #{tpu_custom_call.1} parent=0
    #allocation4 [shape = 'u8[131072]{0}', space=vmem, size = 0x20000, scoped, tag = 'input window, operand 0, single buffered']
    #allocation5 [shape = 's32[1]{0}', space=sflag, size = 0x4, scoped, tag = 'scoped memory for tpu_custom_call.1']
    #allocation6 [shape = 's32[1]{0}', space=sflag, size = 0x4, scoped, tag = 'scoped memory for tpu_custom_call.1']
    #allocation7 [shape = 'u8[262144]{0}', space=vmem, size = 0x40000, scoped, tag = 'input window, operand 1, single buffered']
    #allocation8 [shape = 's32[1]{0}', space=sflag, size = 0x4, scoped, tag = 'scoped memory for tpu_custom_call.1']
    #allocation9 [shape = 'u8[65536]{0}', space=vmem, size = 0x10000, scoped, tag = 'input window, operand 2, single buffered']
    #allocation10 [shape = 'u8[4096]{0}', space=vmem, size = 0x1000, scoped, tag = 'output window, operand 0, single buffered']
    %9 = vsyncpa [#allocation5], 0
    %10 = vsyncpa [#allocation8], 0
    %11 = vsyncpa [#allocation6], 0
    // Predicated region
    $region2: #{tpu_custom_call.1} parent=1 // pred_check
      _
    $region3: #{tpu_custom_call.1} parent=1 // pred_check_branch
      %13 = sbr.rel (0) target = $region5
    $region4: #{tpu_custom_call.1} parent=1 // pred_region
      %s15 = ssub.s32 4096, 4096
      %16 = vsyncadd [#allocation5], %s15
      %s17 = sshll.u32 [#allocation4], 4
      %s18 = int_to_ptr.vmem [resolvable:$true] %s17
      %23 = dma.hbm_to_vmem [thread:$0]  %s0, 4096, %s18, [#allocation5], 512, 512, 32
    $region5: #{tpu_custom_call.1} parent=1 // pred_fallthru
      _
    // Predicated region
    $region6: #{tpu_custom_call.1} parent=1 // pred_check
      _
    $region7: #{tpu_custom_call.1} parent=1 // pred_check_branch
      %25 = sbr.rel (0) target = $region9
    $region8: #{tpu_custom_call.1} parent=1 // pred_region
      %s27 = ssub.s32 8192, 8192
      %28 = vsyncadd [#allocation8], %s27
      %s29 = sshll.u32 [#allocation7], 4
      %s30 = int_to_ptr.vmem [resolvable:$true] %s29
      %35 = dma.hbm_to_vmem [thread:$0]  %s1, 8192, %s30, [#allocation8], 512, 512, 32
    $region9: #{tpu_custom_call.1} parent=1 // pred_fallthru
      _
    // Predicated region
    $region10: #{tpu_custom_call.1} parent=1 // pred_check
      _
    $region11: #{tpu_custom_call.1} parent=1 // pred_check_branch
      %37 = sbr.rel (0) target = $region13
    $region12: #{tpu_custom_call.1} parent=1 // pred_region
      %s39 = ssub.s32 2048, 2048
      %40 = vsyncadd [#allocation8], %s39
      %s41 = sshll.u32 [#allocation9], 4
      %s42 = int_to_ptr.vmem [resolvable:$true] %s41
      %47 = dma.hbm_to_vmem [thread:$0]  %s2, 2048, %s42, [#allocation8], 128, 128, 8
    $region13: #{tpu_custom_call.1} parent=1 // pred_fallthru
      _
    // Predicated region
    $region14: #{tpu_custom_call.1} parent=1 // pred_check
      _
    $region15: #{tpu_custom_call.1} parent=1 // pred_check_branch
      %49 = sbr.rel (0) target = $region17
    $region16: #{tpu_custom_call.1} parent=1 // pred_region
      _
    $region17: #{tpu_custom_call.1} parent=1 // pred_fallthru
      _
    // Predicated region
    $region18: #{tpu_custom_call.1} parent=1 // pred_check
      _
    $region19: #{tpu_custom_call.1} parent=1 // pred_check_branch
      %51 = sbr.rel (0) target = $region21
    $region20: #{tpu_custom_call.1} parent=1 // pred_region
      %52 = dma.done [#allocation5], 4096
    $region21: #{tpu_custom_call.1} parent=1 // pred_fallthru
      _
    // Predicated region
    $region22: #{tpu_custom_call.1} parent=1 // pred_check
      _
    $region23: #{tpu_custom_call.1} parent=1 // pred_check_branch
      %54 = sbr.rel (0) target = $region25
    $region24: #{tpu_custom_call.1} parent=1 // pred_region
      %55 = dma.done [#allocation8], 8192
    $region25: #{tpu_custom_call.1} parent=1 // pred_fallthru
      _
    // Predicated region
    $region26: #{tpu_custom_call.1} parent=1 // pred_check
      _
    $region27: #{tpu_custom_call.1} parent=1 // pred_check_branch
      %57 = sbr.rel (0) target = $region29
    $region28: #{tpu_custom_call.1} parent=1 // pred_region
      %58 = dma.done [#allocation8], 2048
    $region29: #{tpu_custom_call.1} parent=1 // pred_fallthru
      _
    %p59 = scmp.eq.s32.totalorder 0, 0
    // Predicated region
    $region30: #{tpu_custom_call.1} parent=1 // pred_check
      %p60 = pneg %p59
    $region31: #{tpu_custom_call.1} parent=1 // pred_check_branch
      %62 = sbr.rel (%p60) target = $region33
    $region32: #{tpu_custom_call.1} parent=1 // pred_region
      %63 = vst [vmem:[#allocation2] sm:$0xff] 0.0
      %64 = vst [vmem:[#allocation3] sm:$0xff] 0.0
    $region33: #{tpu_custom_call.1} parent=1 // pred_fallthru
      _
    %v65 = vld [vmem:[#allocation2] sm:$0xff]
    %v66 = vld [vmem:[#allocation3] sm:$0xff]
    %v67 = vld [vmem:[#allocation4] sm:$0xff]
    %v68 = vld [vmem:[#allocation4 + $0x8] sm:$0xff]
    %v69 = vld [vmem:[#allocation4 + $0x10] sm:$0xff]
    %v70 = vld [vmem:[#allocation4 + $0x18] sm:$0xff]
    %v71 = vld [vmem:[#allocation7] sm:$0xff]
    %v72 = vld [vmem:[#allocation7 + $0x8] sm:$0xff]
    %v73 = vld [vmem:[#allocation7 + $0x10] sm:$0xff]
    %v74 = vld [vmem:[#allocation7 + $0x18] sm:$0xff]
    %v75 = vld [vmem:[#allocation7 + $0x20] sm:$0xff]
    %v76 = vld [vmem:[#allocation7 + $0x28] sm:$0xff]
    %v77 = vld [vmem:[#allocation7 + $0x30] sm:$0xff]
    %v78 = vld [vmem:[#allocation7 + $0x38] sm:$0xff]
    %v79 = vld [vmem:[#allocation7 + $0x40] sm:$0xff]
    %v80 = vld [vmem:[#allocation7 + $0x48] sm:$0xff]
    %v81 = vld [vmem:[#allocation7 + $0x50] sm:$0xff]
    %v82 = vld [vmem:[#allocation7 + $0x58] sm:$0xff]
    %v83 = vld [vmem:[#allocation7 + $0x60] sm:$0xff]
    %v84 = vld [vmem:[#allocation7 + $0x68] sm:$0xff]
    %v85 = vld [vmem:[#allocation7 + $0x70] sm:$0xff]
    %v86 = vld [vmem:[#allocation7 + $0x78] sm:$0xff]
    %v87 = vld [vmem:[#allocation7 + $0x80] sm:$0xff]
    %v88 = vld [vmem:[#allocation7 + $0x88] sm:$0xff]
    %v89 = vld [vmem:[#allocation7 + $0x90] sm:$0xff]
    %v90 = vld [vmem:[#allocation7 + $0x98] sm:$0xff]
    %v91 = vld [vmem:[#allocation7 + $0xa0] sm:$0xff]
    %v92 = vld [vmem:[#allocation7 + $0xa8] sm:$0xff]
    %v93 = vld [vmem:[#allocation7 + $0xb0] sm:$0xff]
    %v94 = vld [vmem:[#allocation7 + $0xb8] sm:$0xff]
    %v95 = vld [vmem:[#allocation7 + $0xc0] sm:$0xff]
    %v96 = vld [vmem:[#allocation7 + $0xc8] sm:$0xff]
    %v97 = vld [vmem:[#allocation7 + $0xd0] sm:$0xff]
    %v98 = vld [vmem:[#allocation7 + $0xd8] sm:$0xff]
    %v99 = vld [vmem:[#allocation7 + $0xe0] sm:$0xff]
    %v100 = vld [vmem:[#allocation7 + $0xe8] sm:$0xff]
    %v101 = vld [vmem:[#allocation7 + $0xf0] sm:$0xff]
    %v102 = vld [vmem:[#allocation7 + $0xf8] sm:$0xff]
    %v103 = vld [vmem:[#allocation7 + $0x100] sm:$0xff]
    %v104 = vld [vmem:[#allocation7 + $0x108] sm:$0xff]
    %v105 = vld [vmem:[#allocation7 + $0x110] sm:$0xff]
    %v106 = vld [vmem:[#allocation7 + $0x118] sm:$0xff]
    %v107 = vld [vmem:[#allocation7 + $0x120] sm:$0xff]
    %v108 = vld [vmem:[#allocation7 + $0x128] sm:$0xff]
    %v109 = vld [vmem:[#allocation7 + $0x130] sm:$0xff]
    %v110 = vld [vmem:[#allocation7 + $0x138] sm:$0xff]
    %v111 = vld [vmem:[#allocation7 + $0x140] sm:$0xff]
    %v112 = vld [vmem:[#allocation7 + $0x148] sm:$0xff]
    %v113 = vld [vmem:[#allocation7 + $0x150] sm:$0xff]
    %v114 = vld [vmem:[#allocation7 + $0x158] sm:$0xff]
    %v115 = vld [vmem:[#allocation7 + $0x160] sm:$0xff]
    %v116 = vld [vmem:[#allocation7 + $0x168] sm:$0xff]
    %v117 = vld [vmem:[#allocation7 + $0x170] sm:$0xff]
    %v118 = vld [vmem:[#allocation7 + $0x178] sm:$0xff]
    %v119 = vld [vmem:[#allocation7 + $0x180] sm:$0xff]
    %v120 = vld [vmem:[#allocation7 + $0x188] sm:$0xff]
    %v121 = vld [vmem:[#allocation7 + $0x190] sm:$0xff]
    %v122 = vld [vmem:[#allocation7 + $0x198] sm:$0xff]
    %v123 = vld [vmem:[#allocation7 + $0x1a0] sm:$0xff]
    %v124 = vld [vmem:[#allocation7 + $0x1a8] sm:$0xff]
    %v125 = vld [vmem:[#allocation7 + $0x1b0] sm:$0xff]
    %v126 = vld [vmem:[#allocation7 + $0x1b8] sm:$0xff]
    %v127 = vld [vmem:[#allocation7 + $0x1c0] sm:$0xff]
    %v128 = vld [vmem:[#allocation7 + $0x1c8] sm:$0xff]
    %v129 = vld [vmem:[#allocation7 + $0x1d0] sm:$0xff]
    %v130 = vld [vmem:[#allocation7 + $0x1d8] sm:$0xff]
    %v131 = vld [vmem:[#allocation7 + $0x1e0] sm:$0xff]
    %v132 = vld [vmem:[#allocation7 + $0x1e8] sm:$0xff]
    %v133 = vld [vmem:[#allocation7 + $0x1f0] sm:$0xff]
    %v134 = vld [vmem:[#allocation7 + $0x1f8] sm:$0xff]
    %135 = vmatprep.subr.mxu0 %v132
    %136 = vmatpush1.msra.mxu0 %v131
    %137 = vmatprep.subr.mxu0 %v128
    %138 = vmatpush1.msra.mxu0 %v127
    %139 = vmatprep.subr.mxu0 %v124
    %140 = vmatpush1.msra.mxu0 %v123
    %141 = vmatprep.subr.mxu0 %v120
    %142 = vmatpush1.msra.mxu0 %v119
    %143 = vmatprep.subr.mxu0 %v116
    %144 = vmatpush1.msra.mxu0 %v115
    %145 = vmatprep.subr.mxu0 %v112
    %146 = vmatpush1.msra.mxu0 %v111
    %147 = vmatprep.subr.mxu0 %v108
    %148 = vmatpush1.msra.mxu0 %v107
    %149 = vmatprep.subr.mxu0 %v104
    %150 = vmatpush1.msra.mxu0 %v103
    %151 = vmatprep.subr.mxu0 %v100
    %152 = vmatpush1.msra.mxu0 %v99
    %153 = vmatprep.subr.mxu0 %v96
    %154 = vmatpush1.msra.mxu0 %v95
    %155 = vmatprep.subr.mxu0 %v92
    %156 = vmatpush1.msra.mxu0 %v91
    %157 = vmatprep.subr.mxu0 %v88
    %158 = vmatpush1.msra.mxu0 %v87
    %159 = vmatprep.subr.mxu0 %v84
    %160 = vmatpush1.msra.mxu0 %v83
    %161 = vmatprep.subr.mxu0 %v80
    %162 = vmatpush1.msra.mxu0 %v79
    %163 = vmatprep.subr.mxu0 %v76
    %164 = vmatpush1.msra.mxu0 %v75
    %165 = vmatprep.subr.mxu0 %v72
    %166 = vmatpush1.msra.mxu0 %v71
    %167 = vmatprep.subr.mxu0 0.0
    %168 = vmatpush2.msra.mxu0 0.0
    %169 = vmatprep.subr.mxu0 0.0
    %170 = vmatpush2.msra.mxu0 0.0
    %171 = vmatprep.subr.mxu0 0.0
    %172 = vmatpush2.msra.mxu0 0.0
    %173 = vmatprep.subr.mxu0 0.0
    %174 = vmatpush2.msra.mxu0 0.0
    %175 = vmatprep.subr.mxu0 0.0
    %176 = vmatpush2.msra.mxu0 0.0
    %177 = vmatprep.subr.mxu0 0.0
    %178 = vmatpush2.msra.mxu0 0.0
    %179 = vmatprep.subr.mxu0 0.0
    %180 = vmatpush2.msra.mxu0 0.0
    %181 = vmatprep.subr.mxu0 0.0
    %182 = vmatpush2.msra.mxu0 0.0
    %183 = vmatprep.subr.mxu0 0.0
    %184 = vmatpush2.msra.mxu0 0.0
    %185 = vmatprep.subr.mxu0 0.0
    %186 = vmatpush2.msra.mxu0 0.0
    %187 = vmatprep.subr.mxu0 0.0
    %188 = vmatpush2.msra.mxu0 0.0
    %189 = vmatprep.subr.mxu0 0.0
    %190 = vmatpush2.msra.mxu0 0.0
    %191 = vmatprep.subr.mxu0 0.0
    %192 = vmatpush2.msra.mxu0 0.0
    %193 = vmatprep.subr.mxu0 0.0
    %194 = vmatpush2.msra.mxu0 0.0
    %195 = vmatprep.subr.mxu0 0.0
    %196 = vmatpush2.msra.mxu0 0.0
    %197 = vmatprep.subr.mxu0 0.0
    %198 = vmatpush2.msra.mxu0 0.0
    %199 = vmatprep.mubr.f32.mxu0 0.0
    %200 = vmatmul.mubr.f32.gmra.mxu0 %v65
    %v201 = vpop.f32.mrf.mxu0
    %v202 = vadd.f32 0.0, %v201
    %v203 = vpop.f32.mrf.mxu0
    %v204 = vadd.f32 0.0, %v203
    %205 = vdwg.mxu0
    %206 = vmatprep.subr.mxu0 %v134
    %207 = vmatpush1.msra.mxu0 %v133
    %208 = vmatprep.subr.mxu0 %v130
    %209 = vmatpush1.msra.mxu0 %v129
    %210 = vmatprep.subr.mxu0 %v126
    %211 = vmatpush1.msra.mxu0 %v125
    %212 = vmatprep.subr.mxu0 %v122
    %213 = vmatpush1.msra.mxu0 %v121
    %214 = vmatprep.subr.mxu0 %v118
    %215 = vmatpush1.msra.mxu0 %v117
    %216 = vmatprep.subr.mxu0 %v114
    %217 = vmatpush1.msra.mxu0 %v113
    %218 = vmatprep.subr.mxu0 %v110
    %219 = vmatpush1.msra.mxu0 %v109
    %220 = vmatprep.subr.mxu0 %v106
    %221 = vmatpush1.msra.mxu0 %v105
    %222 = vmatprep.subr.mxu0 %v102
    %223 = vmatpush1.msra.mxu0 %v101
    %224 = vmatprep.subr.mxu0 %v98
    %225 = vmatpush1.msra.mxu0 %v97
    %226 = vmatprep.subr.mxu0 %v94
    %227 = vmatpush1.msra.mxu0 %v93
    %228 = vmatprep.subr.mxu0 %v90
    %229 = vmatpush1.msra.mxu0 %v89
    %230 = vmatprep.subr.mxu0 %v86
    %231 = vmatpush1.msra.mxu0 %v85
    %232 = vmatprep.subr.mxu0 %v82
    %233 = vmatpush1.msra.mxu0 %v81
    %234 = vmatprep.subr.mxu0 %v78
    %235 = vmatpush1.msra.mxu0 %v77
    %236 = vmatprep.subr.mxu0 %v74
    %237 = vmatpush1.msra.mxu0 %v73
    %238 = vmatprep.subr.mxu0 0.0
    %239 = vmatpush2.msra.mxu0 0.0
    %240 = vmatprep.subr.mxu0 0.0
    %241 = vmatpush2.msra.mxu0 0.0
    %242 = vmatprep.subr.mxu0 0.0
    %243 = vmatpush2.msra.mxu0 0.0
    %244 = vmatprep.subr.mxu0 0.0
    %245 = vmatpush2.msra.mxu0 0.0
    %246 = vmatprep.subr.mxu0 0.0
    %247 = vmatpush2.msra.mxu0 0.0
    %248 = vmatprep.subr.mxu0 0.0
    %249 = vmatpush2.msra.mxu0 0.0
    %250 = vmatprep.subr.mxu0 0.0
    %251 = vmatpush2.msra.mxu0 0.0
    %252 = vmatprep.subr.mxu0 0.0
    %253 = vmatpush2.msra.mxu0 0.0
    %254 = vmatprep.subr.mxu0 0.0
    %255 = vmatpush2.msra.mxu0 0.0
    %256 = vmatprep.subr.mxu0 0.0
    %257 = vmatpush2.msra.mxu0 0.0
    %258 = vmatprep.subr.mxu0 0.0
    %259 = vmatpush2.msra.mxu0 0.0
    %260 = vmatprep.subr.mxu0 0.0
    %261 = vmatpush2.msra.mxu0 0.0
    %262 = vmatprep.subr.mxu0 0.0
    %263 = vmatpush2.msra.mxu0 0.0
    %264 = vmatprep.subr.mxu0 0.0
    %265 = vmatpush2.msra.mxu0 0.0
    %266 = vmatprep.subr.mxu0 0.0
    %267 = vmatpush2.msra.mxu0 0.0
    %268 = vmatprep.subr.mxu0 0.0
    %269 = vmatpush2.msra.mxu0 0.0
    %270 = vmatprep.mubr.f32.mxu0 0.0
    %271 = vmatmul.mubr.f32.gmra.mxu0 %v65
    %v272 = vpop.f32.mrf.mxu0
    %v273 = vadd.f32 0.0, %v272
    %v274 = vpop.f32.mrf.mxu0
    %v275 = vadd.f32 0.0, %v274
    %276 = vdwg.mxu0
    %v277 = vadd.f32 %v67, %v202
    %v278 = vadd.f32 %v68, %v204
    %v279 = vadd.f32 %v69, %v273
    %v280 = vadd.f32 %v70, %v275
    %v281 = vxor.u32 %v277, 2147483648
    %v282 = vxor.u32 %v278, 2147483648
    %v283 = vmul.f32 %v281, 1.442695
    %v284 = vpow.pop %v283
    %v285 = vmul.f32 %v282, 1.442695
    %v286 = vpow.pop %v285
    %v287 = vadd.f32 %v284, 1.0
    %v288 = vadd.f32 %v286, 1.0
    %v289 = vrcp.pop %v287
    %v290 = vmul.f32 1.0, %v289
    %v291 = vrcp.pop %v288
    %v292 = vmul.f32 1.0, %v291
    %v293 = vtanh.pop %v279
    %v294 = vxor.u32 %v280, 2147483648
    %v295 = vmul.f32 %v294, 1.442695
    %v296 = vpow.pop %v295
    %v297 = vadd.f32 %v296, 1.0
    %v298 = vrcp.pop %v297
    %v299 = vmul.f32 1.0, %v298
    %v300 = vmul.f32 %v292, %v66
    %v301 = vmul.f32 %v290, %v293
    %v302 = vadd.f32 %v300, %v301
    %v303 = vtanh.pop %v302
    %v304 = vmul.f32 %v299, %v303
    %s305 = scalar_lea.vmem [#allocation4], 32
    %v306 = vld [vmem:[%s305] sm:$0xff]
    %v307 = vld [vmem:[%s305 + $0x8] sm:$0xff]
    %v308 = vld [vmem:[%s305 + $0x10] sm:$0xff]
    %v309 = vld [vmem:[%s305 + $0x18] sm:$0xff]
    %310 = vmatprep.subr.mxu0 %v132
    %311 = vmatpush1.msra.mxu0 %v131
    %312 = vmatprep.subr.mxu0 %v128
    %313 = vmatpush1.msra.mxu0 %v127
    %314 = vmatprep.subr.mxu0 %v124
    %315 = vmatpush1.msra.mxu0 %v123
    %316 = vmatprep.subr.mxu0 %v120
    %317 = vmatpush1.msra.mxu0 %v119
    %318 = vmatprep.subr.mxu0 %v116
    %319 = vmatpush1.msra.mxu0 %v115
    %320 = vmatprep.subr.mxu0 %v112
    %321 = vmatpush1.msra.mxu0 %v111
    %322 = vmatprep.subr.mxu0 %v108
    %323 = vmatpush1.msra.mxu0 %v107
    %324 = vmatprep.subr.mxu0 %v104
    %325 = vmatpush1.msra.mxu0 %v103
    %326 = vmatprep.subr.mxu0 %v100
    %327 = vmatpush1.msra.mxu0 %v99
    %328 = vmatprep.subr.mxu0 %v96
    %329 = vmatpush1.msra.mxu0 %v95
    %330 = vmatprep.subr.mxu0 %v92
    %331 = vmatpush1.msra.mxu0 %v91
    %332 = vmatprep.subr.mxu0 %v88
    %333 = vmatpush1.msra.mxu0 %v87
    %334 = vmatprep.subr.mxu0 %v84
    %335 = vmatpush1.msra.mxu0 %v83
    %336 = vmatprep.subr.mxu0 %v80
    %337 = vmatpush1.msra.mxu0 %v79
    %338 = vmatprep.subr.mxu0 %v76
    %339 = vmatpush1.msra.mxu0 %v75
    %340 = vmatprep.subr.mxu0 %v72
    %341 = vmatpush1.msra.mxu0 %v71
    %342 = vmatprep.subr.mxu0 0.0
    %343 = vmatpush2.msra.mxu0 0.0
    %344 = vmatprep.subr.mxu0 0.0
    %345 = vmatpush2.msra.mxu0 0.0
    %346 = vmatprep.subr.mxu0 0.0
    %347 = vmatpush2.msra.mxu0 0.0
    %348 = vmatprep.subr.mxu0 0.0
    %349 = vmatpush2.msra.mxu0 0.0
    %350 = vmatprep.subr.mxu0 0.0
    %351 = vmatpush2.msra.mxu0 0.0
    %352 = vmatprep.subr.mxu0 0.0
    %353 = vmatpush2.msra.mxu0 0.0
    %354 = vmatprep.subr.mxu0 0.0
    %355 = vmatpush2.msra.mxu0 0.0
    %356 = vmatprep.subr.mxu0 0.0
    %357 = vmatpush2.msra.mxu0 0.0
    %358 = vmatprep.subr.mxu0 0.0
    %359 = vmatpush2.msra.mxu0 0.0
    %360 = vmatprep.subr.mxu0 0.0
    %361 = vmatpush2.msra.mxu0 0.0
    %362 = vmatprep.subr.mxu0 0.0
    %363 = vmatpush2.msra.mxu0 0.0
    %364 = vmatprep.subr.mxu0 0.0
    %365 = vmatpush2.msra.mxu0 0.0
    %366 = vmatprep.subr.mxu0 0.0
    %367 = vmatpush2.msra.mxu0 0.0
    %368 = vmatprep.subr.mxu0 0.0
    %369 = vmatpush2.msra.mxu0 0.0
    %370 = vmatprep.subr.mxu0 0.0
    %371 = vmatpush2.msra.mxu0 0.0
    %372 = vmatprep.subr.mxu0 0.0
    %373 = vmatpush2.msra.mxu0 0.0
    %374 = vmatprep.mubr.f32.mxu0 0.0
    %375 = vmatmul.mubr.f32.gmra.mxu0 %v304
    %v376 = vpop.f32.mrf.mxu0
    %v377 = vadd.f32 0.0, %v376
    %v378 = vpop.f32.mrf.mxu0
    %v379 = vadd.f32 0.0, %v378
    %380 = vdwg.mxu0
    %381 = vmatprep.subr.mxu0 %v134
    %382 = vmatpush1.msra.mxu0 %v133
    %383 = vmatprep.subr.mxu0 %v130
    %384 = vmatpush1.msra.mxu0 %v129
    %385 = vmatprep.subr.mxu0 %v126
    %386 = vmatpush1.msra.mxu0 %v125
    %387 = vmatprep.subr.mxu0 %v122
    %388 = vmatpush1.msra.mxu0 %v121
    %389 = vmatprep.subr.mxu0 %v118
    %390 = vmatpush1.msra.mxu0 %v117
    %391 = vmatprep.subr.mxu0 %v114
    %392 = vmatpush1.msra.mxu0 %v113
    %393 = vmatprep.subr.mxu0 %v110
    %394 = vmatpush1.msra.mxu0 %v109
    %395 = vmatprep.subr.mxu0 %v106
    %396 = vmatpush1.msra.mxu0 %v105
    %397 = vmatprep.subr.mxu0 %v102
    %398 = vmatpush1.msra.mxu0 %v101
    %399 = vmatprep.subr.mxu0 %v98
    %400 = vmatpush1.msra.mxu0 %v97
    %401 = vmatprep.subr.mxu0 %v94
    %402 = vmatpush1.msra.mxu0 %v93
    %403 = vmatprep.subr.mxu0 %v90
    %404 = vmatpush1.msra.mxu0 %v89
    %405 = vmatprep.subr.mxu0 %v86
    %406 = vmatpush1.msra.mxu0 %v85
    %407 = vmatprep.subr.mxu0 %v82
    %408 = vmatpush1.msra.mxu0 %v81
    %409 = vmatprep.subr.mxu0 %v78
    %410 = vmatpush1.msra.mxu0 %v77
    %411 = vmatprep.subr.mxu0 %v74
    %412 = vmatpush1.msra.mxu0 %v73
    %413 = vmatprep.subr.mxu0 0.0
    %414 = vmatpush2.msra.mxu0 0.0
    %415 = vmatprep.subr.mxu0 0.0
    %416 = vmatpush2.msra.mxu0 0.0
    %417 = vmatprep.subr.mxu0 0.0
    %418 = vmatpush2.msra.mxu0 0.0
    %419 = vmatprep.subr.mxu0 0.0
    %420 = vmatpush2.msra.mxu0 0.0
    %421 = vmatprep.subr.mxu0 0.0
    %422 = vmatpush2.msra.mxu0 0.0
    %423 = vmatprep.subr.mxu0 0.0
    %424 = vmatpush2.msra.mxu0 0.0
    %425 = vmatprep.subr.mxu0 0.0
    %426 = vmatpush2.msra.mxu0 0.0
    %427 = vmatprep.subr.mxu0 0.0
    %428 = vmatpush2.msra.mxu0 0.0
    %429 = vmatprep.subr.mxu0 0.0
    %430 = vmatpush2.msra.mxu0 0.0
    %431 = vmatprep.subr.mxu0 0.0
    %432 = vmatpush2.msra.mxu0 0.0
    %433 = vmatprep.subr.mxu0 0.0
    %434 = vmatpush2.msra.mxu0 0.0
    %435 = vmatprep.subr.mxu0 0.0
    %436 = vmatpush2.msra.mxu0 0.0
    %437 = vmatprep.subr.mxu0 0.0
    %438 = vmatpush2.msra.mxu0 0.0
    %439 = vmatprep.subr.mxu0 0.0
    %440 = vmatpush2.msra.mxu0 0.0
    %441 = vmatprep.subr.mxu0 0.0
    %442 = vmatpush2.msra.mxu0 0.0
    %443 = vmatprep.subr.mxu0 0.0
    %444 = vmatpush2.msra.mxu0 0.0
    %445 = vmatprep.mubr.f32.mxu0 0.0
    %446 = vmatmul.mubr.f32.gmra.mxu0 %v304
    %v447 = vpop.f32.mrf.mxu0
    %v448 = vadd.f32 0.0, %v447
    %v449 = vpop.f32.mrf.mxu0
    %v450 = vadd.f32 0.0, %v449
    %451 = vdwg.mxu0
    %v452 = vadd.f32 %v306, %v377
    %v453 = vadd.f32 %v307, %v379
    %v454 = vadd.f32 %v308, %v448
    %v455 = vadd.f32 %v309, %v450
    %v456 = vxor.u32 %v452, 2147483648
    %v457 = vxor.u32 %v453, 2147483648
    %v458 = vmul.f32 %v456, 1.442695
    %v459 = vpow.pop %v458
    %v460 = vmul.f32 %v457, 1.442695
    %v461 = vpow.pop %v460
    %v462 = vadd.f32 %v459, 1.0
    %v463 = vadd.f32 %v461, 1.0
    %v464 = vrcp.pop %v462
    %v465 = vmul.f32 1.0, %v464
    %v466 = vrcp.pop %v463
    %v467 = vmul.f32 1.0, %v466
    %v468 = vtanh.pop %v454
    %v469 = vxor.u32 %v455, 2147483648
    %v470 = vmul.f32 %v469, 1.442695
    %v471 = vpow.pop %v470
    %v472 = vadd.f32 %v471, 1.0
    %v473 = vrcp.pop %v472
    %v474 = vmul.f32 1.0, %v473
    %v475 = vmul.f32 %v467, %v302
    %v476 = vmul.f32 %v465, %v468
    %v477 = vadd.f32 %v475, %v476
    %v478 = vtanh.pop %v477
    %v479 = vmul.f32 %v474, %v478
    %s480 = scalar_lea.vmem [#allocation4], 64
    %v481 = vld [vmem:[%s480] sm:$0xff]
    %v482 = vld [vmem:[%s480 + $0x8] sm:$0xff]
    %v483 = vld [vmem:[%s480 + $0x10] sm:$0xff]
    %v484 = vld [vmem:[%s480 + $0x18] sm:$0xff]
    %485 = vmatprep.subr.mxu0 %v132
    %486 = vmatpush1.msra.mxu0 %v131
    %487 = vmatprep.subr.mxu0 %v128
    %488 = vmatpush1.msra.mxu0 %v127
    %489 = vmatprep.subr.mxu0 %v124
    %490 = vmatpush1.msra.mxu0 %v123
    %491 = vmatprep.subr.mxu0 %v120
    %492 = vmatpush1.msra.mxu0 %v119
    %493 = vmatprep.subr.mxu0 %v116
    %494 = vmatpush1.msra.mxu0 %v115
    %495 = vmatprep.subr.mxu0 %v112
    %496 = vmatpush1.msra.mxu0 %v111
    %497 = vmatprep.subr.mxu0 %v108
    %498 = vmatpush1.msra.mxu0 %v107
    %499 = vmatprep.subr.mxu0 %v104
    %500 = vmatpush1.msra.mxu0 %v103
    %501 = vmatprep.subr.mxu0 %v100
    %502 = vmatpush1.msra.mxu0 %v99
    %503 = vmatprep.subr.mxu0 %v96
    %504 = vmatpush1.msra.mxu0 %v95
    %505 = vmatprep.subr.mxu0 %v92
    %506 = vmatpush1.msra.mxu0 %v91
    %507 = vmatprep.subr.mxu0 %v88
    %508 = vmatpush1.msra.mxu0 %v87
    %509 = vmatprep.subr.mxu0 %v84
    %510 = vmatpush1.msra.mxu0 %v83
    %511 = vmatprep.subr.mxu0 %v80
    %512 = vmatpush1.msra.mxu0 %v79
    %513 = vmatprep.subr.mxu0 %v76
    %514 = vmatpush1.msra.mxu0 %v75
    %515 = vmatprep.subr.mxu0 %v72
    %516 = vmatpush1.msra.mxu0 %v71
    %517 = vmatprep.subr.mxu0 0.0
    %518 = vmatpush2.msra.mxu0 0.0
    %519 = vmatprep.subr.mxu0 0.0
    %520 = vmatpush2.msra.mxu0 0.0
    %521 = vmatprep.subr.mxu0 0.0
    %522 = vmatpush2.msra.mxu0 0.0
    %523 = vmatprep.subr.mxu0 0.0
    %524 = vmatpush2.msra.mxu0 0.0
    %525 = vmatprep.subr.mxu0 0.0
    %526 = vmatpush2.msra.mxu0 0.0
    %527 = vmatprep.subr.mxu0 0.0
    %528 = vmatpush2.msra.mxu0 0.0
    %529 = vmatprep.subr.mxu0 0.0
    %530 = vmatpush2.msra.mxu0 0.0
    %531 = vmatprep.subr.mxu0 0.0
    %532 = vmatpush2.msra.mxu0 0.0
    %533 = vmatprep.subr.mxu0 0.0
    %534 = vmatpush2.msra.mxu0 0.0
    %535 = vmatprep.subr.mxu0 0.0
    %536 = vmatpush2.msra.mxu0 0.0
    %537 = vmatprep.subr.mxu0 0.0
    %538 = vmatpush2.msra.mxu0 0.0
    %539 = vmatprep.subr.mxu0 0.0
    %540 = vmatpush2.msra.mxu0 0.0
    %541 = vmatprep.subr.mxu0 0.0
    %542 = vmatpush2.msra.mxu0 0.0
    %543 = vmatprep.subr.mxu0 0.0
    %544 = vmatpush2.msra.mxu0 0.0
    %545 = vmatprep.subr.mxu0 0.0
    %546 = vmatpush2.msra.mxu0 0.0
    %547 = vmatprep.subr.mxu0 0.0
    %548 = vmatpush2.msra.mxu0 0.0
    %549 = vmatprep.mubr.f32.mxu0 0.0
    %550 = vmatmul.mubr.f32.gmra.mxu0 %v479
    %v551 = vpop.f32.mrf.mxu0
    %v552 = vadd.f32 0.0, %v551
    %v553 = vpop.f32.mrf.mxu0
    %v554 = vadd.f32 0.0, %v553
    %555 = vdwg.mxu0
    %556 = vmatprep.subr.mxu0 %v134
    %557 = vmatpush1.msra.mxu0 %v133
    %558 = vmatprep.subr.mxu0 %v130
    %559 = vmatpush1.msra.mxu0 %v129
    %560 = vmatprep.subr.mxu0 %v126
    %561 = vmatpush1.msra.mxu0 %v125
    %562 = vmatprep.subr.mxu0 %v122
    %563 = vmatpush1.msra.mxu0 %v121
    %564 = vmatprep.subr.mxu0 %v118
    %565 = vmatpush1.msra.mxu0 %v117
    %566 = vmatprep.subr.mxu0 %v114
    %567 = vmatpush1.msra.mxu0 %v113
    %568 = vmatprep.subr.mxu0 %v110
    %569 = vmatpush1.msra.mxu0 %v109
    %570 = vmatprep.subr.mxu0 %v106
    %571 = vmatpush1.msra.mxu0 %v105
    %572 = vmatprep.subr.mxu0 %v102
    %573 = vmatpush1.msra.mxu0 %v101
    %574 = vmatprep.subr.mxu0 %v98
    %575 = vmatpush1.msra.mxu0 %v97
    %576 = vmatprep.subr.mxu0 %v94
    %577 = vmatpush1.msra.mxu0 %v93
    %578 = vmatprep.subr.mxu0 %v90
    %579 = vmatpush1.msra.mxu0 %v89
    %580 = vmatprep.subr.mxu0 %v86
    %581 = vmatpush1.msra.mxu0 %v85
    %582 = vmatprep.subr.mxu0 %v82
    %583 = vmatpush1.msra.mxu0 %v81
    %584 = vmatprep.subr.mxu0 %v78
    %585 = vmatpush1.msra.mxu0 %v77
    %586 = vmatprep.subr.mxu0 %v74
    %587 = vmatpush1.msra.mxu0 %v73
    %588 = vmatprep.subr.mxu0 0.0
    %589 = vmatpush2.msra.mxu0 0.0
    %590 = vmatprep.subr.mxu0 0.0
    %591 = vmatpush2.msra.mxu0 0.0
    %592 = vmatprep.subr.mxu0 0.0
    %593 = vmatpush2.msra.mxu0 0.0
    %594 = vmatprep.subr.mxu0 0.0
    %595 = vmatpush2.msra.mxu0 0.0
    %596 = vmatprep.subr.mxu0 0.0
    %597 = vmatpush2.msra.mxu0 0.0
    %598 = vmatprep.subr.mxu0 0.0
    %599 = vmatpush2.msra.mxu0 0.0
    %600 = vmatprep.subr.mxu0 0.0
    %601 = vmatpush2.msra.mxu0 0.0
    %602 = vmatprep.subr.mxu0 0.0
    %603 = vmatpush2.msra.mxu0 0.0
    %604 = vmatprep.subr.mxu0 0.0
    %605 = vmatpush2.msra.mxu0 0.0
    %606 = vmatprep.subr.mxu0 0.0
    %607 = vmatpush2.msra.mxu0 0.0
    %608 = vmatprep.subr.mxu0 0.0
    %609 = vmatpush2.msra.mxu0 0.0
    %610 = vmatprep.subr.mxu0 0.0
    %611 = vmatpush2.msra.mxu0 0.0
    %612 = vmatprep.subr.mxu0 0.0
    %613 = vmatpush2.msra.mxu0 0.0
    %614 = vmatprep.subr.mxu0 0.0
    %615 = vmatpush2.msra.mxu0 0.0
    %616 = vmatprep.subr.mxu0 0.0
    %617 = vmatpush2.msra.mxu0 0.0
    %618 = vmatprep.subr.mxu0 0.0
    %619 = vmatpush2.msra.mxu0 0.0
    %620 = vmatprep.mubr.f32.mxu0 0.0
    %621 = vmatmul.mubr.f32.gmra.mxu0 %v479
    %v622 = vpop.f32.mrf.mxu0
    %v623 = vadd.f32 0.0, %v622
    %v624 = vpop.f32.mrf.mxu0
    %v625 = vadd.f32 0.0, %v624
    %626 = vdwg.mxu0
    %v627 = vadd.f32 %v481, %v552
    %v628 = vadd.f32 %v482, %v554
    %v629 = vadd.f32 %v483, %v623
    %v630 = vadd.f32 %v484, %v625
    %v631 = vxor.u32 %v627, 2147483648
    %v632 = vxor.u32 %v628, 2147483648
    %v633 = vmul.f32 %v631, 1.442695
    %v634 = vpow.pop %v633
    %v635 = vmul.f32 %v632, 1.442695
    %v636 = vpow.pop %v635
    %v637 = vadd.f32 %v634, 1.0
    %v638 = vadd.f32 %v636, 1.0
    %v639 = vrcp.pop %v637
    %v640 = vmul.f32 1.0, %v639
    %v641 = vrcp.pop %v638
    %v642 = vmul.f32 1.0, %v641
    %v643 = vtanh.pop %v629
    %v644 = vxor.u32 %v630, 2147483648
    %v645 = vmul.f32 %v644, 1.442695
    %v646 = vpow.pop %v645
    %v647 = vadd.f32 %v646, 1.0
    %v648 = vrcp.pop %v647
    %v649 = vmul.f32 1.0, %v648
    %v650 = vmul.f32 %v642, %v477
    %v651 = vmul.f32 %v640, %v643
    %v652 = vadd.f32 %v650, %v651
    %v653 = vtanh.pop %v652
    %v654 = vmul.f32 %v649, %v653
    %s655 = scalar_lea.vmem [#allocation4], 96
    %v656 = vld [vmem:[%s655] sm:$0xff]
    %v657 = vld [vmem:[%s655 + $0x8] sm:$0xff]
    %v658 = vld [vmem:[%s655 + $0x10] sm:$0xff]
    %v659 = vld [vmem:[%s655 + $0x18] sm:$0xff]
    %660 = vmatprep.subr.mxu0 %v132
    %661 = vmatpush1.msra.mxu0 %v131
    %662 = vmatprep.subr.mxu0 %v128
    %663 = vmatpush1.msra.mxu0 %v127
    %664 = vmatprep.subr.mxu0 %v124
    %665 = vmatpush1.msra.mxu0 %v123
    %666 = vmatprep.subr.mxu0 %v120
    %667 = vmatpush1.msra.mxu0 %v119
    %668 = vmatprep.subr.mxu0 %v116
    %669 = vmatpush1.msra.mxu0 %v115
    %670 = vmatprep.subr.mxu0 %v112
    %671 = vmatpush1.msra.mxu0 %v111
    %672 = vmatprep.subr.mxu0 %v108
    %673 = vmatpush1.msra.mxu0 %v107
    %674 = vmatprep.subr.mxu0 %v104
    %675 = vmatpush1.msra.mxu0 %v103
    %676 = vmatprep.subr.mxu0 %v100
    %677 = vmatpush1.msra.mxu0 %v99
    %678 = vmatprep.subr.mxu0 %v96
    %679 = vmatpush1.msra.mxu0 %v95
    %680 = vmatprep.subr.mxu0 %v92
    %681 = vmatpush1.msra.mxu0 %v91
    %682 = vmatprep.subr.mxu0 %v88
    %683 = vmatpush1.msra.mxu0 %v87
    %684 = vmatprep.subr.mxu0 %v84
    %685 = vmatpush1.msra.mxu0 %v83
    %686 = vmatprep.subr.mxu0 %v80
    %687 = vmatpush1.msra.mxu0 %v79
    %688 = vmatprep.subr.mxu0 %v76
    %689 = vmatpush1.msra.mxu0 %v75
    %690 = vmatprep.subr.mxu0 %v72
    %691 = vmatpush1.msra.mxu0 %v71
    %692 = vmatprep.subr.mxu0 0.0
    %693 = vmatpush2.msra.mxu0 0.0
    %694 = vmatprep.subr.mxu0 0.0
    %695 = vmatpush2.msra.mxu0 0.0
    %696 = vmatprep.subr.mxu0 0.0
    %697 = vmatpush2.msra.mxu0 0.0
    %698 = vmatprep.subr.mxu0 0.0
    %699 = vmatpush2.msra.mxu0 0.0
    %700 = vmatprep.subr.mxu0 0.0
    %701 = vmatpush2.msra.mxu0 0.0
    %702 = vmatprep.subr.mxu0 0.0
    %703 = vmatpush2.msra.mxu0 0.0
    %704 = vmatprep.subr.mxu0 0.0
    %705 = vmatpush2.msra.mxu0 0.0
    %706 = vmatprep.subr.mxu0 0.0
    %707 = vmatpush2.msra.mxu0 0.0
    %708 = vmatprep.subr.mxu0 0.0
    %709 = vmatpush2.msra.mxu0 0.0
    %710 = vmatprep.subr.mxu0 0.0
    %711 = vmatpush2.msra.mxu0 0.0
    %712 = vmatprep.subr.mxu0 0.0
    %713 = vmatpush2.msra.mxu0 0.0
    %714 = vmatprep.subr.mxu0 0.0
    %715 = vmatpush2.msra.mxu0 0.0
    %716 = vmatprep.subr.mxu0 0.0
    %717 = vmatpush2.msra.mxu0 0.0
    %718 = vmatprep.subr.mxu0 0.0
    %719 = vmatpush2.msra.mxu0 0.0
    %720 = vmatprep.subr.mxu0 0.0
    %721 = vmatpush2.msra.mxu0 0.0
    %722 = vmatprep.subr.mxu0 0.0
    %723 = vmatpush2.msra.mxu0 0.0
    %724 = vmatprep.mubr.f32.mxu0 0.0
    %725 = vmatmul.mubr.f32.gmra.mxu0 %v654
    %v726 = vpop.f32.mrf.mxu0
    %v727 = vadd.f32 0.0, %v726
    %v728 = vpop.f32.mrf.mxu0
    %v729 = vadd.f32 0.0, %v728
    %730 = vdwg.mxu0
    %731 = vmatprep.subr.mxu0 %v134
    %732 = vmatpush1.msra.mxu0 %v133
    %733 = vmatprep.subr.mxu0 %v130
    %734 = vmatpush1.msra.mxu0 %v129
    %735 = vmatprep.subr.mxu0 %v126
    %736 = vmatpush1.msra.mxu0 %v125
    %737 = vmatprep.subr.mxu0 %v122
    %738 = vmatpush1.msra.mxu0 %v121
    %739 = vmatprep.subr.mxu0 %v118
    %740 = vmatpush1.msra.mxu0 %v117
    %741 = vmatprep.subr.mxu0 %v114
    %742 = vmatpush1.msra.mxu0 %v113
    %743 = vmatprep.subr.mxu0 %v110
    %744 = vmatpush1.msra.mxu0 %v109
    %745 = vmatprep.subr.mxu0 %v106
    %746 = vmatpush1.msra.mxu0 %v105
    %747 = vmatprep.subr.mxu0 %v102
    %748 = vmatpush1.msra.mxu0 %v101
    %749 = vmatprep.subr.mxu0 %v98
    %750 = vmatpush1.msra.mxu0 %v97
    %751 = vmatprep.subr.mxu0 %v94
    %752 = vmatpush1.msra.mxu0 %v93
    %753 = vmatprep.subr.mxu0 %v90
    %754 = vmatpush1.msra.mxu0 %v89
    %755 = vmatprep.subr.mxu0 %v86
    %756 = vmatpush1.msra.mxu0 %v85
    %757 = vmatprep.subr.mxu0 %v82
    %758 = vmatpush1.msra.mxu0 %v81
    %759 = vmatprep.subr.mxu0 %v78
    %760 = vmatpush1.msra.mxu0 %v77
    %761 = vmatprep.subr.mxu0 %v74
    %762 = vmatpush1.msra.mxu0 %v73
    %763 = vmatprep.subr.mxu0 0.0
    %764 = vmatpush2.msra.mxu0 0.0
    %765 = vmatprep.subr.mxu0 0.0
    %766 = vmatpush2.msra.mxu0 0.0
    %767 = vmatprep.subr.mxu0 0.0
    %768 = vmatpush2.msra.mxu0 0.0
    %769 = vmatprep.subr.mxu0 0.0
    %770 = vmatpush2.msra.mxu0 0.0
    %771 = vmatprep.subr.mxu0 0.0
    %772 = vmatpush2.msra.mxu0 0.0
    %773 = vmatprep.subr.mxu0 0.0
    %774 = vmatpush2.msra.mxu0 0.0
    %775 = vmatprep.subr.mxu0 0.0
    %776 = vmatpush2.msra.mxu0 0.0
    %777 = vmatprep.subr.mxu0 0.0
    %778 = vmatpush2.msra.mxu0 0.0
    %779 = vmatprep.subr.mxu0 0.0
    %780 = vmatpush2.msra.mxu0 0.0
    %781 = vmatprep.subr.mxu0 0.0
    %782 = vmatpush2.msra.mxu0 0.0
    %783 = vmatprep.subr.mxu0 0.0
    %784 = vmatpush2.msra.mxu0 0.0
    %785 = vmatprep.subr.mxu0 0.0
    %786 = vmatpush2.msra.mxu0 0.0
    %787 = vmatprep.subr.mxu0 0.0
    %788 = vmatpush2.msra.mxu0 0.0
    %789 = vmatprep.subr.mxu0 0.0
    %790 = vmatpush2.msra.mxu0 0.0
    %791 = vmatprep.subr.mxu0 0.0
    %792 = vmatpush2.msra.mxu0 0.0
    %793 = vmatprep.subr.mxu0 0.0
    %794 = vmatpush2.msra.mxu0 0.0
    %795 = vmatprep.mubr.f32.mxu0 0.0
    %796 = vmatmul.mubr.f32.gmra.mxu0 %v654
    %v797 = vpop.f32.mrf.mxu0
    %v798 = vadd.f32 0.0, %v797
    %v799 = vpop.f32.mrf.mxu0
    %v800 = vadd.f32 0.0, %v799
    %801 = vdwg.mxu0
    %v802 = vadd.f32 %v656, %v727
    %v803 = vadd.f32 %v657, %v729
    %v804 = vadd.f32 %v658, %v798
    %v805 = vadd.f32 %v659, %v800
    %v806 = vxor.u32 %v802, 2147483648
    %v807 = vxor.u32 %v803, 2147483648
    %v808 = vmul.f32 %v806, 1.442695
    %v809 = vpow.pop %v808
    %v810 = vmul.f32 %v807, 1.442695
    %v811 = vpow.pop %v810
    %v812 = vadd.f32 %v809, 1.0
    %v813 = vadd.f32 %v811, 1.0
    %v814 = vrcp.pop %v812
    %v815 = vmul.f32 1.0, %v814
    %v816 = vrcp.pop %v813
    %v817 = vmul.f32 1.0, %v816
    %v818 = vtanh.pop %v804
    %v819 = vxor.u32 %v805, 2147483648
    %v820 = vmul.f32 %v819, 1.442695
    %v821 = vpow.pop %v820
    %v822 = vadd.f32 %v821, 1.0
    %v823 = vrcp.pop %v822
    %v824 = vmul.f32 1.0, %v823
    %v825 = vmul.f32 %v817, %v652
    %v826 = vmul.f32 %v815, %v818
    %v827 = vadd.f32 %v825, %v826
    %v828 = vtanh.pop %v827
    %v829 = vmul.f32 %v824, %v828
    %s830 = scalar_lea.vmem [#allocation4], 128
    %v831 = vld [vmem:[%s830] sm:$0xff]
    %v832 = vld [vmem:[%s830 + $0x8] sm:$0xff]
    %v833 = vld [vmem:[%s830 + $0x10] sm:$0xff]
    %v834 = vld [vmem:[%s830 + $0x18] sm:$0xff]
    %835 = vmatprep.subr.mxu0 %v132
    %836 = vmatpush1.msra.mxu0 %v131
    %837 = vmatprep.subr.mxu0 %v128
    %838 = vmatpush1.msra.mxu0 %v127
    %839 = vmatprep.subr.mxu0 %v124
    %840 = vmatpush1.msra.mxu0 %v123
    %841 = vmatprep.subr.mxu0 %v120
    %842 = vmatpush1.msra.mxu0 %v119
    %843 = vmatprep.subr.mxu0 %v116
    %844 = vmatpush1.msra.mxu0 %v115
    %845 = vmatprep.subr.mxu0 %v112
    %846 = vmatpush1.msra.mxu0 %v111
    %847 = vmatprep.subr.mxu0 %v108
    %848 = vmatpush1.msra.mxu0 %v107
    %849 = vmatprep.subr.mxu0 %v104
    %850 = vmatpush1.msra.mxu0 %v103
    %851 = vmatprep.subr.mxu0 %v100
    %852 = vmatpush1.msra.mxu0 %v99
    %853 = vmatprep.subr.mxu0 %v96
    %854 = vmatpush1.msra.mxu0 %v95
    %855 = vmatprep.subr.mxu0 %v92
    %856 = vmatpush1.msra.mxu0 %v91
    %857 = vmatprep.subr.mxu0 %v88
    %858 = vmatpush1.msra.mxu0 %v87
    %859 = vmatprep.subr.mxu0 %v84
    %860 = vmatpush1.msra.mxu0 %v83
    %861 = vmatprep.subr.mxu0 %v80
    %862 = vmatpush1.msra.mxu0 %v79
    %863 = vmatprep.subr.mxu0 %v76
    %864 = vmatpush1.msra.mxu0 %v75
    %865 = vmatprep.subr.mxu0 %v72
    %866 = vmatpush1.msra.mxu0 %v71
    %867 = vmatprep.subr.mxu0 0.0
    %868 = vmatpush2.msra.mxu0 0.0
    %869 = vmatprep.subr.mxu0 0.0
    %870 = vmatpush2.msra.mxu0 0.0
    %871 = vmatprep.subr.mxu0 0.0
    %872 = vmatpush2.msra.mxu0 0.0
    %873 = vmatprep.subr.mxu0 0.0
    %874 = vmatpush2.msra.mxu0 0.0
    %875 = vmatprep.subr.mxu0 0.0
    %876 = vmatpush2.msra.mxu0 0.0
    %877 = vmatprep.subr.mxu0 0.0
    %878 = vmatpush2.msra.mxu0 0.0
    %879 = vmatprep.subr.mxu0 0.0
    %880 = vmatpush2.msra.mxu0 0.0
    %881 = vmatprep.subr.mxu0 0.0
    %882 = vmatpush2.msra.mxu0 0.0
    %883 = vmatprep.subr.mxu0 0.0
    %884 = vmatpush2.msra.mxu0 0.0
    %885 = vmatprep.subr.mxu0 0.0
    %886 = vmatpush2.msra.mxu0 0.0
    %887 = vmatprep.subr.mxu0 0.0
    %888 = vmatpush2.msra.mxu0 0.0
    %889 = vmatprep.subr.mxu0 0.0
    %890 = vmatpush2.msra.mxu0 0.0
    %891 = vmatprep.subr.mxu0 0.0
    %892 = vmatpush2.msra.mxu0 0.0
    %893 = vmatprep.subr.mxu0 0.0
    %894 = vmatpush2.msra.mxu0 0.0
    %895 = vmatprep.subr.mxu0 0.0
    %896 = vmatpush2.msra.mxu0 0.0
    %897 = vmatprep.subr.mxu0 0.0
    %898 = vmatpush2.msra.mxu0 0.0
    %899 = vmatprep.mubr.f32.mxu0 0.0
    %900 = vmatmul.mubr.f32.gmra.mxu0 %v829
    %v901 = vpop.f32.mrf.mxu0
    %v902 = vadd.f32 0.0, %v901
    %v903 = vpop.f32.mrf.mxu0
    %v904 = vadd.f32 0.0, %v903
    %905 = vdwg.mxu0
    %906 = vmatprep.subr.mxu0 %v134
    %907 = vmatpush1.msra.mxu0 %v133
    %908 = vmatprep.subr.mxu0 %v130
    %909 = vmatpush1.msra.mxu0 %v129
    %910 = vmatprep.subr.mxu0 %v126
    %911 = vmatpush1.msra.mxu0 %v125
    %912 = vmatprep.subr.mxu0 %v122
    %913 = vmatpush1.msra.mxu0 %v121
    %914 = vmatprep.subr.mxu0 %v118
    %915 = vmatpush1.msra.mxu0 %v117
    %916 = vmatprep.subr.mxu0 %v114
    %917 = vmatpush1.msra.mxu0 %v113
    %918 = vmatprep.subr.mxu0 %v110
    %919 = vmatpush1.msra.mxu0 %v109
    %920 = vmatprep.subr.mxu0 %v106
    %921 = vmatpush1.msra.mxu0 %v105
    %922 = vmatprep.subr.mxu0 %v102
    %923 = vmatpush1.msra.mxu0 %v101
    %924 = vmatprep.subr.mxu0 %v98
    %925 = vmatpush1.msra.mxu0 %v97
    %926 = vmatprep.subr.mxu0 %v94
    %927 = vmatpush1.msra.mxu0 %v93
    %928 = vmatprep.subr.mxu0 %v90
    %929 = vmatpush1.msra.mxu0 %v89
    %930 = vmatprep.subr.mxu0 %v86
    %931 = vmatpush1.msra.mxu0 %v85
    %932 = vmatprep.subr.mxu0 %v82
    %933 = vmatpush1.msra.mxu0 %v81
    %934 = vmatprep.subr.mxu0 %v78
    %935 = vmatpush1.msra.mxu0 %v77
    %936 = vmatprep.subr.mxu0 %v74
    %937 = vmatpush1.msra.mxu0 %v73
    %938 = vmatprep.subr.mxu0 0.0
    %939 = vmatpush2.msra.mxu0 0.0
    %940 = vmatprep.subr.mxu0 0.0
    %941 = vmatpush2.msra.mxu0 0.0
    %942 = vmatprep.subr.mxu0 0.0
    %943 = vmatpush2.msra.mxu0 0.0
    %944 = vmatprep.subr.mxu0 0.0
    %945 = vmatpush2.msra.mxu0 0.0
    %946 = vmatprep.subr.mxu0 0.0
    %947 = vmatpush2.msra.mxu0 0.0
    %948 = vmatprep.subr.mxu0 0.0
    %949 = vmatpush2.msra.mxu0 0.0
    %950 = vmatprep.subr.mxu0 0.0
    %951 = vmatpush2.msra.mxu0 0.0
    %952 = vmatprep.subr.mxu0 0.0
    %953 = vmatpush2.msra.mxu0 0.0
    %954 = vmatprep.subr.mxu0 0.0
    %955 = vmatpush2.msra.mxu0 0.0
    %956 = vmatprep.subr.mxu0 0.0
    %957 = vmatpush2.msra.mxu0 0.0
    %958 = vmatprep.subr.mxu0 0.0
    %959 = vmatpush2.msra.mxu0 0.0
    %960 = vmatprep.subr.mxu0 0.0
    %961 = vmatpush2.msra.mxu0 0.0
    %962 = vmatprep.subr.mxu0 0.0
    %963 = vmatpush2.msra.mxu0 0.0
    %964 = vmatprep.subr.mxu0 0.0
    %965 = vmatpush2.msra.mxu0 0.0
    %966 = vmatprep.subr.mxu0 0.0
    %967 = vmatpush2.msra.mxu0 0.0
    %968 = vmatprep.subr.mxu0 0.0
    %969 = vmatpush2.msra.mxu0 0.0
    %970 = vmatprep.mubr.f32.mxu0 0.0
    %971 = vmatmul.mubr.f32.gmra.mxu0 %v829
    %v972 = vpop.f32.mrf.mxu0
    %v973 = vadd.f32 0.0, %v972
    %v974 = vpop.f32.mrf.mxu0
    %v975 = vadd.f32 0.0, %v974
    %976 = vdwg.mxu0
    %v977 = vadd.f32 %v831, %v902
    %v978 = vadd.f32 %v832, %v904
    %v979 = vadd.f32 %v833, %v973
    %v980 = vadd.f32 %v834, %v975
    %v981 = vxor.u32 %v977, 2147483648
    %v982 = vxor.u32 %v978, 2147483648
    %v983 = vmul.f32 %v981, 1.442695
    %v984 = vpow.pop %v983
    %v985 = vmul.f32 %v982, 1.442695
    %v986 = vpow.pop %v985
    %v987 = vadd.f32 %v984, 1.0
    %v988 = vadd.f32 %v986, 1.0
    %v989 = vrcp.pop %v987
    %v990 = vmul.f32 1.0, %v989
    %v991 = vrcp.pop %v988
    %v992 = vmul.f32 1.0, %v991
    %v993 = vtanh.pop %v979
    %v994 = vxor.u32 %v980, 2147483648
    %v995 = vmul.f32 %v994, 1.442695
    %v996 = vpow.pop %v995
    %v997 = vadd.f32 %v996, 1.0
    %v998 = vrcp.pop %v997
    %v999 = vmul.f32 1.0, %v998
    %v1000 = vmul.f32 %v992, %v827
    %v1001 = vmul.f32 %v990, %v993
    %v1002 = vadd.f32 %v1000, %v1001
    %v1003 = vtanh.pop %v1002
    %v1004 = vmul.f32 %v999, %v1003
    %s1005 = scalar_lea.vmem [#allocation4], 160
    %v1006 = vld [vmem:[%s1005] sm:$0xff]
    %v1007 = vld [vmem:[%s1005 + $0x8] sm:$0xff]
    %v1008 = vld [vmem:[%s1005 + $0x10] sm:$0xff]
    %v1009 = vld [vmem:[%s1005 + $0x18] sm:$0xff]
    %1010 = vmatprep.subr.mxu0 %v132
    %1011 = vmatpush1.msra.mxu0 %v131
    %1012 = vmatprep.subr.mxu0 %v128
    %1013 = vmatpush1.msra.mxu0 %v127
    %1014 = vmatprep.subr.mxu0 %v124
    %1015 = vmatpush1.msra.mxu0 %v123
    %1016 = vmatprep.subr.mxu0 %v120
    %1017 = vmatpush1.msra.mxu0 %v119
    %1018 = vmatprep.subr.mxu0 %v116
    %1019 = vmatpush1.msra.mxu0 %v115
    %1020 = vmatprep.subr.mxu0 %v112
    %1021 = vmatpush1.msra.mxu0 %v111
    %1022 = vmatprep.subr.mxu0 %v108
    %1023 = vmatpush1.msra.mxu0 %v107
    %1024 = vmatprep.subr.mxu0 %v104
    %1025 = vmatpush1.msra.mxu0 %v103
    %1026 = vmatprep.subr.mxu0 %v100
    %1027 = vmatpush1.msra.mxu0 %v99
    %1028 = vmatprep.subr.mxu0 %v96
    %1029 = vmatpush1.msra.mxu0 %v95
    %1030 = vmatprep.subr.mxu0 %v92
    %1031 = vmatpush1.msra.mxu0 %v91
    %1032 = vmatprep.subr.mxu0 %v88
    %1033 = vmatpush1.msra.mxu0 %v87
    %1034 = vmatprep.subr.mxu0 %v84
    %1035 = vmatpush1.msra.mxu0 %v83
    %1036 = vmatprep.subr.mxu0 %v80
    %1037 = vmatpush1.msra.mxu0 %v79
    %1038 = vmatprep.subr.mxu0 %v76
    %1039 = vmatpush1.msra.mxu0 %v75
    %1040 = vmatprep.subr.mxu0 %v72
    %1041 = vmatpush1.msra.mxu0 %v71
    %1042 = vmatprep.subr.mxu0 0.0
    %1043 = vmatpush2.msra.mxu0 0.0
    %1044 = vmatprep.subr.mxu0 0.0
    %1045 = vmatpush2.msra.mxu0 0.0
    %1046 = vmatprep.subr.mxu0 0.0
    %1047 = vmatpush2.msra.mxu0 0.0
    %1048 = vmatprep.subr.mxu0 0.0
    %1049 = vmatpush2.msra.mxu0 0.0
    %1050 = vmatprep.subr.mxu0 0.0
    %1051 = vmatpush2.msra.mxu0 0.0
    %1052 = vmatprep.subr.mxu0 0.0
    %1053 = vmatpush2.msra.mxu0 0.0
    %1054 = vmatprep.subr.mxu0 0.0
    %1055 = vmatpush2.msra.mxu0 0.0
    %1056 = vmatprep.subr.mxu0 0.0
    %1057 = vmatpush2.msra.mxu0 0.0
    %1058 = vmatprep.subr.mxu0 0.0
    %1059 = vmatpush2.msra.mxu0 0.0
    %1060 = vmatprep.subr.mxu0 0.0
    %1061 = vmatpush2.msra.mxu0 0.0
    %1062 = vmatprep.subr.mxu0 0.0
    %1063 = vmatpush2.msra.mxu0 0.0
    %1064 = vmatprep.subr.mxu0 0.0
    %1065 = vmatpush2.msra.mxu0 0.0
    %1066 = vmatprep.subr.mxu0 0.0
    %1067 = vmatpush2.msra.mxu0 0.0
    %1068 = vmatprep.subr.mxu0 0.0
    %1069 = vmatpush2.msra.mxu0 0.0
    %1070 = vmatprep.subr.mxu0 0.0
    %1071 = vmatpush2.msra.mxu0 0.0
    %1072 = vmatprep.subr.mxu0 0.0
    %1073 = vmatpush2.msra.mxu0 0.0
    %1074 = vmatprep.mubr.f32.mxu0 0.0
    %1075 = vmatmul.mubr.f32.gmra.mxu0 %v1004
    %v1076 = vpop.f32.mrf.mxu0
    %v1077 = vadd.f32 0.0, %v1076
    %v1078 = vpop.f32.mrf.mxu0
    %v1079 = vadd.f32 0.0, %v1078
    %1080 = vdwg.mxu0
    %1081 = vmatprep.subr.mxu0 %v134
    %1082 = vmatpush1.msra.mxu0 %v133
    %1083 = vmatprep.subr.mxu0 %v130
    %1084 = vmatpush1.msra.mxu0 %v129
    %1085 = vmatprep.subr.mxu0 %v126
    %1086 = vmatpush1.msra.mxu0 %v125
    %1087 = vmatprep.subr.mxu0 %v122
    %1088 = vmatpush1.msra.mxu0 %v121
    %1089 = vmatprep.subr.mxu0 %v118
    %1090 = vmatpush1.msra.mxu0 %v117
    %1091 = vmatprep.subr.mxu0 %v114
    %1092 = vmatpush1.msra.mxu0 %v113
    %1093 = vmatprep.subr.mxu0 %v110
    %1094 = vmatpush1.msra.mxu0 %v109
    %1095 = vmatprep.subr.mxu0 %v106
    %1096 = vmatpush1.msra.mxu0 %v105
    %1097 = vmatprep.subr.mxu0 %v102
    %1098 = vmatpush1.msra.mxu0 %v101
    %1099 = vmatprep.subr.mxu0 %v98
    %1100 = vmatpush1.msra.mxu0 %v97
    %1101 = vmatprep.subr.mxu0 %v94
    %1102 = vmatpush1.msra.mxu0 %v93
    %1103 = vmatprep.subr.mxu0 %v90
    %1104 = vmatpush1.msra.mxu0 %v89
    %1105 = vmatprep.subr.mxu0 %v86
    %1106 = vmatpush1.msra.mxu0 %v85
    %1107 = vmatprep.subr.mxu0 %v82
    %1108 = vmatpush1.msra.mxu0 %v81
    %1109 = vmatprep.subr.mxu0 %v78
    %1110 = vmatpush1.msra.mxu0 %v77
    %1111 = vmatprep.subr.mxu0 %v74
    %1112 = vmatpush1.msra.mxu0 %v73
    %1113 = vmatprep.subr.mxu0 0.0
    %1114 = vmatpush2.msra.mxu0 0.0
    %1115 = vmatprep.subr.mxu0 0.0
    %1116 = vmatpush2.msra.mxu0 0.0
    %1117 = vmatprep.subr.mxu0 0.0
    %1118 = vmatpush2.msra.mxu0 0.0
    %1119 = vmatprep.subr.mxu0 0.0
    %1120 = vmatpush2.msra.mxu0 0.0
    %1121 = vmatprep.subr.mxu0 0.0
    %1122 = vmatpush2.msra.mxu0 0.0
    %1123 = vmatprep.subr.mxu0 0.0
    %1124 = vmatpush2.msra.mxu0 0.0
    %1125 = vmatprep.subr.mxu0 0.0
    %1126 = vmatpush2.msra.mxu0 0.0
    %1127 = vmatprep.subr.mxu0 0.0
    %1128 = vmatpush2.msra.mxu0 0.0
    %1129 = vmatprep.subr.mxu0 0.0
    %1130 = vmatpush2.msra.mxu0 0.0
    %1131 = vmatprep.subr.mxu0 0.0
    %1132 = vmatpush2.msra.mxu0 0.0
    %1133 = vmatprep.subr.mxu0 0.0
    %1134 = vmatpush2.msra.mxu0 0.0
    %1135 = vmatprep.subr.mxu0 0.0
    %1136 = vmatpush2.msra.mxu0 0.0
    %1137 = vmatprep.subr.mxu0 0.0
    %1138 = vmatpush2.msra.mxu0 0.0
    %1139 = vmatprep.subr.mxu0 0.0
    %1140 = vmatpush2.msra.mxu0 0.0
    %1141 = vmatprep.subr.mxu0 0.0
    %1142 = vmatpush2.msra.mxu0 0.0
    %1143 = vmatprep.subr.mxu0 0.0
    %1144 = vmatpush2.msra.mxu0 0.0
    %1145 = vmatprep.mubr.f32.mxu0 0.0
    %1146 = vmatmul.mubr.f32.gmra.mxu0 %v1004
    %v1147 = vpop.f32.mrf.mxu0
    %v1148 = vadd.f32 0.0, %v1147
    %v1149 = vpop.f32.mrf.mxu0
    %v1150 = vadd.f32 0.0, %v1149
    %1151 = vdwg.mxu0
    %v1152 = vadd.f32 %v1006, %v1077
    %v1153 = vadd.f32 %v1007, %v1079
    %v1154 = vadd.f32 %v1008, %v1148
    %v1155 = vadd.f32 %v1009, %v1150
    %v1156 = vxor.u32 %v1152, 2147483648
    %v1157 = vxor.u32 %v1153, 2147483648
    %v1158 = vmul.f32 %v1156, 1.442695
    %v1159 = vpow.pop %v1158
    %v1160 = vmul.f32 %v1157, 1.442695
    %v1161 = vpow.pop %v1160
    %v1162 = vadd.f32 %v1159, 1.0
    %v1163 = vadd.f32 %v1161, 1.0
    %v1164 = vrcp.pop %v1162
    %v1165 = vmul.f32 1.0, %v1164
    %v1166 = vrcp.pop %v1163
    %v1167 = vmul.f32 1.0, %v1166
    %v1168 = vtanh.pop %v1154
    %v1169 = vxor.u32 %v1155, 2147483648
    %v1170 = vmul.f32 %v1169, 1.442695
    %v1171 = vpow.pop %v1170
    %v1172 = vadd.f32 %v1171, 1.0
    %v1173 = vrcp.pop %v1172
    %v1174 = vmul.f32 1.0, %v1173
    %v1175 = vmul.f32 %v1167, %v1002
    %v1176 = vmul.f32 %v1165, %v1168
    %v1177 = vadd.f32 %v1175, %v1176
    %v1178 = vtanh.pop %v1177
    %v1179 = vmul.f32 %v1174, %v1178
    %s1180 = scalar_lea.vmem [#allocation4], 192
    %v1181 = vld [vmem:[%s1180] sm:$0xff]
    %v1182 = vld [vmem:[%s1180 + $0x8] sm:$0xff]
    %v1183 = vld [vmem:[%s1180 + $0x10] sm:$0xff]
    %v1184 = vld [vmem:[%s1180 + $0x18] sm:$0xff]
    %1185 = vmatprep.subr.mxu0 %v132
    %1186 = vmatpush1.msra.mxu0 %v131
    %1187 = vmatprep.subr.mxu0 %v128
    %1188 = vmatpush1.msra.mxu0 %v127
    %1189 = vmatprep.subr.mxu0 %v124
    %1190 = vmatpush1.msra.mxu0 %v123
    %1191 = vmatprep.subr.mxu0 %v120
    %1192 = vmatpush1.msra.mxu0 %v119
    %1193 = vmatprep.subr.mxu0 %v116
    %1194 = vmatpush1.msra.mxu0 %v115
    %1195 = vmatprep.subr.mxu0 %v112
    %1196 = vmatpush1.msra.mxu0 %v111
    %1197 = vmatprep.subr.mxu0 %v108
    %1198 = vmatpush1.msra.mxu0 %v107
    %1199 = vmatprep.subr.mxu0 %v104
    %1200 = vmatpush1.msra.mxu0 %v103
    %1201 = vmatprep.subr.mxu0 %v100
    %1202 = vmatpush1.msra.mxu0 %v99
    %1203 = vmatprep.subr.mxu0 %v96
    %1204 = vmatpush1.msra.mxu0 %v95
    %1205 = vmatprep.subr.mxu0 %v92
    %1206 = vmatpush1.msra.mxu0 %v91
    %1207 = vmatprep.subr.mxu0 %v88
    %1208 = vmatpush1.msra.mxu0 %v87
    %1209 = vmatprep.subr.mxu0 %v84
    %1210 = vmatpush1.msra.mxu0 %v83
    %1211 = vmatprep.subr.mxu0 %v80
    %1212 = vmatpush1.msra.mxu0 %v79
    %1213 = vmatprep.subr.mxu0 %v76
    %1214 = vmatpush1.msra.mxu0 %v75
    %1215 = vmatprep.subr.mxu0 %v72
    %1216 = vmatpush1.msra.mxu0 %v71
    %1217 = vmatprep.subr.mxu0 0.0
    %1218 = vmatpush2.msra.mxu0 0.0
    %1219 = vmatprep.subr.mxu0 0.0
    %1220 = vmatpush2.msra.mxu0 0.0
    %1221 = vmatprep.subr.mxu0 0.0
    %1222 = vmatpush2.msra.mxu0 0.0
    %1223 = vmatprep.subr.mxu0 0.0
    %1224 = vmatpush2.msra.mxu0 0.0
    %1225 = vmatprep.subr.mxu0 0.0
    %1226 = vmatpush2.msra.mxu0 0.0
    %1227 = vmatprep.subr.mxu0 0.0
    %1228 = vmatpush2.msra.mxu0 0.0
    %1229 = vmatprep.subr.mxu0 0.0
    %1230 = vmatpush2.msra.mxu0 0.0
    %1231 = vmatprep.subr.mxu0 0.0
    %1232 = vmatpush2.msra.mxu0 0.0
    %1233 = vmatprep.subr.mxu0 0.0
    %1234 = vmatpush2.msra.mxu0 0.0
    %1235 = vmatprep.subr.mxu0 0.0
    %1236 = vmatpush2.msra.mxu0 0.0
    %1237 = vmatprep.subr.mxu0 0.0
    %1238 = vmatpush2.msra.mxu0 0.0
    %1239 = vmatprep.subr.mxu0 0.0
    %1240 = vmatpush2.msra.mxu0 0.0
    %1241 = vmatprep.subr.mxu0 0.0
    %1242 = vmatpush2.msra.mxu0 0.0
    %1243 = vmatprep.subr.mxu0 0.0
    %1244 = vmatpush2.msra.mxu0 0.0
    %1245 = vmatprep.subr.mxu0 0.0
    %1246 = vmatpush2.msra.mxu0 0.0
    %1247 = vmatprep.subr.mxu0 0.0
    %1248 = vmatpush2.msra.mxu0 0.0
    %1249 = vmatprep.mubr.f32.mxu0 0.0
    %1250 = vmatmul.mubr.f32.gmra.mxu0 %v1179
    %v1251 = vpop.f32.mrf.mxu0
    %v1252 = vadd.f32 0.0, %v1251
    %v1253 = vpop.f32.mrf.mxu0
    %v1254 = vadd.f32 0.0, %v1253
    %1255 = vdwg.mxu0
    %1256 = vmatprep.subr.mxu0 %v134
    %1257 = vmatpush1.msra.mxu0 %v133
    %1258 = vmatprep.subr.mxu0 %v130
    %1259 = vmatpush1.msra.mxu0 %v129
    %1260 = vmatprep.subr.mxu0 %v126
    %1261 = vmatpush1.msra.mxu0 %v125
    %1262 = vmatprep.subr.mxu0 %v122
    %1263 = vmatpush1.msra.mxu0 %v121
    %1264 = vmatprep.subr.mxu0 %v118
    %1265 = vmatpush1.msra.mxu0 %v117
    %1266 = vmatprep.subr.mxu0 %v114
    %1267 = vmatpush1.msra.mxu0 %v113
    %1268 = vmatprep.subr.mxu0 %v110
    %1269 = vmatpush1.msra.mxu0 %v109
    %1270 = vmatprep.subr.mxu0 %v106
    %1271 = vmatpush1.msra.mxu0 %v105
    %1272 = vmatprep.subr.mxu0 %v102
    %1273 = vmatpush1.msra.mxu0 %v101
    %1274 = vmatprep.subr.mxu0 %v98
    %1275 = vmatpush1.msra.mxu0 %v97
    %1276 = vmatprep.subr.mxu0 %v94
    %1277 = vmatpush1.msra.mxu0 %v93
    %1278 = vmatprep.subr.mxu0 %v90
    %1279 = vmatpush1.msra.mxu0 %v89
    %1280 = vmatprep.subr.mxu0 %v86
    %1281 = vmatpush1.msra.mxu0 %v85
    %1282 = vmatprep.subr.mxu0 %v82
    %1283 = vmatpush1.msra.mxu0 %v81
    %1284 = vmatprep.subr.mxu0 %v78
    %1285 = vmatpush1.msra.mxu0 %v77
    %1286 = vmatprep.subr.mxu0 %v74
    %1287 = vmatpush1.msra.mxu0 %v73
    %1288 = vmatprep.subr.mxu0 0.0
    %1289 = vmatpush2.msra.mxu0 0.0
    %1290 = vmatprep.subr.mxu0 0.0
    %1291 = vmatpush2.msra.mxu0 0.0
    %1292 = vmatprep.subr.mxu0 0.0
    %1293 = vmatpush2.msra.mxu0 0.0
    %1294 = vmatprep.subr.mxu0 0.0
    %1295 = vmatpush2.msra.mxu0 0.0
    %1296 = vmatprep.subr.mxu0 0.0
    %1297 = vmatpush2.msra.mxu0 0.0
    %1298 = vmatprep.subr.mxu0 0.0
    %1299 = vmatpush2.msra.mxu0 0.0
    %1300 = vmatprep.subr.mxu0 0.0
    %1301 = vmatpush2.msra.mxu0 0.0
    %1302 = vmatprep.subr.mxu0 0.0
    %1303 = vmatpush2.msra.mxu0 0.0
    %1304 = vmatprep.subr.mxu0 0.0
    %1305 = vmatpush2.msra.mxu0 0.0
    %1306 = vmatprep.subr.mxu0 0.0
    %1307 = vmatpush2.msra.mxu0 0.0
    %1308 = vmatprep.subr.mxu0 0.0
    %1309 = vmatpush2.msra.mxu0 0.0
    %1310 = vmatprep.subr.mxu0 0.0
    %1311 = vmatpush2.msra.mxu0 0.0
    %1312 = vmatprep.subr.mxu0 0.0
    %1313 = vmatpush2.msra.mxu0 0.0
    %1314 = vmatprep.subr.mxu0 0.0
    %1315 = vmatpush2.msra.mxu0 0.0
    %1316 = vmatprep.subr.mxu0 0.0
    %1317 = vmatpush2.msra.mxu0 0.0
    %1318 = vmatprep.subr.mxu0 0.0
    %1319 = vmatpush2.msra.mxu0 0.0
    %1320 = vmatprep.mubr.f32.mxu0 0.0
    %1321 = vmatmul.mubr.f32.gmra.mxu0 %v1179
    %v1322 = vpop.f32.mrf.mxu0
    %v1323 = vadd.f32 0.0, %v1322
    %v1324 = vpop.f32.mrf.mxu0
    %v1325 = vadd.f32 0.0, %v1324
    %1326 = vdwg.mxu0
    %v1327 = vadd.f32 %v1181, %v1252
    %v1328 = vadd.f32 %v1182, %v1254
    %v1329 = vadd.f32 %v1183, %v1323
    %v1330 = vadd.f32 %v1184, %v1325
    %v1331 = vxor.u32 %v1327, 2147483648
    %v1332 = vxor.u32 %v1328, 2147483648
    %v1333 = vmul.f32 %v1331, 1.442695
    %v1334 = vpow.pop %v1333
    %v1335 = vmul.f32 %v1332, 1.442695
    %v1336 = vpow.pop %v1335
    %v1337 = vadd.f32 %v1334, 1.0
    %v1338 = vadd.f32 %v1336, 1.0
    %v1339 = vrcp.pop %v1337
    %v1340 = vmul.f32 1.0, %v1339
    %v1341 = vrcp.pop %v1338
    %v1342 = vmul.f32 1.0, %v1341
    %v1343 = vtanh.pop %v1329
    %v1344 = vxor.u32 %v1330, 2147483648
    %v1345 = vmul.f32 %v1344, 1.442695
    %v1346 = vpow.pop %v1345
    %v1347 = vadd.f32 %v1346, 1.0
    %v1348 = vrcp.pop %v1347
    %v1349 = vmul.f32 1.0, %v1348
    %v1350 = vmul.f32 %v1342, %v1177
    %v1351 = vmul.f32 %v1340, %v1343
    %v1352 = vadd.f32 %v1350, %v1351
    %v1353 = vtanh.pop %v1352
    %v1354 = vmul.f32 %v1349, %v1353
    %s1355 = scalar_lea.vmem [#allocation4], 224
    %v1356 = vld [vmem:[%s1355] sm:$0xff]
    %v1357 = vld [vmem:[%s1355 + $0x8] sm:$0xff]
    %v1358 = vld [vmem:[%s1355 + $0x10] sm:$0xff]
    %v1359 = vld [vmem:[%s1355 + $0x18] sm:$0xff]
    %1360 = vmatprep.subr.mxu0 %v132
    %1361 = vmatpush1.msra.mxu0 %v131
    %1362 = vmatprep.subr.mxu0 %v128
    %1363 = vmatpush1.msra.mxu0 %v127
    %1364 = vmatprep.subr.mxu0 %v124
    %1365 = vmatpush1.msra.mxu0 %v123
    %1366 = vmatprep.subr.mxu0 %v120
    %1367 = vmatpush1.msra.mxu0 %v119
    %1368 = vmatprep.subr.mxu0 %v116
    %1369 = vmatpush1.msra.mxu0 %v115
    %1370 = vmatprep.subr.mxu0 %v112
    %1371 = vmatpush1.msra.mxu0 %v111
    %1372 = vmatprep.subr.mxu0 %v108
    %1373 = vmatpush1.msra.mxu0 %v107
    %1374 = vmatprep.subr.mxu0 %v104
    %1375 = vmatpush1.msra.mxu0 %v103
    %1376 = vmatprep.subr.mxu0 %v100
    %1377 = vmatpush1.msra.mxu0 %v99
    %1378 = vmatprep.subr.mxu0 %v96
    %1379 = vmatpush1.msra.mxu0 %v95
    %1380 = vmatprep.subr.mxu0 %v92
    %1381 = vmatpush1.msra.mxu0 %v91
    %1382 = vmatprep.subr.mxu0 %v88
    %1383 = vmatpush1.msra.mxu0 %v87
    %1384 = vmatprep.subr.mxu0 %v84
    %1385 = vmatpush1.msra.mxu0 %v83
    %1386 = vmatprep.subr.mxu0 %v80
    %1387 = vmatpush1.msra.mxu0 %v79
    %1388 = vmatprep.subr.mxu0 %v76
    %1389 = vmatpush1.msra.mxu0 %v75
    %1390 = vmatprep.subr.mxu0 %v72
    %1391 = vmatpush1.msra.mxu0 %v71
    %1392 = vmatprep.subr.mxu0 0.0
    %1393 = vmatpush2.msra.mxu0 0.0
    %1394 = vmatprep.subr.mxu0 0.0
    %1395 = vmatpush2.msra.mxu0 0.0
    %1396 = vmatprep.subr.mxu0 0.0
    %1397 = vmatpush2.msra.mxu0 0.0
    %1398 = vmatprep.subr.mxu0 0.0
    %1399 = vmatpush2.msra.mxu0 0.0
    %1400 = vmatprep.subr.mxu0 0.0
    %1401 = vmatpush2.msra.mxu0 0.0
    %1402 = vmatprep.subr.mxu0 0.0
    %1403 = vmatpush2.msra.mxu0 0.0
    %1404 = vmatprep.subr.mxu0 0.0
    %1405 = vmatpush2.msra.mxu0 0.0
    %1406 = vmatprep.subr.mxu0 0.0
    %1407 = vmatpush2.msra.mxu0 0.0
    %1408 = vmatprep.subr.mxu0 0.0
    %1409 = vmatpush2.msra.mxu0 0.0
    %1410 = vmatprep.subr.mxu0 0.0
    %1411 = vmatpush2.msra.mxu0 0.0
    %1412 = vmatprep.subr.mxu0 0.0
    %1413 = vmatpush2.msra.mxu0 0.0
    %1414 = vmatprep.subr.mxu0 0.0
    %1415 = vmatpush2.msra.mxu0 0.0
    %1416 = vmatprep.subr.mxu0 0.0
    %1417 = vmatpush2.msra.mxu0 0.0
    %1418 = vmatprep.subr.mxu0 0.0
    %1419 = vmatpush2.msra.mxu0 0.0
    %1420 = vmatprep.subr.mxu0 0.0
    %1421 = vmatpush2.msra.mxu0 0.0
    %1422 = vmatprep.subr.mxu0 0.0
    %1423 = vmatpush2.msra.mxu0 0.0
    %1424 = vmatprep.mubr.f32.mxu0 0.0
    %1425 = vmatmul.mubr.f32.gmra.mxu0 %v1354
    %v1426 = vpop.f32.mrf.mxu0
    %v1427 = vadd.f32 0.0, %v1426
    %v1428 = vpop.f32.mrf.mxu0
    %v1429 = vadd.f32 0.0, %v1428
    %1430 = vdwg.mxu0
    %1431 = vmatprep.subr.mxu0 %v134
    %1432 = vmatpush1.msra.mxu0 %v133
    %1433 = vmatprep.subr.mxu0 %v130
    %1434 = vmatpush1.msra.mxu0 %v129
    %1435 = vmatprep.subr.mxu0 %v126
    %1436 = vmatpush1.msra.mxu0 %v125
    %1437 = vmatprep.subr.mxu0 %v122
    %1438 = vmatpush1.msra.mxu0 %v121
    %1439 = vmatprep.subr.mxu0 %v118
    %1440 = vmatpush1.msra.mxu0 %v117
    %1441 = vmatprep.subr.mxu0 %v114
    %1442 = vmatpush1.msra.mxu0 %v113
    %1443 = vmatprep.subr.mxu0 %v110
    %1444 = vmatpush1.msra.mxu0 %v109
    %1445 = vmatprep.subr.mxu0 %v106
    %1446 = vmatpush1.msra.mxu0 %v105
    %1447 = vmatprep.subr.mxu0 %v102
    %1448 = vmatpush1.msra.mxu0 %v101
    %1449 = vmatprep.subr.mxu0 %v98
    %1450 = vmatpush1.msra.mxu0 %v97
    %1451 = vmatprep.subr.mxu0 %v94
    %1452 = vmatpush1.msra.mxu0 %v93
    %1453 = vmatprep.subr.mxu0 %v90
    %1454 = vmatpush1.msra.mxu0 %v89
    %1455 = vmatprep.subr.mxu0 %v86
    %1456 = vmatpush1.msra.mxu0 %v85
    %1457 = vmatprep.subr.mxu0 %v82
    %1458 = vmatpush1.msra.mxu0 %v81
    %1459 = vmatprep.subr.mxu0 %v78
    %1460 = vmatpush1.msra.mxu0 %v77
    %1461 = vmatprep.subr.mxu0 %v74
    %1462 = vmatpush1.msra.mxu0 %v73
    %1463 = vmatprep.subr.mxu0 0.0
    %1464 = vmatpush2.msra.mxu0 0.0
    %1465 = vmatprep.subr.mxu0 0.0
    %1466 = vmatpush2.msra.mxu0 0.0
    %1467 = vmatprep.subr.mxu0 0.0
    %1468 = vmatpush2.msra.mxu0 0.0
    %1469 = vmatprep.subr.mxu0 0.0
    %1470 = vmatpush2.msra.mxu0 0.0
    %1471 = vmatprep.subr.mxu0 0.0
    %1472 = vmatpush2.msra.mxu0 0.0
    %1473 = vmatprep.subr.mxu0 0.0
    %1474 = vmatpush2.msra.mxu0 0.0
    %1475 = vmatprep.subr.mxu0 0.0
    %1476 = vmatpush2.msra.mxu0 0.0
    %1477 = vmatprep.subr.mxu0 0.0
    %1478 = vmatpush2.msra.mxu0 0.0
    %1479 = vmatprep.subr.mxu0 0.0
    %1480 = vmatpush2.msra.mxu0 0.0
    %1481 = vmatprep.subr.mxu0 0.0
    %1482 = vmatpush2.msra.mxu0 0.0
    %1483 = vmatprep.subr.mxu0 0.0
    %1484 = vmatpush2.msra.mxu0 0.0
    %1485 = vmatprep.subr.mxu0 0.0
    %1486 = vmatpush2.msra.mxu0 0.0
    %1487 = vmatprep.subr.mxu0 0.0
    %1488 = vmatpush2.msra.mxu0 0.0
    %1489 = vmatprep.subr.mxu0 0.0
    %1490 = vmatpush2.msra.mxu0 0.0
    %1491 = vmatprep.subr.mxu0 0.0
    %1492 = vmatpush2.msra.mxu0 0.0
    %1493 = vmatprep.subr.mxu0 0.0
    %1494 = vmatpush2.msra.mxu0 0.0
    %1495 = vmatprep.mubr.f32.mxu0 0.0
    %1496 = vmatmul.mubr.f32.gmra.mxu0 %v1354
    %v1497 = vpop.f32.mrf.mxu0
    %v1498 = vadd.f32 0.0, %v1497
    %v1499 = vpop.f32.mrf.mxu0
    %v1500 = vadd.f32 0.0, %v1499
    %1501 = vdwg.mxu0
    %v1502 = vadd.f32 %v1356, %v1427
    %v1503 = vadd.f32 %v1357, %v1429
    %v1504 = vadd.f32 %v1358, %v1498
    %v1505 = vadd.f32 %v1359, %v1500
    %v1506 = vxor.u32 %v1502, 2147483648
    %v1507 = vxor.u32 %v1503, 2147483648
    %v1508 = vmul.f32 %v1506, 1.442695
    %v1509 = vpow.pop %v1508
    %v1510 = vmul.f32 %v1507, 1.442695
    %v1511 = vpow.pop %v1510
    %v1512 = vadd.f32 %v1509, 1.0
    %v1513 = vadd.f32 %v1511, 1.0
    %v1514 = vrcp.pop %v1512
    %v1515 = vmul.f32 1.0, %v1514
    %v1516 = vrcp.pop %v1513
    %v1517 = vmul.f32 1.0, %v1516
    %v1518 = vtanh.pop %v1504
    %v1519 = vxor.u32 %v1505, 2147483648
    %v1520 = vmul.f32 %v1519, 1.442695
    %v1521 = vpow.pop %v1520
    %v1522 = vadd.f32 %v1521, 1.0
    %v1523 = vrcp.pop %v1522
    %v1524 = vmul.f32 1.0, %v1523
    %v1525 = vmul.f32 %v1517, %v1352
    %v1526 = vmul.f32 %v1515, %v1518
    %v1527 = vadd.f32 %v1525, %v1526
    %v1528 = vtanh.pop %v1527
    %v1529 = vmul.f32 %v1524, %v1528
    %1530 = vst [vmem:[#allocation2] sm:$0xff] %v1529
    %1531 = vst [vmem:[#allocation3] sm:$0xff] %v1527
    // Predicated region
    $region34: #{tpu_custom_call.1} parent=1 // pred_check
      %p1532 = pneg %p59
    $region35: #{tpu_custom_call.1} parent=1 // pred_check_branch
      %1534 = sbr.rel (%p1532) target = $region37
    $region36: #{tpu_custom_call.1} parent=1 // pred_region
      %v1535 = vld [vmem:[#allocation9] sm:$0xff]
      %v1536 = vld [vmem:[#allocation9 + $0x8] sm:$0xff]
      %v1537 = vld [vmem:[#allocation9 + $0x10] sm:$0xff]
      %v1538 = vld [vmem:[#allocation9 + $0x18] sm:$0xff]
      %v1539 = vld [vmem:[#allocation9 + $0x20] sm:$0xff]
      %v1540 = vld [vmem:[#allocation9 + $0x28] sm:$0xff]
      %v1541 = vld [vmem:[#allocation9 + $0x30] sm:$0xff]
      %v1542 = vld [vmem:[#allocation9 + $0x38] sm:$0xff]
      %v1543 = vld [vmem:[#allocation9 + $0x40] sm:$0xff]
      %v1544 = vld [vmem:[#allocation9 + $0x48] sm:$0xff]
      %v1545 = vld [vmem:[#allocation9 + $0x50] sm:$0xff]
      %v1546 = vld [vmem:[#allocation9 + $0x58] sm:$0xff]
      %v1547 = vld [vmem:[#allocation9 + $0x60] sm:$0xff]
      %v1548 = vld [vmem:[#allocation9 + $0x68] sm:$0xff]
      %v1549 = vld [vmem:[#allocation9 + $0x70] sm:$0xff]
      %v1550 = vld [vmem:[#allocation9 + $0x78] sm:$0xff]
      %v1551 = vld [vmem:[%s3] sm:$0x1]
      %v1553 = vlaneseq
      %v1554 = vshrl.u32 %v1553, 7
      %v1555 = vsub.s32 0, %v1554
      %v1556 = vrot.slane %v1551, %v1555
      %1558 = vmatprep.subr.mxu0 0.0
      %1559 = vmatpush1.msra.mxu0 %v1550
      %1560 = vmatprep.subr.mxu0 0.0
      %1561 = vmatpush1.msra.mxu0 %v1549
      %1562 = vmatprep.subr.mxu0 0.0
      %1563 = vmatpush1.msra.mxu0 %v1548
      %1564 = vmatprep.subr.mxu0 0.0
      %1565 = vmatpush1.msra.mxu0 %v1547
      %1566 = vmatprep.subr.mxu0 0.0
      %1567 = vmatpush1.msra.mxu0 %v1546
      %1568 = vmatprep.subr.mxu0 0.0
      %1569 = vmatpush1.msra.mxu0 %v1545
      %1570 = vmatprep.subr.mxu0 0.0
      %1571 = vmatpush1.msra.mxu0 %v1544
      %1572 = vmatprep.subr.mxu0 0.0
      %1573 = vmatpush1.msra.mxu0 %v1543
      %1574 = vmatprep.subr.mxu0 0.0
      %1575 = vmatpush1.msra.mxu0 %v1542
      %1576 = vmatprep.subr.mxu0 0.0
      %1577 = vmatpush1.msra.mxu0 %v1541
      %1578 = vmatprep.subr.mxu0 0.0
      %1579 = vmatpush1.msra.mxu0 %v1540
      %1580 = vmatprep.subr.mxu0 0.0
      %1581 = vmatpush1.msra.mxu0 %v1539
      %1582 = vmatprep.subr.mxu0 0.0
      %1583 = vmatpush1.msra.mxu0 %v1538
      %1584 = vmatprep.subr.mxu0 0.0
      %1585 = vmatpush1.msra.mxu0 %v1537
      %1586 = vmatprep.subr.mxu0 0.0
      %1587 = vmatpush1.msra.mxu0 %v1536
      %1588 = vmatprep.subr.mxu0 0.0
      %1589 = vmatpush1.msra.mxu0 %v1535
      %1590 = vmatprep.subr.mxu0 0.0
      %1591 = vmatpush2.msra.mxu0 0.0
      %1592 = vmatprep.subr.mxu0 0.0
      %1593 = vmatpush2.msra.mxu0 0.0
      %1594 = vmatprep.subr.mxu0 0.0
      %1595 = vmatpush2.msra.mxu0 0.0
      %1596 = vmatprep.subr.mxu0 0.0
      %1597 = vmatpush2.msra.mxu0 0.0
      %1598 = vmatprep.subr.mxu0 0.0
      %1599 = vmatpush2.msra.mxu0 0.0
      %1600 = vmatprep.subr.mxu0 0.0
      %1601 = vmatpush2.msra.mxu0 0.0
      %1602 = vmatprep.subr.mxu0 0.0
      %1603 = vmatpush2.msra.mxu0 0.0
      %1604 = vmatprep.subr.mxu0 0.0
      %1605 = vmatpush2.msra.mxu0 0.0
      %1606 = vmatprep.subr.mxu0 0.0
      %1607 = vmatpush2.msra.mxu0 0.0
      %1608 = vmatprep.subr.mxu0 0.0
      %1609 = vmatpush2.msra.mxu0 0.0
      %1610 = vmatprep.subr.mxu0 0.0
      %1611 = vmatpush2.msra.mxu0 0.0
      %1612 = vmatprep.subr.mxu0 0.0
      %1613 = vmatpush2.msra.mxu0 0.0
      %1614 = vmatprep.subr.mxu0 0.0
      %1615 = vmatpush2.msra.mxu0 0.0
      %1616 = vmatprep.subr.mxu0 0.0
      %1617 = vmatpush2.msra.mxu0 0.0
      %1618 = vmatprep.subr.mxu0 0.0
      %1619 = vmatpush2.msra.mxu0 0.0
      %1620 = vmatprep.subr.mxu0 0.0
      %1621 = vmatpush2.msra.mxu0 0.0
      %1622 = vmatprep.mubr.f32.mxu0 0.0
      %1623 = vmatmul.mubr.f32.gmra.mxu0 %v1529
      %v1624 = vpop.f32.mrf.mxu0
      %v1625 = vadd.f32 %v1556, %v1624
      %v1626 = vpop.f32.mrf.mxu0
      %1627 = vdwg.mxu0
      %1628 = vst [vmem:[#allocation10] sm:$0xff] %v1625
    $region37: #{tpu_custom_call.1} parent=1 // pred_fallthru
      _
    // Predicated region
    $region38: #{tpu_custom_call.1} parent=1 // pred_check
      _
    $region39: #{tpu_custom_call.1} parent=1 // pred_check_branch
      %1630 = sbr.rel (0) target = $region41
    $region40: #{tpu_custom_call.1} parent=1 // pred_region
      %s1632 = ssub.s32 128, 128
      %1633 = vsyncadd [#allocation6], %s1632
      %s1635 = sshll.u32 [#allocation10], 4
      %s1636 = int_to_ptr.vmem [resolvable:$true] %s1635
      %1638 = dma.vmem_to_hbm [thread:$0]  %s1636, 128, %s4, [#allocation6]
    $region41: #{tpu_custom_call.1} parent=1 // pred_fallthru
      _
    // Predicated region
    $region42: #{tpu_custom_call.1} parent=1 // pred_check
      _
    $region43: #{tpu_custom_call.1} parent=1 // pred_check_branch
      %1640 = sbr.rel (0) target = $region45
    $region44: #{tpu_custom_call.1} parent=1 // pred_region
      %1641 = dma.done [#allocation6], 128
    $region45: #{tpu_custom_call.1} parent=1 // pred_fallthru
      _
    %1642 = vsyncpa [#allocation5], 1
    %1643 = vsyncpa [#allocation8], 1
    %1644 = vsyncpa [#allocation6], 1

// kernel: tpu_custom_call.1
$region0: #{tpu_custom_call.1}
  #allocation0 [shape = 'u32[]', space=smem, size = 0x4, offset = 0x4, fixed_abs, tag = 'smem constant byte address 0x4 - core index']
  #allocation1 [shape = 'u32[144,128]{1,0:T(1,128)}', space=vmem, size = 0x12000, scoped, tag = 'internal scratch']
  #allocation2 [shape = 'f32[8,128]{1,0:T(8,128)}', space=vmem, size = 0x1000, scoped, tag = 'scratch operand']
  #allocation3 [shape = 'f32[8,128]{1,0:T(8,128)}', space=vmem, size = 0x1000, scoped, tag = 'scratch operand']
  %s0 = inlined_call_operand.hbm [shape: f32[8,8,512], index: 0, kind: input, shape index: {}]
  %s1 = inlined_call_operand.hbm [shape: f32[128,512], index: 1, kind: input, shape index: {}]
  %s2 = inlined_call_operand.hbm [shape: f32[128,128], index: 2, kind: input, shape index: {}]
  %s3 = inlined_call_operand.vmem [shape: f32[1,128], index: 3, kind: input, shape index: {}]
  %s4 = inlined_call_operand.hbm [shape: f32[8,128], index: 4, kind: output, shape index: {}]
  %s5 = sld [smem:[#allocation0]]
  $region46: #{tpu_custom_call.1} parent=0
    _
  %s7 = ssub.s32 1, %s5
  %s8 = scalar_select 0, %s7, %s5
  $region1: #{tpu_custom_call.1} parent=0
    #allocation4 [shape = 'u8[131072]{0}', space=vmem, size = 0x20000, scoped, tag = 'input window, operand 0, single buffered']
    #allocation5 [shape = 's32[1]{0}', space=sflag, size = 0x4, scoped, tag = 'scoped memory for tpu_custom_call.1']
    #allocation6 [shape = 's32[1]{0}', space=sflag, size = 0x4, scoped, tag = 'scoped memory for tpu_custom_call.1']
    #allocation7 [shape = 'u8[262144]{0}', space=vmem, size = 0x40000, scoped, tag = 'input window, operand 1, single buffered']
    #allocation8 [shape = 's32[1]{0}', space=sflag, size = 0x4, scoped, tag = 'scoped memory for tpu_custom_call.1']
    #allocation9 [shape = 'u8[65536]{0}', space=vmem, size = 0x10000, scoped, tag = 'input window, operand 2, single buffered']
    #allocation10 [shape = 'u8[4096]{0}', space=vmem, size = 0x1000, scoped, tag = 'output window, operand 0, single buffered']
    %9 = vsyncpa [#allocation5], 0
    %10 = vsyncpa [#allocation8], 0
    %11 = vsyncpa [#allocation6], 0
    // Predicated region
    $region2: #{tpu_custom_call.1} parent=1 // pred_check
      _
    $region3: #{tpu_custom_call.1} parent=1 // pred_check_branch
      %13 = sbr.rel (0) target = $region5
    $region4: #{tpu_custom_call.1} parent=1 // pred_region
      %s15 = ssub.s32 4096, 4096
      %16 = vsyncadd [#allocation5], %s15
      %s17 = sshll.u32 [#allocation4], 4
      %s18 = int_to_ptr.vmem [resolvable:$true] %s17
      %23 = dma.hbm_to_vmem [thread:$0]  %s0, 4096, %s18, [#allocation5], 512, 512, 32
    $region5: #{tpu_custom_call.1} parent=1 // pred_fallthru
      _
    // Predicated region
    $region6: #{tpu_custom_call.1} parent=1 // pred_check
      _
    $region7: #{tpu_custom_call.1} parent=1 // pred_check_branch
      %25 = sbr.rel (0) target = $region9
    $region8: #{tpu_custom_call.1} parent=1 // pred_region
      %s27 = ssub.s32 8192, 8192
      %28 = vsyncadd [#allocation8], %s27
      %s29 = sshll.u32 [#allocation7], 4
      %s30 = int_to_ptr.vmem [resolvable:$true] %s29
      %35 = dma.hbm_to_vmem [thread:$0]  %s1, 8192, %s30, [#allocation8], 512, 512, 32
    $region9: #{tpu_custom_call.1} parent=1 // pred_fallthru
      _
    // Predicated region
    $region10: #{tpu_custom_call.1} parent=1 // pred_check
      _
    $region11: #{tpu_custom_call.1} parent=1 // pred_check_branch
      %37 = sbr.rel (0) target = $region13
    $region12: #{tpu_custom_call.1} parent=1 // pred_region
      %s39 = ssub.s32 2048, 2048
      %40 = vsyncadd [#allocation8], %s39
      %s41 = sshll.u32 [#allocation9], 4
      %s42 = int_to_ptr.vmem [resolvable:$true] %s41
      %47 = dma.hbm_to_vmem [thread:$0]  %s2, 2048, %s42, [#allocation8], 128, 128, 8
    $region13: #{tpu_custom_call.1} parent=1 // pred_fallthru
      _
    // Predicated region
    $region14: #{tpu_custom_call.1} parent=1 // pred_check
      _
    $region15: #{tpu_custom_call.1} parent=1 // pred_check_branch
      %49 = sbr.rel (0) target = $region17
    $region16: #{tpu_custom_call.1} parent=1 // pred_region
      _
    $region17: #{tpu_custom_call.1} parent=1 // pred_fallthru
      _
    // Predicated region
    $region18: #{tpu_custom_call.1} parent=1 // pred_check
      _
    $region19: #{tpu_custom_call.1} parent=1 // pred_check_branch
      %51 = sbr.rel (0) target = $region21
    $region20: #{tpu_custom_call.1} parent=1 // pred_region
      %52 = dma.done [#allocation5], 4096
    $region21: #{tpu_custom_call.1} parent=1 // pred_fallthru
      _
    // Predicated region
    $region22: #{tpu_custom_call.1} parent=1 // pred_check
      _
    $region23: #{tpu_custom_call.1} parent=1 // pred_check_branch
      %54 = sbr.rel (0) target = $region25
    $region24: #{tpu_custom_call.1} parent=1 // pred_region
      %55 = dma.done [#allocation8], 8192
    $region25: #{tpu_custom_call.1} parent=1 // pred_fallthru
      _
    // Predicated region
    $region26: #{tpu_custom_call.1} parent=1 // pred_check
      _
    $region27: #{tpu_custom_call.1} parent=1 // pred_check_branch
      %57 = sbr.rel (0) target = $region29
    $region28: #{tpu_custom_call.1} parent=1 // pred_region
      %58 = dma.done [#allocation8], 2048
    $region29: #{tpu_custom_call.1} parent=1 // pred_fallthru
      _
    %p59 = scmp.eq.s32.totalorder 0, 0
    // Predicated region
    $region30: #{tpu_custom_call.1} parent=1 // pred_check
      %p60 = pneg %p59
    $region31: #{tpu_custom_call.1} parent=1 // pred_check_branch
      %62 = sbr.rel (%p60) target = $region33
    $region32: #{tpu_custom_call.1} parent=1 // pred_region
      %63 = vst [vmem:[#allocation2] sm:$0xff] 0.0
      %64 = vst [vmem:[#allocation3] sm:$0xff] 0.0
    $region33: #{tpu_custom_call.1} parent=1 // pred_fallthru
      _
    %v65 = vld [vmem:[#allocation2] sm:$0xff]
    %v66 = vld [vmem:[#allocation3] sm:$0xff]
    %v67 = vld [vmem:[#allocation4] sm:$0xff]
    %v68 = vld [vmem:[#allocation4 + $0x8] sm:$0xff]
    %v69 = vld [vmem:[#allocation4 + $0x10] sm:$0xff]
    %v70 = vld [vmem:[#allocation4 + $0x18] sm:$0xff]
    %v71 = vld [vmem:[#allocation7] sm:$0xff]
    %v72 = vld [vmem:[#allocation7 + $0x8] sm:$0xff]
    %v73 = vld [vmem:[#allocation7 + $0x10] sm:$0xff]
    %v74 = vld [vmem:[#allocation7 + $0x18] sm:$0xff]
    %v75 = vld [vmem:[#allocation7 + $0x20] sm:$0xff]
    %v76 = vld [vmem:[#allocation7 + $0x28] sm:$0xff]
    %v77 = vld [vmem:[#allocation7 + $0x30] sm:$0xff]
    %v78 = vld [vmem:[#allocation7 + $0x38] sm:$0xff]
    %v79 = vld [vmem:[#allocation7 + $0x40] sm:$0xff]
    %v80 = vld [vmem:[#allocation7 + $0x48] sm:$0xff]
    %v81 = vld [vmem:[#allocation7 + $0x50] sm:$0xff]
    %v82 = vld [vmem:[#allocation7 + $0x58] sm:$0xff]
    %v83 = vld [vmem:[#allocation7 + $0x60] sm:$0xff]
    %v84 = vld [vmem:[#allocation7 + $0x68] sm:$0xff]
    %v85 = vld [vmem:[#allocation7 + $0x70] sm:$0xff]
    %v86 = vld [vmem:[#allocation7 + $0x78] sm:$0xff]
    %v87 = vld [vmem:[#allocation7 + $0x80] sm:$0xff]
    %v88 = vld [vmem:[#allocation7 + $0x88] sm:$0xff]
    %v89 = vld [vmem:[#allocation7 + $0x90] sm:$0xff]
    %v90 = vld [vmem:[#allocation7 + $0x98] sm:$0xff]
    %v91 = vld [vmem:[#allocation7 + $0xa0] sm:$0xff]
    %v92 = vld [vmem:[#allocation7 + $0xa8] sm:$0xff]
    %v93 = vld [vmem:[#allocation7 + $0xb0] sm:$0xff]
    %v94 = vld [vmem:[#allocation7 + $0xb8] sm:$0xff]
    %v95 = vld [vmem:[#allocation7 + $0xc0] sm:$0xff]
    %v96 = vld [vmem:[#allocation7 + $0xc8] sm:$0xff]
    %v97 = vld [vmem:[#allocation7 + $0xd0] sm:$0xff]
    %v98 = vld [vmem:[#allocation7 + $0xd8] sm:$0xff]
    %v99 = vld [vmem:[#allocation7 + $0xe0] sm:$0xff]
    %v100 = vld [vmem:[#allocation7 + $0xe8] sm:$0xff]
    %v101 = vld [vmem:[#allocation7 + $0xf0] sm:$0xff]
    %v102 = vld [vmem:[#allocation7 + $0xf8] sm:$0xff]
    %v103 = vld [vmem:[#allocation7 + $0x100] sm:$0xff]
    %v104 = vld [vmem:[#allocation7 + $0x108] sm:$0xff]
    %v105 = vld [vmem:[#allocation7 + $0x110] sm:$0xff]
    %v106 = vld [vmem:[#allocation7 + $0x118] sm:$0xff]
    %v107 = vld [vmem:[#allocation7 + $0x120] sm:$0xff]
    %v108 = vld [vmem:[#allocation7 + $0x128] sm:$0xff]
    %v109 = vld [vmem:[#allocation7 + $0x130] sm:$0xff]
    %v110 = vld [vmem:[#allocation7 + $0x138] sm:$0xff]
    %v111 = vld [vmem:[#allocation7 + $0x140] sm:$0xff]
    %v112 = vld [vmem:[#allocation7 + $0x148] sm:$0xff]
    %v113 = vld [vmem:[#allocation7 + $0x150] sm:$0xff]
    %v114 = vld [vmem:[#allocation7 + $0x158] sm:$0xff]
    %v115 = vld [vmem:[#allocation7 + $0x160] sm:$0xff]
    %v116 = vld [vmem:[#allocation7 + $0x168] sm:$0xff]
    %v117 = vld [vmem:[#allocation7 + $0x170] sm:$0xff]
    %v118 = vld [vmem:[#allocation7 + $0x178] sm:$0xff]
    %v119 = vld [vmem:[#allocation7 + $0x180] sm:$0xff]
    %v120 = vld [vmem:[#allocation7 + $0x188] sm:$0xff]
    %v121 = vld [vmem:[#allocation7 + $0x190] sm:$0xff]
    %v122 = vld [vmem:[#allocation7 + $0x198] sm:$0xff]
    %v123 = vld [vmem:[#allocation7 + $0x1a0] sm:$0xff]
    %v124 = vld [vmem:[#allocation7 + $0x1a8] sm:$0xff]
    %v125 = vld [vmem:[#allocation7 + $0x1b0] sm:$0xff]
    %v126 = vld [vmem:[#allocation7 + $0x1b8] sm:$0xff]
    %v127 = vld [vmem:[#allocation7 + $0x1c0] sm:$0xff]
    %v128 = vld [vmem:[#allocation7 + $0x1c8] sm:$0xff]
    %v129 = vld [vmem:[#allocation7 + $0x1d0] sm:$0xff]
    %v130 = vld [vmem:[#allocation7 + $0x1d8] sm:$0xff]
    %v131 = vld [vmem:[#allocation7 + $0x1e0] sm:$0xff]
    %v132 = vld [vmem:[#allocation7 + $0x1e8] sm:$0xff]
    %v133 = vld [vmem:[#allocation7 + $0x1f0] sm:$0xff]
    %v134 = vld [vmem:[#allocation7 + $0x1f8] sm:$0xff]
    %135 = vmatprep.subr.mxu0 %v132
    %136 = vmatpush1.msra.mxu0 %v131
    %137 = vmatprep.subr.mxu0 %v128
    %138 = vmatpush1.msra.mxu0 %v127
    %139 = vmatprep.subr.mxu0 %v124
    %140 = vmatpush1.msra.mxu0 %v123
    %141 = vmatprep.subr.mxu0 %v120
    %142 = vmatpush1.msra.mxu0 %v119
    %143 = vmatprep.subr.mxu0 %v116
    %144 = vmatpush1.msra.mxu0 %v115
    %145 = vmatprep.subr.mxu0 %v112
    %146 = vmatpush1.msra.mxu0 %v111
    %147 = vmatprep.subr.mxu0 %v108
    %148 = vmatpush1.msra.mxu0 %v107
    %149 = vmatprep.subr.mxu0 %v104
    %150 = vmatpush1.msra.mxu0 %v103
    %151 = vmatprep.subr.mxu0 %v100
    %152 = vmatpush1.msra.mxu0 %v99
    %153 = vmatprep.subr.mxu0 %v96
    %154 = vmatpush1.msra.mxu0 %v95
    %155 = vmatprep.subr.mxu0 %v92
    %156 = vmatpush1.msra.mxu0 %v91
    %157 = vmatprep.subr.mxu0 %v88
    %158 = vmatpush1.msra.mxu0 %v87
    %159 = vmatprep.subr.mxu0 %v84
    %160 = vmatpush1.msra.mxu0 %v83
    %161 = vmatprep.subr.mxu0 %v80
    %162 = vmatpush1.msra.mxu0 %v79
    %163 = vmatprep.subr.mxu0 %v76
    %164 = vmatpush1.msra.mxu0 %v75
    %165 = vmatprep.subr.mxu0 %v72
    %166 = vmatpush1.msra.mxu0 %v71
    %167 = vmatprep.subr.mxu0 0.0
    %168 = vmatpush2.msra.mxu0 0.0
    %169 = vmatprep.subr.mxu0 0.0
    %170 = vmatpush2.msra.mxu0 0.0
    %171 = vmatprep.subr.mxu0 0.0
    %172 = vmatpush2.msra.mxu0 0.0
    %173 = vmatprep.subr.mxu0 0.0
    %174 = vmatpush2.msra.mxu0 0.0
    %175 = vmatprep.subr.mxu0 0.0
    %176 = vmatpush2.msra.mxu0 0.0
    %177 = vmatprep.subr.mxu0 0.0
    %178 = vmatpush2.msra.mxu0 0.0
    %179 = vmatprep.subr.mxu0 0.0
    %180 = vmatpush2.msra.mxu0 0.0
    %181 = vmatprep.subr.mxu0 0.0
    %182 = vmatpush2.msra.mxu0 0.0
    %183 = vmatprep.subr.mxu0 0.0
    %184 = vmatpush2.msra.mxu0 0.0
    %185 = vmatprep.subr.mxu0 0.0
    %186 = vmatpush2.msra.mxu0 0.0
    %187 = vmatprep.subr.mxu0 0.0
    %188 = vmatpush2.msra.mxu0 0.0
    %189 = vmatprep.subr.mxu0 0.0
    %190 = vmatpush2.msra.mxu0 0.0
    %191 = vmatprep.subr.mxu0 0.0
    %192 = vmatpush2.msra.mxu0 0.0
    %193 = vmatprep.subr.mxu0 0.0
    %194 = vmatpush2.msra.mxu0 0.0
    %195 = vmatprep.subr.mxu0 0.0
    %196 = vmatpush2.msra.mxu0 0.0
    %197 = vmatprep.subr.mxu0 0.0
    %198 = vmatpush2.msra.mxu0 0.0
    %199 = vmatprep.mubr.f32.mxu0 0.0
    %200 = vmatmul.mubr.f32.gmra.mxu0 %v65
    %v201 = vpop.f32.mrf.mxu0
    %v202 = vadd.f32 0.0, %v201
    %v203 = vpop.f32.mrf.mxu0
    %v204 = vadd.f32 0.0, %v203
    %205 = vdwg.mxu0
    %206 = vmatprep.subr.mxu0 %v134
    %207 = vmatpush1.msra.mxu0 %v133
    %208 = vmatprep.subr.mxu0 %v130
    %209 = vmatpush1.msra.mxu0 %v129
    %210 = vmatprep.subr.mxu0 %v126
    %211 = vmatpush1.msra.mxu0 %v125
    %212 = vmatprep.subr.mxu0 %v122
    %213 = vmatpush1.msra.mxu0 %v121
    %214 = vmatprep.subr.mxu0 %v118
    %215 = vmatpush1.msra.mxu0 %v117
    %216 = vmatprep.subr.mxu0 %v114
    %217 = vmatpush1.msra.mxu0 %v113
    %218 = vmatprep.subr.mxu0 %v110
    %219 = vmatpush1.msra.mxu0 %v109
    %220 = vmatprep.subr.mxu0 %v106
    %221 = vmatpush1.msra.mxu0 %v105
    %222 = vmatprep.subr.mxu0 %v102
    %223 = vmatpush1.msra.mxu0 %v101
    %224 = vmatprep.subr.mxu0 %v98
    %225 = vmatpush1.msra.mxu0 %v97
    %226 = vmatprep.subr.mxu0 %v94
    %227 = vmatpush1.msra.mxu0 %v93
    %228 = vmatprep.subr.mxu0 %v90
    %229 = vmatpush1.msra.mxu0 %v89
    %230 = vmatprep.subr.mxu0 %v86
    %231 = vmatpush1.msra.mxu0 %v85
    %232 = vmatprep.subr.mxu0 %v82
    %233 = vmatpush1.msra.mxu0 %v81
    %234 = vmatprep.subr.mxu0 %v78
    %235 = vmatpush1.msra.mxu0 %v77
    %236 = vmatprep.subr.mxu0 %v74
    %237 = vmatpush1.msra.mxu0 %v73
    %238 = vmatprep.subr.mxu0 0.0
    %239 = vmatpush2.msra.mxu0 0.0
    %240 = vmatprep.subr.mxu0 0.0
    %241 = vmatpush2.msra.mxu0 0.0
    %242 = vmatprep.subr.mxu0 0.0
    %243 = vmatpush2.msra.mxu0 0.0
    %244 = vmatprep.subr.mxu0 0.0
    %245 = vmatpush2.msra.mxu0 0.0
    %246 = vmatprep.subr.mxu0 0.0
    %247 = vmatpush2.msra.mxu0 0.0
    %248 = vmatprep.subr.mxu0 0.0
    %249 = vmatpush2.msra.mxu0 0.0
    %250 = vmatprep.subr.mxu0 0.0
    %251 = vmatpush2.msra.mxu0 0.0
    %252 = vmatprep.subr.mxu0 0.0
    %253 = vmatpush2.msra.mxu0 0.0
    %254 = vmatprep.subr.mxu0 0.0
    %255 = vmatpush2.msra.mxu0 0.0
    %256 = vmatprep.subr.mxu0 0.0
    %257 = vmatpush2.msra.mxu0 0.0
    %258 = vmatprep.subr.mxu0 0.0
    %259 = vmatpush2.msra.mxu0 0.0
    %260 = vmatprep.subr.mxu0 0.0
    %261 = vmatpush2.msra.mxu0 0.0
    %262 = vmatprep.subr.mxu0 0.0
    %263 = vmatpush2.msra.mxu0 0.0
    %264 = vmatprep.subr.mxu0 0.0
    %265 = vmatpush2.msra.mxu0 0.0
    %266 = vmatprep.subr.mxu0 0.0
    %267 = vmatpush2.msra.mxu0 0.0
    %268 = vmatprep.subr.mxu0 0.0
    %269 = vmatpush2.msra.mxu0 0.0
    %270 = vmatprep.mubr.f32.mxu0 0.0
    %271 = vmatmul.mubr.f32.gmra.mxu0 %v65
    %v272 = vpop.f32.mrf.mxu0
    %v273 = vadd.f32 0.0, %v272
    %v274 = vpop.f32.mrf.mxu0
    %v275 = vadd.f32 0.0, %v274
    %276 = vdwg.mxu0
    %v277 = vadd.f32 %v67, %v202
    %v278 = vadd.f32 %v68, %v204
    %v279 = vadd.f32 %v69, %v273
    %v280 = vadd.f32 %v70, %v275
    %v281 = vxor.u32 %v277, 2147483648
    %v282 = vxor.u32 %v278, 2147483648
    %v283 = vmul.f32 %v281, 1.442695
    %v284 = vpow.pop %v283
    %v285 = vmul.f32 %v282, 1.442695
    %v286 = vpow.pop %v285
    %v287 = vadd.f32 %v284, 1.0
    %v288 = vadd.f32 %v286, 1.0
    %v289 = vrcp.pop %v287
    %v290 = vmul.f32 1.0, %v289
    %v291 = vrcp.pop %v288
    %v292 = vmul.f32 1.0, %v291
    %v293 = vtanh.pop %v279
    %v294 = vxor.u32 %v280, 2147483648
    %v295 = vmul.f32 %v294, 1.442695
    %v296 = vpow.pop %v295
    %v297 = vadd.f32 %v296, 1.0
    %v298 = vrcp.pop %v297
    %v299 = vmul.f32 1.0, %v298
    %v300 = vmul.f32 %v292, %v66
    %v301 = vmul.f32 %v290, %v293
    %v302 = vadd.f32 %v300, %v301
    %v303 = vtanh.pop %v302
    %v304 = vmul.f32 %v299, %v303
    %s305 = scalar_lea.vmem [#allocation4], 32
    %v306 = vld [vmem:[%s305] sm:$0xff]
    %v307 = vld [vmem:[%s305 + $0x8] sm:$0xff]
    %v308 = vld [vmem:[%s305 + $0x10] sm:$0xff]
    %v309 = vld [vmem:[%s305 + $0x18] sm:$0xff]
    %310 = vmatprep.subr.mxu0 %v132
    %311 = vmatpush1.msra.mxu0 %v131
    %312 = vmatprep.subr.mxu0 %v128
    %313 = vmatpush1.msra.mxu0 %v127
    %314 = vmatprep.subr.mxu0 %v124
    %315 = vmatpush1.msra.mxu0 %v123
    %316 = vmatprep.subr.mxu0 %v120
    %317 = vmatpush1.msra.mxu0 %v119
    %318 = vmatprep.subr.mxu0 %v116
    %319 = vmatpush1.msra.mxu0 %v115
    %320 = vmatprep.subr.mxu0 %v112
    %321 = vmatpush1.msra.mxu0 %v111
    %322 = vmatprep.subr.mxu0 %v108
    %323 = vmatpush1.msra.mxu0 %v107
    %324 = vmatprep.subr.mxu0 %v104
    %325 = vmatpush1.msra.mxu0 %v103
    %326 = vmatprep.subr.mxu0 %v100
    %327 = vmatpush1.msra.mxu0 %v99
    %328 = vmatprep.subr.mxu0 %v96
    %329 = vmatpush1.msra.mxu0 %v95
    %330 = vmatprep.subr.mxu0 %v92
    %331 = vmatpush1.msra.mxu0 %v91
    %332 = vmatprep.subr.mxu0 %v88
    %333 = vmatpush1.msra.mxu0 %v87
    %334 = vmatprep.subr.mxu0 %v84
    %335 = vmatpush1.msra.mxu0 %v83
    %336 = vmatprep.subr.mxu0 %v80
    %337 = vmatpush1.msra.mxu0 %v79
    %338 = vmatprep.subr.mxu0 %v76
    %339 = vmatpush1.msra.mxu0 %v75
    %340 = vmatprep.subr.mxu0 %v72
    %341 = vmatpush1.msra.mxu0 %v71
    %342 = vmatprep.subr.mxu0 0.0
    %343 = vmatpush2.msra.mxu0 0.0
    %344 = vmatprep.subr.mxu0 0.0
    %345 = vmatpush2.msra.mxu0 0.0
    %346 = vmatprep.subr.mxu0 0.0
    %347 = vmatpush2.msra.mxu0 0.0
    %348 = vmatprep.subr.mxu0 0.0
    %349 = vmatpush2.msra.mxu0 0.0
    %350 = vmatprep.subr.mxu0 0.0
    %351 = vmatpush2.msra.mxu0 0.0
    %352 = vmatprep.subr.mxu0 0.0
    %353 = vmatpush2.msra.mxu0 0.0
    %354 = vmatprep.subr.mxu0 0.0
    %355 = vmatpush2.msra.mxu0 0.0
    %356 = vmatprep.subr.mxu0 0.0
    %357 = vmatpush2.msra.mxu0 0.0
    %358 = vmatprep.subr.mxu0 0.0
    %359 = vmatpush2.msra.mxu0 0.0
    %360 = vmatprep.subr.mxu0 0.0
    %361 = vmatpush2.msra.mxu0 0.0
    %362 = vmatprep.subr.mxu0 0.0
    %363 = vmatpush2.msra.mxu0 0.0
    %364 = vmatprep.subr.mxu0 0.0
    %365 = vmatpush2.msra.mxu0 0.0
    %366 = vmatprep.subr.mxu0 0.0
    %367 = vmatpush2.msra.mxu0 0.0
    %368 = vmatprep.subr.mxu0 0.0
    %369 = vmatpush2.msra.mxu0 0.0
    %370 = vmatprep.subr.mxu0 0.0
    %371 = vmatpush2.msra.mxu0 0.0
    %372 = vmatprep.subr.mxu0 0.0
    %373 = vmatpush2.msra.mxu0 0.0
    %374 = vmatprep.mubr.f32.mxu0 0.0
    %375 = vmatmul.mubr.f32.gmra.mxu0 %v304
    %v376 = vpop.f32.mrf.mxu0
    %v377 = vadd.f32 0.0, %v376
    %v378 = vpop.f32.mrf.mxu0
    %v379 = vadd.f32 0.0, %v378
    %380 = vdwg.mxu0
    %381 = vmatprep.subr.mxu0 %v134
    %382 = vmatpush1.msra.mxu0 %v133
    %383 = vmatprep.subr.mxu0 %v130
    %384 = vmatpush1.msra.mxu0 %v129
    %385 = vmatprep.subr.mxu0 %v126
    %386 = vmatpush1.msra.mxu0 %v125
    %387 = vmatprep.subr.mxu0 %v122
    %388 = vmatpush1.msra.mxu0 %v121
    %389 = vmatprep.subr.mxu0 %v118
    %390 = vmatpush1.msra.mxu0 %v117
    %391 = vmatprep.subr.mxu0 %v114
    %392 = vmatpush1.msra.mxu0 %v113
    %393 = vmatprep.subr.mxu0 %v110
    %394 = vmatpush1.msra.mxu0 %v109
    %395 = vmatprep.subr.mxu0 %v106
    %396 = vmatpush1.msra.mxu0 %v105
    %397 = vmatprep.subr.mxu0 %v102
    %398 = vmatpush1.msra.mxu0 %v101
    %399 = vmatprep.subr.mxu0 %v98
    %400 = vmatpush1.msra.mxu0 %v97
    %401 = vmatprep.subr.mxu0 %v94
    %402 = vmatpush1.msra.mxu0 %v93
    %403 = vmatprep.subr.mxu0 %v90
    %404 = vmatpush1.msra.mxu0 %v89
    %405 = vmatprep.subr.mxu0 %v86
    %406 = vmatpush1.msra.mxu0 %v85
    %407 = vmatprep.subr.mxu0 %v82
    %408 = vmatpush1.msra.mxu0 %v81
    %409 = vmatprep.subr.mxu0 %v78
    %410 = vmatpush1.msra.mxu0 %v77
    %411 = vmatprep.subr.mxu0 %v74
    %412 = vmatpush1.msra.mxu0 %v73
    %413 = vmatprep.subr.mxu0 0.0
    %414 = vmatpush2.msra.mxu0 0.0
    %415 = vmatprep.subr.mxu0 0.0
    %416 = vmatpush2.msra.mxu0 0.0
    %417 = vmatprep.subr.mxu0 0.0
    %418 = vmatpush2.msra.mxu0 0.0
    %419 = vmatprep.subr.mxu0 0.0
    %420 = vmatpush2.msra.mxu0 0.0
    %421 = vmatprep.subr.mxu0 0.0
    %422 = vmatpush2.msra.mxu0 0.0
    %423 = vmatprep.subr.mxu0 0.0
    %424 = vmatpush2.msra.mxu0 0.0
    %425 = vmatprep.subr.mxu0 0.0
    %426 = vmatpush2.msra.mxu0 0.0
    %427 = vmatprep.subr.mxu0 0.0
    %428 = vmatpush2.msra.mxu0 0.0
    %429 = vmatprep.subr.mxu0 0.0
    %430 = vmatpush2.msra.mxu0 0.0
    %431 = vmatprep.subr.mxu0 0.0
    %432 = vmatpush2.msra.mxu0 0.0
    %433 = vmatprep.subr.mxu0 0.0
    %434 = vmatpush2.msra.mxu0 0.0
    %435 = vmatprep.subr.mxu0 0.0
    %436 = vmatpush2.msra.mxu0 0.0
    %437 = vmatprep.subr.mxu0 0.0
    %438 = vmatpush2.msra.mxu0 0.0
    %439 = vmatprep.subr.mxu0 0.0
    %440 = vmatpush2.msra.mxu0 0.0
    %441 = vmatprep.subr.mxu0 0.0
    %442 = vmatpush2.msra.mxu0 0.0
    %443 = vmatprep.subr.mxu0 0.0
    %444 = vmatpush2.msra.mxu0 0.0
    %445 = vmatprep.mubr.f32.mxu0 0.0
    %446 = vmatmul.mubr.f32.gmra.mxu0 %v304
    %v447 = vpop.f32.mrf.mxu0
    %v448 = vadd.f32 0.0, %v447
    %v449 = vpop.f32.mrf.mxu0
    %v450 = vadd.f32 0.0, %v449
    %451 = vdwg.mxu0
    %v452 = vadd.f32 %v306, %v377
    %v453 = vadd.f32 %v307, %v379
    %v454 = vadd.f32 %v308, %v448
    %v455 = vadd.f32 %v309, %v450
    %v456 = vxor.u32 %v452, 2147483648
    %v457 = vxor.u32 %v453, 2147483648
    %v458 = vmul.f32 %v456, 1.442695
    %v459 = vpow.pop %v458
    %v460 = vmul.f32 %v457, 1.442695
    %v461 = vpow.pop %v460
    %v462 = vadd.f32 %v459, 1.0
    %v463 = vadd.f32 %v461, 1.0
    %v464 = vrcp.pop %v462
    %v465 = vmul.f32 1.0, %v464
    %v466 = vrcp.pop %v463
    %v467 = vmul.f32 1.0, %v466
    %v468 = vtanh.pop %v454
    %v469 = vxor.u32 %v455, 2147483648
    %v470 = vmul.f32 %v469, 1.442695
    %v471 = vpow.pop %v470
    %v472 = vadd.f32 %v471, 1.0
    %v473 = vrcp.pop %v472
    %v474 = vmul.f32 1.0, %v473
    %v475 = vmul.f32 %v467, %v302
    %v476 = vmul.f32 %v465, %v468
    %v477 = vadd.f32 %v475, %v476
    %v478 = vtanh.pop %v477
    %v479 = vmul.f32 %v474, %v478
    %s480 = scalar_lea.vmem [#allocation4], 64
    %v481 = vld [vmem:[%s480] sm:$0xff]
    %v482 = vld [vmem:[%s480 + $0x8] sm:$0xff]
    %v483 = vld [vmem:[%s480 + $0x10] sm:$0xff]
    %v484 = vld [vmem:[%s480 + $0x18] sm:$0xff]
    %485 = vmatprep.subr.mxu0 %v132
    %486 = vmatpush1.msra.mxu0 %v131
    %487 = vmatprep.subr.mxu0 %v128
    %488 = vmatpush1.msra.mxu0 %v127
    %489 = vmatprep.subr.mxu0 %v124
    %490 = vmatpush1.msra.mxu0 %v123
    %491 = vmatprep.subr.mxu0 %v120
    %492 = vmatpush1.msra.mxu0 %v119
    %493 = vmatprep.subr.mxu0 %v116
    %494 = vmatpush1.msra.mxu0 %v115
    %495 = vmatprep.subr.mxu0 %v112
    %496 = vmatpush1.msra.mxu0 %v111
    %497 = vmatprep.subr.mxu0 %v108
    %498 = vmatpush1.msra.mxu0 %v107
    %499 = vmatprep.subr.mxu0 %v104
    %500 = vmatpush1.msra.mxu0 %v103
    %501 = vmatprep.subr.mxu0 %v100
    %502 = vmatpush1.msra.mxu0 %v99
    %503 = vmatprep.subr.mxu0 %v96
    %504 = vmatpush1.msra.mxu0 %v95
    %505 = vmatprep.subr.mxu0 %v92
    %506 = vmatpush1.msra.mxu0 %v91
    %507 = vmatprep.subr.mxu0 %v88
    %508 = vmatpush1.msra.mxu0 %v87
    %509 = vmatprep.subr.mxu0 %v84
    %510 = vmatpush1.msra.mxu0 %v83
    %511 = vmatprep.subr.mxu0 %v80
    %512 = vmatpush1.msra.mxu0 %v79
    %513 = vmatprep.subr.mxu0 %v76
    %514 = vmatpush1.msra.mxu0 %v75
    %515 = vmatprep.subr.mxu0 %v72
    %516 = vmatpush1.msra.mxu0 %v71
    %517 = vmatprep.subr.mxu0 0.0
    %518 = vmatpush2.msra.mxu0 0.0
    %519 = vmatprep.subr.mxu0 0.0
    %520 = vmatpush2.msra.mxu0 0.0
    %521 = vmatprep.subr.mxu0 0.0
    %522 = vmatpush2.msra.mxu0 0.0
    %523 = vmatprep.subr.mxu0 0.0
    %524 = vmatpush2.msra.mxu0 0.0
    %525 = vmatprep.subr.mxu0 0.0
    %526 = vmatpush2.msra.mxu0 0.0
    %527 = vmatprep.subr.mxu0 0.0
    %528 = vmatpush2.msra.mxu0 0.0
    %529 = vmatprep.subr.mxu0 0.0
    %530 = vmatpush2.msra.mxu0 0.0
    %531 = vmatprep.subr.mxu0 0.0
    %532 = vmatpush2.msra.mxu0 0.0
    %533 = vmatprep.subr.mxu0 0.0
    %534 = vmatpush2.msra.mxu0 0.0
    %535 = vmatprep.subr.mxu0 0.0
    %536 = vmatpush2.msra.mxu0 0.0
    %537 = vmatprep.subr.mxu0 0.0
    %538 = vmatpush2.msra.mxu0 0.0
    %539 = vmatprep.subr.mxu0 0.0
    %540 = vmatpush2.msra.mxu0 0.0
    %541 = vmatprep.subr.mxu0 0.0
    %542 = vmatpush2.msra.mxu0 0.0
    %543 = vmatprep.subr.mxu0 0.0
    %544 = vmatpush2.msra.mxu0 0.0
    %545 = vmatprep.subr.mxu0 0.0
    %546 = vmatpush2.msra.mxu0 0.0
    %547 = vmatprep.subr.mxu0 0.0
    %548 = vmatpush2.msra.mxu0 0.0
    %549 = vmatprep.mubr.f32.mxu0 0.0
    %550 = vmatmul.mubr.f32.gmra.mxu0 %v479
    %v551 = vpop.f32.mrf.mxu0
    %v552 = vadd.f32 0.0, %v551
    %v553 = vpop.f32.mrf.mxu0
    %v554 = vadd.f32 0.0, %v553
    %555 = vdwg.mxu0
    %556 = vmatprep.subr.mxu0 %v134
    %557 = vmatpush1.msra.mxu0 %v133
    %558 = vmatprep.subr.mxu0 %v130
    %559 = vmatpush1.msra.mxu0 %v129
    %560 = vmatprep.subr.mxu0 %v126
    %561 = vmatpush1.msra.mxu0 %v125
    %562 = vmatprep.subr.mxu0 %v122
    %563 = vmatpush1.msra.mxu0 %v121
    %564 = vmatprep.subr.mxu0 %v118
    %565 = vmatpush1.msra.mxu0 %v117
    %566 = vmatprep.subr.mxu0 %v114
    %567 = vmatpush1.msra.mxu0 %v113
    %568 = vmatprep.subr.mxu0 %v110
    %569 = vmatpush1.msra.mxu0 %v109
    %570 = vmatprep.subr.mxu0 %v106
    %571 = vmatpush1.msra.mxu0 %v105
    %572 = vmatprep.subr.mxu0 %v102
    %573 = vmatpush1.msra.mxu0 %v101
    %574 = vmatprep.subr.mxu0 %v98
    %575 = vmatpush1.msra.mxu0 %v97
    %576 = vmatprep.subr.mxu0 %v94
    %577 = vmatpush1.msra.mxu0 %v93
    %578 = vmatprep.subr.mxu0 %v90
    %579 = vmatpush1.msra.mxu0 %v89
    %580 = vmatprep.subr.mxu0 %v86
    %581 = vmatpush1.msra.mxu0 %v85
    %582 = vmatprep.subr.mxu0 %v82
    %583 = vmatpush1.msra.mxu0 %v81
    %584 = vmatprep.subr.mxu0 %v78
    %585 = vmatpush1.msra.mxu0 %v77
    %586 = vmatprep.subr.mxu0 %v74
    %587 = vmatpush1.msra.mxu0 %v73
    %588 = vmatprep.subr.mxu0 0.0
    %589 = vmatpush2.msra.mxu0 0.0
    %590 = vmatprep.subr.mxu0 0.0
    %591 = vmatpush2.msra.mxu0 0.0
    %592 = vmatprep.subr.mxu0 0.0
    %593 = vmatpush2.msra.mxu0 0.0
    %594 = vmatprep.subr.mxu0 0.0
    %595 = vmatpush2.msra.mxu0 0.0
    %596 = vmatprep.subr.mxu0 0.0
    %597 = vmatpush2.msra.mxu0 0.0
    %598 = vmatprep.subr.mxu0 0.0
    %599 = vmatpush2.msra.mxu0 0.0
    %600 = vmatprep.subr.mxu0 0.0
    %601 = vmatpush2.msra.mxu0 0.0
    %602 = vmatprep.subr.mxu0 0.0
    %603 = vmatpush2.msra.mxu0 0.0
    %604 = vmatprep.subr.mxu0 0.0
    %605 = vmatpush2.msra.mxu0 0.0
    %606 = vmatprep.subr.mxu0 0.0
    %607 = vmatpush2.msra.mxu0 0.0
    %608 = vmatprep.subr.mxu0 0.0
    %609 = vmatpush2.msra.mxu0 0.0
    %610 = vmatprep.subr.mxu0 0.0
    %611 = vmatpush2.msra.mxu0 0.0
    %612 = vmatprep.subr.mxu0 0.0
    %613 = vmatpush2.msra.mxu0 0.0
    %614 = vmatprep.subr.mxu0 0.0
    %615 = vmatpush2.msra.mxu0 0.0
    %616 = vmatprep.subr.mxu0 0.0
    %617 = vmatpush2.msra.mxu0 0.0
    %618 = vmatprep.subr.mxu0 0.0
    %619 = vmatpush2.msra.mxu0 0.0
    %620 = vmatprep.mubr.f32.mxu0 0.0
    %621 = vmatmul.mubr.f32.gmra.mxu0 %v479
    %v622 = vpop.f32.mrf.mxu0
    %v623 = vadd.f32 0.0, %v622
    %v624 = vpop.f32.mrf.mxu0
    %v625 = vadd.f32 0.0, %v624
    %626 = vdwg.mxu0
    %v627 = vadd.f32 %v481, %v552
    %v628 = vadd.f32 %v482, %v554
    %v629 = vadd.f32 %v483, %v623
    %v630 = vadd.f32 %v484, %v625
    %v631 = vxor.u32 %v627, 2147483648
    %v632 = vxor.u32 %v628, 2147483648
    %v633 = vmul.f32 %v631, 1.442695
    %v634 = vpow.pop %v633
    %v635 = vmul.f32 %v632, 1.442695
    %v636 = vpow.pop %v635
    %v637 = vadd.f32 %v634, 1.0
    %v638 = vadd.f32 %v636, 1.0
    %v639 = vrcp.pop %v637
    %v640 = vmul.f32 1.0, %v639
    %v641 = vrcp.pop %v638
    %v642 = vmul.f32 1.0, %v641
    %v643 = vtanh.pop %v629
    %v644 = vxor.u32 %v630, 2147483648
    %v645 = vmul.f32 %v644, 1.442695
    %v646 = vpow.pop %v645
    %v647 = vadd.f32 %v646, 1.0
    %v648 = vrcp.pop %v647
    %v649 = vmul.f32 1.0, %v648
    %v650 = vmul.f32 %v642, %v477
    %v651 = vmul.f32 %v640, %v643
    %v652 = vadd.f32 %v650, %v651
    %v653 = vtanh.pop %v652
    %v654 = vmul.f32 %v649, %v653
    %s655 = scalar_lea.vmem [#allocation4], 96
    %v656 = vld [vmem:[%s655] sm:$0xff]
    %v657 = vld [vmem:[%s655 + $0x8] sm:$0xff]
    %v658 = vld [vmem:[%s655 + $0x10] sm:$0xff]
    %v659 = vld [vmem:[%s655 + $0x18] sm:$0xff]
    %660 = vmatprep.subr.mxu0 %v132
    %661 = vmatpush1.msra.mxu0 %v131
    %662 = vmatprep.subr.mxu0 %v128
    %663 = vmatpush1.msra.mxu0 %v127
    %664 = vmatprep.subr.mxu0 %v124
    %665 = vmatpush1.msra.mxu0 %v123
    %666 = vmatprep.subr.mxu0 %v120
    %667 = vmatpush1.msra.mxu0 %v119
    %668 = vmatprep.subr.mxu0 %v116
    %669 = vmatpush1.msra.mxu0 %v115
    %670 = vmatprep.subr.mxu0 %v112
    %671 = vmatpush1.msra.mxu0 %v111
    %672 = vmatprep.subr.mxu0 %v108
    %673 = vmatpush1.msra.mxu0 %v107
    %674 = vmatprep.subr.mxu0 %v104
    %675 = vmatpush1.msra.mxu0 %v103
    %676 = vmatprep.subr.mxu0 %v100
    %677 = vmatpush1.msra.mxu0 %v99
    %678 = vmatprep.subr.mxu0 %v96
    %679 = vmatpush1.msra.mxu0 %v95
    %680 = vmatprep.subr.mxu0 %v92
    %681 = vmatpush1.msra.mxu0 %v91
    %682 = vmatprep.subr.mxu0 %v88
    %683 = vmatpush1.msra.mxu0 %v87
    %684 = vmatprep.subr.mxu0 %v84
    %685 = vmatpush1.msra.mxu0 %v83
    %686 = vmatprep.subr.mxu0 %v80
    %687 = vmatpush1.msra.mxu0 %v79
    %688 = vmatprep.subr.mxu0 %v76
    %689 = vmatpush1.msra.mxu0 %v75
    %690 = vmatprep.subr.mxu0 %v72
    %691 = vmatpush1.msra.mxu0 %v71
    %692 = vmatprep.subr.mxu0 0.0
    %693 = vmatpush2.msra.mxu0 0.0
    %694 = vmatprep.subr.mxu0 0.0
    %695 = vmatpush2.msra.mxu0 0.0
    %696 = vmatprep.subr.mxu0 0.0
    %697 = vmatpush2.msra.mxu0 0.0
    %698 = vmatprep.subr.mxu0 0.0
    %699 = vmatpush2.msra.mxu0 0.0
    %700 = vmatprep.subr.mxu0 0.0
    %701 = vmatpush2.msra.mxu0 0.0
    %702 = vmatprep.subr.mxu0 0.0
    %703 = vmatpush2.msra.mxu0 0.0
    %704 = vmatprep.subr.mxu0 0.0
    %705 = vmatpush2.msra.mxu0 0.0
    %706 = vmatprep.subr.mxu0 0.0
    %707 = vmatpush2.msra.mxu0 0.0
    %708 = vmatprep.subr.mxu0 0.0
    %709 = vmatpush2.msra.mxu0 0.0
    %710 = vmatprep.subr.mxu0 0.0
    %711 = vmatpush2.msra.mxu0 0.0
    %712 = vmatprep.subr.mxu0 0.0
    %713 = vmatpush2.msra.mxu0 0.0
    %714 = vmatprep.subr.mxu0 0.0
    %715 = vmatpush2.msra.mxu0 0.0
    %716 = vmatprep.subr.mxu0 0.0
    %717 = vmatpush2.msra.mxu0 0.0
    %718 = vmatprep.subr.mxu0 0.0
    %719 = vmatpush2.msra.mxu0 0.0
    %720 = vmatprep.subr.mxu0 0.0
    %721 = vmatpush2.msra.mxu0 0.0
    %722 = vmatprep.subr.mxu0 0.0
    %723 = vmatpush2.msra.mxu0 0.0
    %724 = vmatprep.mubr.f32.mxu0 0.0
    %725 = vmatmul.mubr.f32.gmra.mxu0 %v654
    %v726 = vpop.f32.mrf.mxu0
    %v727 = vadd.f32 0.0, %v726
    %v728 = vpop.f32.mrf.mxu0
    %v729 = vadd.f32 0.0, %v728
    %730 = vdwg.mxu0
    %731 = vmatprep.subr.mxu0 %v134
    %732 = vmatpush1.msra.mxu0 %v133
    %733 = vmatprep.subr.mxu0 %v130
    %734 = vmatpush1.msra.mxu0 %v129
    %735 = vmatprep.subr.mxu0 %v126
    %736 = vmatpush1.msra.mxu0 %v125
    %737 = vmatprep.subr.mxu0 %v122
    %738 = vmatpush1.msra.mxu0 %v121
    %739 = vmatprep.subr.mxu0 %v118
    %740 = vmatpush1.msra.mxu0 %v117
    %741 = vmatprep.subr.mxu0 %v114
    %742 = vmatpush1.msra.mxu0 %v113
    %743 = vmatprep.subr.mxu0 %v110
    %744 = vmatpush1.msra.mxu0 %v109
    %745 = vmatprep.subr.mxu0 %v106
    %746 = vmatpush1.msra.mxu0 %v105
    %747 = vmatprep.subr.mxu0 %v102
    %748 = vmatpush1.msra.mxu0 %v101
    %749 = vmatprep.subr.mxu0 %v98
    %750 = vmatpush1.msra.mxu0 %v97
    %751 = vmatprep.subr.mxu0 %v94
    %752 = vmatpush1.msra.mxu0 %v93
    %753 = vmatprep.subr.mxu0 %v90
    %754 = vmatpush1.msra.mxu0 %v89
    %755 = vmatprep.subr.mxu0 %v86
    %756 = vmatpush1.msra.mxu0 %v85
    %757 = vmatprep.subr.mxu0 %v82
    %758 = vmatpush1.msra.mxu0 %v81
    %759 = vmatprep.subr.mxu0 %v78
    %760 = vmatpush1.msra.mxu0 %v77
    %761 = vmatprep.subr.mxu0 %v74
    %762 = vmatpush1.msra.mxu0 %v73
    %763 = vmatprep.subr.mxu0 0.0
    %764 = vmatpush2.msra.mxu0 0.0
    %765 = vmatprep.subr.mxu0 0.0
    %766 = vmatpush2.msra.mxu0 0.0
    %767 = vmatprep.subr.mxu0 0.0
    %768 = vmatpush2.msra.mxu0 0.0
    %769 = vmatprep.subr.mxu0 0.0
    %770 = vmatpush2.msra.mxu0 0.0
    %771 = vmatprep.subr.mxu0 0.0
    %772 = vmatpush2.msra.mxu0 0.0
    %773 = vmatprep.subr.mxu0 0.0
    %774 = vmatpush2.msra.mxu0 0.0
    %775 = vmatprep.subr.mxu0 0.0
    %776 = vmatpush2.msra.mxu0 0.0
    %777 = vmatprep.subr.mxu0 0.0
    %778 = vmatpush2.msra.mxu0 0.0
    %779 = vmatprep.subr.mxu0 0.0
    %780 = vmatpush2.msra.mxu0 0.0
    %781 = vmatprep.subr.mxu0 0.0
    %782 = vmatpush2.msra.mxu0 0.0
    %783 = vmatprep.subr.mxu0 0.0
    %784 = vmatpush2.msra.mxu0 0.0
    %785 = vmatprep.subr.mxu0 0.0
    %786 = vmatpush2.msra.mxu0 0.0
    %787 = vmatprep.subr.mxu0 0.0
    %788 = vmatpush2.msra.mxu0 0.0
    %789 = vmatprep.subr.mxu0 0.0
    %790 = vmatpush2.msra.mxu0 0.0
    %791 = vmatprep.subr.mxu0 0.0
    %792 = vmatpush2.msra.mxu0 0.0
    %793 = vmatprep.subr.mxu0 0.0
    %794 = vmatpush2.msra.mxu0 0.0
    %795 = vmatprep.mubr.f32.mxu0 0.0
    %796 = vmatmul.mubr.f32.gmra.mxu0 %v654
    %v797 = vpop.f32.mrf.mxu0
    %v798 = vadd.f32 0.0, %v797
    %v799 = vpop.f32.mrf.mxu0
    %v800 = vadd.f32 0.0, %v799
    %801 = vdwg.mxu0
    %v802 = vadd.f32 %v656, %v727
    %v803 = vadd.f32 %v657, %v729
    %v804 = vadd.f32 %v658, %v798
    %v805 = vadd.f32 %v659, %v800
    %v806 = vxor.u32 %v802, 2147483648
    %v807 = vxor.u32 %v803, 2147483648
    %v808 = vmul.f32 %v806, 1.442695
    %v809 = vpow.pop %v808
    %v810 = vmul.f32 %v807, 1.442695
    %v811 = vpow.pop %v810
    %v812 = vadd.f32 %v809, 1.0
    %v813 = vadd.f32 %v811, 1.0
    %v814 = vrcp.pop %v812
    %v815 = vmul.f32 1.0, %v814
    %v816 = vrcp.pop %v813
    %v817 = vmul.f32 1.0, %v816
    %v818 = vtanh.pop %v804
    %v819 = vxor.u32 %v805, 2147483648
    %v820 = vmul.f32 %v819, 1.442695
    %v821 = vpow.pop %v820
    %v822 = vadd.f32 %v821, 1.0
    %v823 = vrcp.pop %v822
    %v824 = vmul.f32 1.0, %v823
    %v825 = vmul.f32 %v817, %v652
    %v826 = vmul.f32 %v815, %v818
    %v827 = vadd.f32 %v825, %v826
    %v828 = vtanh.pop %v827
    %v829 = vmul.f32 %v824, %v828
    %s830 = scalar_lea.vmem [#allocation4], 128
    %v831 = vld [vmem:[%s830] sm:$0xff]
    %v832 = vld [vmem:[%s830 + $0x8] sm:$0xff]
    %v833 = vld [vmem:[%s830 + $0x10] sm:$0xff]
    %v834 = vld [vmem:[%s830 + $0x18] sm:$0xff]
    %835 = vmatprep.subr.mxu0 %v132
    %836 = vmatpush1.msra.mxu0 %v131
    %837 = vmatprep.subr.mxu0 %v128
    %838 = vmatpush1.msra.mxu0 %v127
    %839 = vmatprep.subr.mxu0 %v124
    %840 = vmatpush1.msra.mxu0 %v123
    %841 = vmatprep.subr.mxu0 %v120
    %842 = vmatpush1.msra.mxu0 %v119
    %843 = vmatprep.subr.mxu0 %v116
    %844 = vmatpush1.msra.mxu0 %v115
    %845 = vmatprep.subr.mxu0 %v112
    %846 = vmatpush1.msra.mxu0 %v111
    %847 = vmatprep.subr.mxu0 %v108
    %848 = vmatpush1.msra.mxu0 %v107
    %849 = vmatprep.subr.mxu0 %v104
    %850 = vmatpush1.msra.mxu0 %v103
    %851 = vmatprep.subr.mxu0 %v100
    %852 = vmatpush1.msra.mxu0 %v99
    %853 = vmatprep.subr.mxu0 %v96
    %854 = vmatpush1.msra.mxu0 %v95
    %855 = vmatprep.subr.mxu0 %v92
    %856 = vmatpush1.msra.mxu0 %v91
    %857 = vmatprep.subr.mxu0 %v88
    %858 = vmatpush1.msra.mxu0 %v87
    %859 = vmatprep.subr.mxu0 %v84
    %860 = vmatpush1.msra.mxu0 %v83
    %861 = vmatprep.subr.mxu0 %v80
    %862 = vmatpush1.msra.mxu0 %v79
    %863 = vmatprep.subr.mxu0 %v76
    %864 = vmatpush1.msra.mxu0 %v75
    %865 = vmatprep.subr.mxu0 %v72
    %866 = vmatpush1.msra.mxu0 %v71
    %867 = vmatprep.subr.mxu0 0.0
    %868 = vmatpush2.msra.mxu0 0.0
    %869 = vmatprep.subr.mxu0 0.0
    %870 = vmatpush2.msra.mxu0 0.0
    %871 = vmatprep.subr.mxu0 0.0
    %872 = vmatpush2.msra.mxu0 0.0
    %873 = vmatprep.subr.mxu0 0.0
    %874 = vmatpush2.msra.mxu0 0.0
    %875 = vmatprep.subr.mxu0 0.0
    %876 = vmatpush2.msra.mxu0 0.0
    %877 = vmatprep.subr.mxu0 0.0
    %878 = vmatpush2.msra.mxu0 0.0
    %879 = vmatprep.subr.mxu0 0.0
    %880 = vmatpush2.msra.mxu0 0.0
    %881 = vmatprep.subr.mxu0 0.0
    %882 = vmatpush2.msra.mxu0 0.0
    %883 = vmatprep.subr.mxu0 0.0
    %884 = vmatpush2.msra.mxu0 0.0
    %885 = vmatprep.subr.mxu0 0.0
    %886 = vmatpush2.msra.mxu0 0.0
    %887 = vmatprep.subr.mxu0 0.0
    %888 = vmatpush2.msra.mxu0 0.0
    %889 = vmatprep.subr.mxu0 0.0
    %890 = vmatpush2.msra.mxu0 0.0
    %891 = vmatprep.subr.mxu0 0.0
    %892 = vmatpush2.msra.mxu0 0.0
    %893 = vmatprep.subr.mxu0 0.0
    %894 = vmatpush2.msra.mxu0 0.0
    %895 = vmatprep.subr.mxu0 0.0
    %896 = vmatpush2.msra.mxu0 0.0
    %897 = vmatprep.subr.mxu0 0.0
    %898 = vmatpush2.msra.mxu0 0.0
    %899 = vmatprep.mubr.f32.mxu0 0.0
    %900 = vmatmul.mubr.f32.gmra.mxu0 %v829
    %v901 = vpop.f32.mrf.mxu0
    %v902 = vadd.f32 0.0, %v901
    %v903 = vpop.f32.mrf.mxu0
    %v904 = vadd.f32 0.0, %v903
    %905 = vdwg.mxu0
    %906 = vmatprep.subr.mxu0 %v134
    %907 = vmatpush1.msra.mxu0 %v133
    %908 = vmatprep.subr.mxu0 %v130
    %909 = vmatpush1.msra.mxu0 %v129
    %910 = vmatprep.subr.mxu0 %v126
    %911 = vmatpush1.msra.mxu0 %v125
    %912 = vmatprep.subr.mxu0 %v122
    %913 = vmatpush1.msra.mxu0 %v121
    %914 = vmatprep.subr.mxu0 %v118
    %915 = vmatpush1.msra.mxu0 %v117
    %916 = vmatprep.subr.mxu0 %v114
    %917 = vmatpush1.msra.mxu0 %v113
    %918 = vmatprep.subr.mxu0 %v110
    %919 = vmatpush1.msra.mxu0 %v109
    %920 = vmatprep.subr.mxu0 %v106
    %921 = vmatpush1.msra.mxu0 %v105
    %922 = vmatprep.subr.mxu0 %v102
    %923 = vmatpush1.msra.mxu0 %v101
    %924 = vmatprep.subr.mxu0 %v98
    %925 = vmatpush1.msra.mxu0 %v97
    %926 = vmatprep.subr.mxu0 %v94
    %927 = vmatpush1.msra.mxu0 %v93
    %928 = vmatprep.subr.mxu0 %v90
    %929 = vmatpush1.msra.mxu0 %v89
    %930 = vmatprep.subr.mxu0 %v86
    %931 = vmatpush1.msra.mxu0 %v85
    %932 = vmatprep.subr.mxu0 %v82
    %933 = vmatpush1.msra.mxu0 %v81
    %934 = vmatprep.subr.mxu0 %v78
    %935 = vmatpush1.msra.mxu0 %v77
    %936 = vmatprep.subr.mxu0 %v74
    %937 = vmatpush1.msra.mxu0 %v73
    %938 = vmatprep.subr.mxu0 0.0
    %939 = vmatpush2.msra.mxu0 0.0
    %940 = vmatprep.subr.mxu0 0.0
    %941 = vmatpush2.msra.mxu0 0.0
    %942 = vmatprep.subr.mxu0 0.0
    %943 = vmatpush2.msra.mxu0 0.0
    %944 = vmatprep.subr.mxu0 0.0
    %945 = vmatpush2.msra.mxu0 0.0
    %946 = vmatprep.subr.mxu0 0.0
    %947 = vmatpush2.msra.mxu0 0.0
    %948 = vmatprep.subr.mxu0 0.0
    %949 = vmatpush2.msra.mxu0 0.0
    %950 = vmatprep.subr.mxu0 0.0
    %951 = vmatpush2.msra.mxu0 0.0
    %952 = vmatprep.subr.mxu0 0.0
    %953 = vmatpush2.msra.mxu0 0.0
    %954 = vmatprep.subr.mxu0 0.0
    %955 = vmatpush2.msra.mxu0 0.0
    %956 = vmatprep.subr.mxu0 0.0
    %957 = vmatpush2.msra.mxu0 0.0
    %958 = vmatprep.subr.mxu0 0.0
    %959 = vmatpush2.msra.mxu0 0.0
    %960 = vmatprep.subr.mxu0 0.0
    %961 = vmatpush2.msra.mxu0 0.0
    %962 = vmatprep.subr.mxu0 0.0
    %963 = vmatpush2.msra.mxu0 0.0
    %964 = vmatprep.subr.mxu0 0.0
    %965 = vmatpush2.msra.mxu0 0.0
    %966 = vmatprep.subr.mxu0 0.0
    %967 = vmatpush2.msra.mxu0 0.0
    %968 = vmatprep.subr.mxu0 0.0
    %969 = vmatpush2.msra.mxu0 0.0
    %970 = vmatprep.mubr.f32.mxu0 0.0
    %971 = vmatmul.mubr.f32.gmra.mxu0 %v829
    %v972 = vpop.f32.mrf.mxu0
    %v973 = vadd.f32 0.0, %v972
    %v974 = vpop.f32.mrf.mxu0
    %v975 = vadd.f32 0.0, %v974
    %976 = vdwg.mxu0
    %v977 = vadd.f32 %v831, %v902
    %v978 = vadd.f32 %v832, %v904
    %v979 = vadd.f32 %v833, %v973
    %v980 = vadd.f32 %v834, %v975
    %v981 = vxor.u32 %v977, 2147483648
    %v982 = vxor.u32 %v978, 2147483648
    %v983 = vmul.f32 %v981, 1.442695
    %v984 = vpow.pop %v983
    %v985 = vmul.f32 %v982, 1.442695
    %v986 = vpow.pop %v985
    %v987 = vadd.f32 %v984, 1.0
    %v988 = vadd.f32 %v986, 1.0
    %v989 = vrcp.pop %v987
    %v990 = vmul.f32 1.0, %v989
    %v991 = vrcp.pop %v988
    %v992 = vmul.f32 1.0, %v991
    %v993 = vtanh.pop %v979
    %v994 = vxor.u32 %v980, 2147483648
    %v995 = vmul.f32 %v994, 1.442695
    %v996 = vpow.pop %v995
    %v997 = vadd.f32 %v996, 1.0
    %v998 = vrcp.pop %v997
    %v999 = vmul.f32 1.0, %v998
    %v1000 = vmul.f32 %v992, %v827
    %v1001 = vmul.f32 %v990, %v993
    %v1002 = vadd.f32 %v1000, %v1001
    %v1003 = vtanh.pop %v1002
    %v1004 = vmul.f32 %v999, %v1003
    %s1005 = scalar_lea.vmem [#allocation4], 160
    %v1006 = vld [vmem:[%s1005] sm:$0xff]
    %v1007 = vld [vmem:[%s1005 + $0x8] sm:$0xff]
    %v1008 = vld [vmem:[%s1005 + $0x10] sm:$0xff]
    %v1009 = vld [vmem:[%s1005 + $0x18] sm:$0xff]
    %1010 = vmatprep.subr.mxu0 %v132
    %1011 = vmatpush1.msra.mxu0 %v131
    %1012 = vmatprep.subr.mxu0 %v128
    %1013 = vmatpush1.msra.mxu0 %v127
    %1014 = vmatprep.subr.mxu0 %v124
    %1015 = vmatpush1.msra.mxu0 %v123
    %1016 = vmatprep.subr.mxu0 %v120
    %1017 = vmatpush1.msra.mxu0 %v119
    %1018 = vmatprep.subr.mxu0 %v116
    %1019 = vmatpush1.msra.mxu0 %v115
    %1020 = vmatprep.subr.mxu0 %v112
    %1021 = vmatpush1.msra.mxu0 %v111
    %1022 = vmatprep.subr.mxu0 %v108
    %1023 = vmatpush1.msra.mxu0 %v107
    %1024 = vmatprep.subr.mxu0 %v104
    %1025 = vmatpush1.msra.mxu0 %v103
    %1026 = vmatprep.subr.mxu0 %v100
    %1027 = vmatpush1.msra.mxu0 %v99
    %1028 = vmatprep.subr.mxu0 %v96
    %1029 = vmatpush1.msra.mxu0 %v95
    %1030 = vmatprep.subr.mxu0 %v92
    %1031 = vmatpush1.msra.mxu0 %v91
    %1032 = vmatprep.subr.mxu0 %v88
    %1033 = vmatpush1.msra.mxu0 %v87
    %1034 = vmatprep.subr.mxu0 %v84
    %1035 = vmatpush1.msra.mxu0 %v83
    %1036 = vmatprep.subr.mxu0 %v80
    %1037 = vmatpush1.msra.mxu0 %v79
    %1038 = vmatprep.subr.mxu0 %v76
    %1039 = vmatpush1.msra.mxu0 %v75
    %1040 = vmatprep.subr.mxu0 %v72
    %1041 = vmatpush1.msra.mxu0 %v71
    %1042 = vmatprep.subr.mxu0 0.0
    %1043 = vmatpush2.msra.mxu0 0.0
    %1044 = vmatprep.subr.mxu0 0.0
    %1045 = vmatpush2.msra.mxu0 0.0
    %1046 = vmatprep.subr.mxu0 0.0
    %1047 = vmatpush2.msra.mxu0 0.0
    %1048 = vmatprep.subr.mxu0 0.0
    %1049 = vmatpush2.msra.mxu0 0.0
    %1050 = vmatprep.subr.mxu0 0.0
    %1051 = vmatpush2.msra.mxu0 0.0
    %1052 = vmatprep.subr.mxu0 0.0
    %1053 = vmatpush2.msra.mxu0 0.0
    %1054 = vmatprep.subr.mxu0 0.0
    %1055 = vmatpush2.msra.mxu0 0.0
    %1056 = vmatprep.subr.mxu0 0.0
    %1057 = vmatpush2.msra.mxu0 0.0
    %1058 = vmatprep.subr.mxu0 0.0
    %1059 = vmatpush2.msra.mxu0 0.0
    %1060 = vmatprep.subr.mxu0 0.0
    %1061 = vmatpush2.msra.mxu0 0.0
    %1062 = vmatprep.subr.mxu0 0.0
    %1063 = vmatpush2.msra.mxu0 0.0
    %1064 = vmatprep.subr.mxu0 0.0
    %1065 = vmatpush2.msra.mxu0 0.0
    %1066 = vmatprep.subr.mxu0 0.0
    %1067 = vmatpush2.msra.mxu0 0.0
    %1068 = vmatprep.subr.mxu0 0.0
    %1069 = vmatpush2.msra.mxu0 0.0
    %1070 = vmatprep.subr.mxu0 0.0
    %1071 = vmatpush2.msra.mxu0 0.0
    %1072 = vmatprep.subr.mxu0 0.0
    %1073 = vmatpush2.msra.mxu0 0.0
    %1074 = vmatprep.mubr.f32.mxu0 0.0
    %1075 = vmatmul.mubr.f32.gmra.mxu0 %v1004
    %v1076 = vpop.f32.mrf.mxu0
    %v1077 = vadd.f32 0.0, %v1076
    %v1078 = vpop.f32.mrf.mxu0
    %v1079 = vadd.f32 0.0, %v1078
    %1080 = vdwg.mxu0
    %1081 = vmatprep.subr.mxu0 %v134
    %1082 = vmatpush1.msra.mxu0 %v133
    %1083 = vmatprep.subr.mxu0 %v130
    %1084 = vmatpush1.msra.mxu0 %v129
    %1085 = vmatprep.subr.mxu0 %v126
    %1086 = vmatpush1.msra.mxu0 %v125
    %1087 = vmatprep.subr.mxu0 %v122
    %1088 = vmatpush1.msra.mxu0 %v121
    %1089 = vmatprep.subr.mxu0 %v118
    %1090 = vmatpush1.msra.mxu0 %v117
    %1091 = vmatprep.subr.mxu0 %v114
    %1092 = vmatpush1.msra.mxu0 %v113
    %1093 = vmatprep.subr.mxu0 %v110
    %1094 = vmatpush1.msra.mxu0 %v109
    %1095 = vmatprep.subr.mxu0 %v106
    %1096 = vmatpush1.msra.mxu0 %v105
    %1097 = vmatprep.subr.mxu0 %v102
    %1098 = vmatpush1.msra.mxu0 %v101
    %1099 = vmatprep.subr.mxu0 %v98
    %1100 = vmatpush1.msra.mxu0 %v97
    %1101 = vmatprep.subr.mxu0 %v94
    %1102 = vmatpush1.msra.mxu0 %v93
    %1103 = vmatprep.subr.mxu0 %v90
    %1104 = vmatpush1.msra.mxu0 %v89
    %1105 = vmatprep.subr.mxu0 %v86
    %1106 = vmatpush1.msra.mxu0 %v85
    %1107 = vmatprep.subr.mxu0 %v82
    %1108 = vmatpush1.msra.mxu0 %v81
    %1109 = vmatprep.subr.mxu0 %v78
    %1110 = vmatpush1.msra.mxu0 %v77
    %1111 = vmatprep.subr.mxu0 %v74
    %1112 = vmatpush1.msra.mxu0 %v73
    %1113 = vmatprep.subr.mxu0 0.0
    %1114 = vmatpush2.msra.mxu0 0.0
    %1115 = vmatprep.subr.mxu0 0.0
    %1116 = vmatpush2.msra.mxu0 0.0
    %1117 = vmatprep.subr.mxu0 0.0
    %1118 = vmatpush2.msra.mxu0 0.0
    %1119 = vmatprep.subr.mxu0 0.0
    %1120 = vmatpush2.msra.mxu0 0.0
    %1121 = vmatprep.subr.mxu0 0.0
    %1122 = vmatpush2.msra.mxu0 0.0
    %1123 = vmatprep.subr.mxu0 0.0
    %1124 = vmatpush2.msra.mxu0 0.0
    %1125 = vmatprep.subr.mxu0 0.0
    %1126 = vmatpush2.msra.mxu0 0.0
    %1127 = vmatprep.subr.mxu0 0.0
    %1128 = vmatpush2.msra.mxu0 0.0
    %1129 = vmatprep.subr.mxu0 0.0
    %1130 = vmatpush2.msra.mxu0 0.0
    %1131 = vmatprep.subr.mxu0 0.0
    %1132 = vmatpush2.msra.mxu0 0.0
    %1133 = vmatprep.subr.mxu0 0.0
    %1134 = vmatpush2.msra.mxu0 0.0
    %1135 = vmatprep.subr.mxu0 0.0
    %1136 = vmatpush2.msra.mxu0 0.0
    %1137 = vmatprep.subr.mxu0 0.0
    %1138 = vmatpush2.msra.mxu0 0.0
    %1139 = vmatprep.subr.mxu0 0.0
    %1140 = vmatpush2.msra.mxu0 0.0
    %1141 = vmatprep.subr.mxu0 0.0
    %1142 = vmatpush2.msra.mxu0 0.0
    %1143 = vmatprep.subr.mxu0 0.0
    %1144 = vmatpush2.msra.mxu0 0.0
    %1145 = vmatprep.mubr.f32.mxu0 0.0
    %1146 = vmatmul.mubr.f32.gmra.mxu0 %v1004
    %v1147 = vpop.f32.mrf.mxu0
    %v1148 = vadd.f32 0.0, %v1147
    %v1149 = vpop.f32.mrf.mxu0
    %v1150 = vadd.f32 0.0, %v1149
    %1151 = vdwg.mxu0
    %v1152 = vadd.f32 %v1006, %v1077
    %v1153 = vadd.f32 %v1007, %v1079
    %v1154 = vadd.f32 %v1008, %v1148
    %v1155 = vadd.f32 %v1009, %v1150
    %v1156 = vxor.u32 %v1152, 2147483648
    %v1157 = vxor.u32 %v1153, 2147483648
    %v1158 = vmul.f32 %v1156, 1.442695
    %v1159 = vpow.pop %v1158
    %v1160 = vmul.f32 %v1157, 1.442695
    %v1161 = vpow.pop %v1160
    %v1162 = vadd.f32 %v1159, 1.0
    %v1163 = vadd.f32 %v1161, 1.0
    %v1164 = vrcp.pop %v1162
    %v1165 = vmul.f32 1.0, %v1164
    %v1166 = vrcp.pop %v1163
    %v1167 = vmul.f32 1.0, %v1166
    %v1168 = vtanh.pop %v1154
    %v1169 = vxor.u32 %v1155, 2147483648
    %v1170 = vmul.f32 %v1169, 1.442695
    %v1171 = vpow.pop %v1170
    %v1172 = vadd.f32 %v1171, 1.0
    %v1173 = vrcp.pop %v1172
    %v1174 = vmul.f32 1.0, %v1173
    %v1175 = vmul.f32 %v1167, %v1002
    %v1176 = vmul.f32 %v1165, %v1168
    %v1177 = vadd.f32 %v1175, %v1176
    %v1178 = vtanh.pop %v1177
    %v1179 = vmul.f32 %v1174, %v1178
    %s1180 = scalar_lea.vmem [#allocation4], 192
    %v1181 = vld [vmem:[%s1180] sm:$0xff]
    %v1182 = vld [vmem:[%s1180 + $0x8] sm:$0xff]
    %v1183 = vld [vmem:[%s1180 + $0x10] sm:$0xff]
    %v1184 = vld [vmem:[%s1180 + $0x18] sm:$0xff]
    %1185 = vmatprep.subr.mxu0 %v132
    %1186 = vmatpush1.msra.mxu0 %v131
    %1187 = vmatprep.subr.mxu0 %v128
    %1188 = vmatpush1.msra.mxu0 %v127
    %1189 = vmatprep.subr.mxu0 %v124
    %1190 = vmatpush1.msra.mxu0 %v123
    %1191 = vmatprep.subr.mxu0 %v120
    %1192 = vmatpush1.msra.mxu0 %v119
    %1193 = vmatprep.subr.mxu0 %v116
    %1194 = vmatpush1.msra.mxu0 %v115
    %1195 = vmatprep.subr.mxu0 %v112
    %1196 = vmatpush1.msra.mxu0 %v111
    %1197 = vmatprep.subr.mxu0 %v108
    %1198 = vmatpush1.msra.mxu0 %v107
    %1199 = vmatprep.subr.mxu0 %v104
    %1200 = vmatpush1.msra.mxu0 %v103
    %1201 = vmatprep.subr.mxu0 %v100
    %1202 = vmatpush1.msra.mxu0 %v99
    %1203 = vmatprep.subr.mxu0 %v96
    %1204 = vmatpush1.msra.mxu0 %v95
    %1205 = vmatprep.subr.mxu0 %v92
    %1206 = vmatpush1.msra.mxu0 %v91
    %1207 = vmatprep.subr.mxu0 %v88
    %1208 = vmatpush1.msra.mxu0 %v87
    %1209 = vmatprep.subr.mxu0 %v84
    %1210 = vmatpush1.msra.mxu0 %v83
    %1211 = vmatprep.subr.mxu0 %v80
    %1212 = vmatpush1.msra.mxu0 %v79
    %1213 = vmatprep.subr.mxu0 %v76
    %1214 = vmatpush1.msra.mxu0 %v75
    %1215 = vmatprep.subr.mxu0 %v72
    %1216 = vmatpush1.msra.mxu0 %v71
    %1217 = vmatprep.subr.mxu0 0.0
    %1218 = vmatpush2.msra.mxu0 0.0
    %1219 = vmatprep.subr.mxu0 0.0
    %1220 = vmatpush2.msra.mxu0 0.0
    %1221 = vmatprep.subr.mxu0 0.0
    %1222 = vmatpush2.msra.mxu0 0.0
    %1223 = vmatprep.subr.mxu0 0.0
    %1224 = vmatpush2.msra.mxu0 0.0
    %1225 = vmatprep.subr.mxu0 0.0
    %1226 = vmatpush2.msra.mxu0 0.0
    %1227 = vmatprep.subr.mxu0 0.0
    %1228 = vmatpush2.msra.mxu0 0.0
    %1229 = vmatprep.subr.mxu0 0.0
    %1230 = vmatpush2.msra.mxu0 0.0
    %1231 = vmatprep.subr.mxu0 0.0
    %1232 = vmatpush2.msra.mxu0 0.0
    %1233 = vmatprep.subr.mxu0 0.0
    %1234 = vmatpush2.msra.mxu0 0.0
    %1235 = vmatprep.subr.mxu0 0.0
    %1236 = vmatpush2.msra.mxu0 0.0
    %1237 = vmatprep.subr.mxu0 0.0
    %1238 = vmatpush2.msra.mxu0 0.0
    %1239 = vmatprep.subr.mxu0 0.0
    %1240 = vmatpush2.msra.mxu0 0.0
    %1241 = vmatprep.subr.mxu0 0.0
    %1242 = vmatpush2.msra.mxu0 0.0
    %1243 = vmatprep.subr.mxu0 0.0
    %1244 = vmatpush2.msra.mxu0 0.0
    %1245 = vmatprep.subr.mxu0 0.0
    %1246 = vmatpush2.msra.mxu0 0.0
    %1247 = vmatprep.subr.mxu0 0.0
    %1248 = vmatpush2.msra.mxu0 0.0
    %1249 = vmatprep.mubr.f32.mxu0 0.0
    %1250 = vmatmul.mubr.f32.gmra.mxu0 %v1179
    %v1251 = vpop.f32.mrf.mxu0
    %v1252 = vadd.f32 0.0, %v1251
    %v1253 = vpop.f32.mrf.mxu0
    %v1254 = vadd.f32 0.0, %v1253
    %1255 = vdwg.mxu0
    %1256 = vmatprep.subr.mxu0 %v134
    %1257 = vmatpush1.msra.mxu0 %v133
    %1258 = vmatprep.subr.mxu0 %v130
    %1259 = vmatpush1.msra.mxu0 %v129
    %1260 = vmatprep.subr.mxu0 %v126
    %1261 = vmatpush1.msra.mxu0 %v125
    %1262 = vmatprep.subr.mxu0 %v122
    %1263 = vmatpush1.msra.mxu0 %v121
    %1264 = vmatprep.subr.mxu0 %v118
    %1265 = vmatpush1.msra.mxu0 %v117
    %1266 = vmatprep.subr.mxu0 %v114
    %1267 = vmatpush1.msra.mxu0 %v113
    %1268 = vmatprep.subr.mxu0 %v110
    %1269 = vmatpush1.msra.mxu0 %v109
    %1270 = vmatprep.subr.mxu0 %v106
    %1271 = vmatpush1.msra.mxu0 %v105
    %1272 = vmatprep.subr.mxu0 %v102
    %1273 = vmatpush1.msra.mxu0 %v101
    %1274 = vmatprep.subr.mxu0 %v98
    %1275 = vmatpush1.msra.mxu0 %v97
    %1276 = vmatprep.subr.mxu0 %v94
    %1277 = vmatpush1.msra.mxu0 %v93
    %1278 = vmatprep.subr.mxu0 %v90
    %1279 = vmatpush1.msra.mxu0 %v89
    %1280 = vmatprep.subr.mxu0 %v86
    %1281 = vmatpush1.msra.mxu0 %v85
    %1282 = vmatprep.subr.mxu0 %v82
    %1283 = vmatpush1.msra.mxu0 %v81
    %1284 = vmatprep.subr.mxu0 %v78
    %1285 = vmatpush1.msra.mxu0 %v77
    %1286 = vmatprep.subr.mxu0 %v74
    %1287 = vmatpush1.msra.mxu0 %v73
    %1288 = vmatprep.subr.mxu0 0.0
    %1289 = vmatpush2.msra.mxu0 0.0
    %1290 = vmatprep.subr.mxu0 0.0
    %1291 = vmatpush2.msra.mxu0 0.0
    %1292 = vmatprep.subr.mxu0 0.0
    %1293 = vmatpush2.msra.mxu0 0.0
    %1294 = vmatprep.subr.mxu0 0.0
    %1295 = vmatpush2.msra.mxu0 0.0
    %1296 = vmatprep.subr.mxu0 0.0
    %1297 = vmatpush2.msra.mxu0 0.0
    %1298 = vmatprep.subr.mxu0 0.0
    %1299 = vmatpush2.msra.mxu0 0.0
    %1300 = vmatprep.subr.mxu0 0.0
    %1301 = vmatpush2.msra.mxu0 0.0
    %1302 = vmatprep.subr.mxu0 0.0
    %1303 = vmatpush2.msra.mxu0 0.0
    %1304 = vmatprep.subr.mxu0 0.0
    %1305 = vmatpush2.msra.mxu0 0.0
    %1306 = vmatprep.subr.mxu0 0.0
    %1307 = vmatpush2.msra.mxu0 0.0
    %1308 = vmatprep.subr.mxu0 0.0
    %1309 = vmatpush2.msra.mxu0 0.0
    %1310 = vmatprep.subr.mxu0 0.0
    %1311 = vmatpush2.msra.mxu0 0.0
    %1312 = vmatprep.subr.mxu0 0.0
    %1313 = vmatpush2.msra.mxu0 0.0
    %1314 = vmatprep.subr.mxu0 0.0
    %1315 = vmatpush2.msra.mxu0 0.0
    %1316 = vmatprep.subr.mxu0 0.0
    %1317 = vmatpush2.msra.mxu0 0.0
    %1318 = vmatprep.subr.mxu0 0.0
    %1319 = vmatpush2.msra.mxu0 0.0
    %1320 = vmatprep.mubr.f32.mxu0 0.0
    %1321 = vmatmul.mubr.f32.gmra.mxu0 %v1179
    %v1322 = vpop.f32.mrf.mxu0
    %v1323 = vadd.f32 0.0, %v1322
    %v1324 = vpop.f32.mrf.mxu0
    %v1325 = vadd.f32 0.0, %v1324
    %1326 = vdwg.mxu0
    %v1327 = vadd.f32 %v1181, %v1252
    %v1328 = vadd.f32 %v1182, %v1254
    %v1329 = vadd.f32 %v1183, %v1323
    %v1330 = vadd.f32 %v1184, %v1325
    %v1331 = vxor.u32 %v1327, 2147483648
    %v1332 = vxor.u32 %v1328, 2147483648
    %v1333 = vmul.f32 %v1331, 1.442695
    %v1334 = vpow.pop %v1333
    %v1335 = vmul.f32 %v1332, 1.442695
    %v1336 = vpow.pop %v1335
    %v1337 = vadd.f32 %v1334, 1.0
    %v1338 = vadd.f32 %v1336, 1.0
    %v1339 = vrcp.pop %v1337
    %v1340 = vmul.f32 1.0, %v1339
    %v1341 = vrcp.pop %v1338
    %v1342 = vmul.f32 1.0, %v1341
    %v1343 = vtanh.pop %v1329
    %v1344 = vxor.u32 %v1330, 2147483648
    %v1345 = vmul.f32 %v1344, 1.442695
    %v1346 = vpow.pop %v1345
    %v1347 = vadd.f32 %v1346, 1.0
    %v1348 = vrcp.pop %v1347
    %v1349 = vmul.f32 1.0, %v1348
    %v1350 = vmul.f32 %v1342, %v1177
    %v1351 = vmul.f32 %v1340, %v1343
    %v1352 = vadd.f32 %v1350, %v1351
    %v1353 = vtanh.pop %v1352
    %v1354 = vmul.f32 %v1349, %v1353
    %s1355 = scalar_lea.vmem [#allocation4], 224
    %v1356 = vld [vmem:[%s1355] sm:$0xff]
    %v1357 = vld [vmem:[%s1355 + $0x8] sm:$0xff]
    %v1358 = vld [vmem:[%s1355 + $0x10] sm:$0xff]
    %v1359 = vld [vmem:[%s1355 + $0x18] sm:$0xff]
    %1360 = vmatprep.subr.mxu0 %v132
    %1361 = vmatpush1.msra.mxu0 %v131
    %1362 = vmatprep.subr.mxu0 %v128
    %1363 = vmatpush1.msra.mxu0 %v127
    %1364 = vmatprep.subr.mxu0 %v124
    %1365 = vmatpush1.msra.mxu0 %v123
    %1366 = vmatprep.subr.mxu0 %v120
    %1367 = vmatpush1.msra.mxu0 %v119
    %1368 = vmatprep.subr.mxu0 %v116
    %1369 = vmatpush1.msra.mxu0 %v115
    %1370 = vmatprep.subr.mxu0 %v112
    %1371 = vmatpush1.msra.mxu0 %v111
    %1372 = vmatprep.subr.mxu0 %v108
    %1373 = vmatpush1.msra.mxu0 %v107
    %1374 = vmatprep.subr.mxu0 %v104
    %1375 = vmatpush1.msra.mxu0 %v103
    %1376 = vmatprep.subr.mxu0 %v100
    %1377 = vmatpush1.msra.mxu0 %v99
    %1378 = vmatprep.subr.mxu0 %v96
    %1379 = vmatpush1.msra.mxu0 %v95
    %1380 = vmatprep.subr.mxu0 %v92
    %1381 = vmatpush1.msra.mxu0 %v91
    %1382 = vmatprep.subr.mxu0 %v88
    %1383 = vmatpush1.msra.mxu0 %v87
    %1384 = vmatprep.subr.mxu0 %v84
    %1385 = vmatpush1.msra.mxu0 %v83
    %1386 = vmatprep.subr.mxu0 %v80
    %1387 = vmatpush1.msra.mxu0 %v79
    %1388 = vmatprep.subr.mxu0 %v76
    %1389 = vmatpush1.msra.mxu0 %v75
    %1390 = vmatprep.subr.mxu0 %v72
    %1391 = vmatpush1.msra.mxu0 %v71
    %1392 = vmatprep.subr.mxu0 0.0
    %1393 = vmatpush2.msra.mxu0 0.0
    %1394 = vmatprep.subr.mxu0 0.0
    %1395 = vmatpush2.msra.mxu0 0.0
    %1396 = vmatprep.subr.mxu0 0.0
    %1397 = vmatpush2.msra.mxu0 0.0
    %1398 = vmatprep.subr.mxu0 0.0
    %1399 = vmatpush2.msra.mxu0 0.0
    %1400 = vmatprep.subr.mxu0 0.0
    %1401 = vmatpush2.msra.mxu0 0.0
    %1402 = vmatprep.subr.mxu0 0.0
    %1403 = vmatpush2.msra.mxu0 0.0
    %1404 = vmatprep.subr.mxu0 0.0
    %1405 = vmatpush2.msra.mxu0 0.0
    %1406 = vmatprep.subr.mxu0 0.0
    %1407 = vmatpush2.msra.mxu0 0.0
    %1408 = vmatprep.subr.mxu0 0.0
    %1409 = vmatpush2.msra.mxu0 0.0
    %1410 = vmatprep.subr.mxu0 0.0
    %1411 = vmatpush2.msra.mxu0 0.0
    %1412 = vmatprep.subr.mxu0 0.0
    %1413 = vmatpush2.msra.mxu0 0.0
    %1414 = vmatprep.subr.mxu0 0.0
    %1415 = vmatpush2.msra.mxu0 0.0
    %1416 = vmatprep.subr.mxu0 0.0
    %1417 = vmatpush2.msra.mxu0 0.0
    %1418 = vmatprep.subr.mxu0 0.0
    %1419 = vmatpush2.msra.mxu0 0.0
    %1420 = vmatprep.subr.mxu0 0.0
    %1421 = vmatpush2.msra.mxu0 0.0
    %1422 = vmatprep.subr.mxu0 0.0
    %1423 = vmatpush2.msra.mxu0 0.0
    %1424 = vmatprep.mubr.f32.mxu0 0.0
    %1425 = vmatmul.mubr.f32.gmra.mxu0 %v1354
    %v1426 = vpop.f32.mrf.mxu0
    %v1427 = vadd.f32 0.0, %v1426
    %v1428 = vpop.f32.mrf.mxu0
    %v1429 = vadd.f32 0.0, %v1428
    %1430 = vdwg.mxu0
    %1431 = vmatprep.subr.mxu0 %v134
    %1432 = vmatpush1.msra.mxu0 %v133
    %1433 = vmatprep.subr.mxu0 %v130
    %1434 = vmatpush1.msra.mxu0 %v129
    %1435 = vmatprep.subr.mxu0 %v126
    %1436 = vmatpush1.msra.mxu0 %v125
    %1437 = vmatprep.subr.mxu0 %v122
    %1438 = vmatpush1.msra.mxu0 %v121
    %1439 = vmatprep.subr.mxu0 %v118
    %1440 = vmatpush1.msra.mxu0 %v117
    %1441 = vmatprep.subr.mxu0 %v114
    %1442 = vmatpush1.msra.mxu0 %v113
    %1443 = vmatprep.subr.mxu0 %v110
    %1444 = vmatpush1.msra.mxu0 %v109
    %1445 = vmatprep.subr.mxu0 %v106
    %1446 = vmatpush1.msra.mxu0 %v105
    %1447 = vmatprep.subr.mxu0 %v102
    %1448 = vmatpush1.msra.mxu0 %v101
    %1449 = vmatprep.subr.mxu0 %v98
    %1450 = vmatpush1.msra.mxu0 %v97
    %1451 = vmatprep.subr.mxu0 %v94
    %1452 = vmatpush1.msra.mxu0 %v93
    %1453 = vmatprep.subr.mxu0 %v90
    %1454 = vmatpush1.msra.mxu0 %v89
    %1455 = vmatprep.subr.mxu0 %v86
    %1456 = vmatpush1.msra.mxu0 %v85
    %1457 = vmatprep.subr.mxu0 %v82
    %1458 = vmatpush1.msra.mxu0 %v81
    %1459 = vmatprep.subr.mxu0 %v78
    %1460 = vmatpush1.msra.mxu0 %v77
    %1461 = vmatprep.subr.mxu0 %v74
    %1462 = vmatpush1.msra.mxu0 %v73
    %1463 = vmatprep.subr.mxu0 0.0
    %1464 = vmatpush2.msra.mxu0 0.0
    %1465 = vmatprep.subr.mxu0 0.0
    %1466 = vmatpush2.msra.mxu0 0.0
    %1467 = vmatprep.subr.mxu0 0.0
    %1468 = vmatpush2.msra.mxu0 0.0
    %1469 = vmatprep.subr.mxu0 0.0
    %1470 = vmatpush2.msra.mxu0 0.0
    %1471 = vmatprep.subr.mxu0 0.0
    %1472 = vmatpush2.msra.mxu0 0.0
    %1473 = vmatprep.subr.mxu0 0.0
    %1474 = vmatpush2.msra.mxu0 0.0
    %1475 = vmatprep.subr.mxu0 0.0
    %1476 = vmatpush2.msra.mxu0 0.0
    %1477 = vmatprep.subr.mxu0 0.0
    %1478 = vmatpush2.msra.mxu0 0.0
    %1479 = vmatprep.subr.mxu0 0.0
    %1480 = vmatpush2.msra.mxu0 0.0
    %1481 = vmatprep.subr.mxu0 0.0
    %1482 = vmatpush2.msra.mxu0 0.0
    %1483 = vmatprep.subr.mxu0 0.0
    %1484 = vmatpush2.msra.mxu0 0.0
    %1485 = vmatprep.subr.mxu0 0.0
    %1486 = vmatpush2.msra.mxu0 0.0
    %1487 = vmatprep.subr.mxu0 0.0
    %1488 = vmatpush2.msra.mxu0 0.0
    %1489 = vmatprep.subr.mxu0 0.0
    %1490 = vmatpush2.msra.mxu0 0.0
    %1491 = vmatprep.subr.mxu0 0.0
    %1492 = vmatpush2.msra.mxu0 0.0
    %1493 = vmatprep.subr.mxu0 0.0
    %1494 = vmatpush2.msra.mxu0 0.0
    %1495 = vmatprep.mubr.f32.mxu0 0.0
    %1496 = vmatmul.mubr.f32.gmra.mxu0 %v1354
    %v1497 = vpop.f32.mrf.mxu0
    %v1498 = vadd.f32 0.0, %v1497
    %v1499 = vpop.f32.mrf.mxu0
    %v1500 = vadd.f32 0.0, %v1499
    %1501 = vdwg.mxu0
    %v1502 = vadd.f32 %v1356, %v1427
    %v1503 = vadd.f32 %v1357, %v1429
    %v1504 = vadd.f32 %v1358, %v1498
    %v1505 = vadd.f32 %v1359, %v1500
    %v1506 = vxor.u32 %v1502, 2147483648
    %v1507 = vxor.u32 %v1503, 2147483648
    %v1508 = vmul.f32 %v1506, 1.442695
    %v1509 = vpow.pop %v1508
    %v1510 = vmul.f32 %v1507, 1.442695
    %v1511 = vpow.pop %v1510
    %v1512 = vadd.f32 %v1509, 1.0
    %v1513 = vadd.f32 %v1511, 1.0
    %v1514 = vrcp.pop %v1512
    %v1515 = vmul.f32 1.0, %v1514
    %v1516 = vrcp.pop %v1513
    %v1517 = vmul.f32 1.0, %v1516
    %v1518 = vtanh.pop %v1504
    %v1519 = vxor.u32 %v1505, 2147483648
    %v1520 = vmul.f32 %v1519, 1.442695
    %v1521 = vpow.pop %v1520
    %v1522 = vadd.f32 %v1521, 1.0
    %v1523 = vrcp.pop %v1522
    %v1524 = vmul.f32 1.0, %v1523
    %v1525 = vmul.f32 %v1517, %v1352
    %v1526 = vmul.f32 %v1515, %v1518
    %v1527 = vadd.f32 %v1525, %v1526
    %v1528 = vtanh.pop %v1527
    %v1529 = vmul.f32 %v1524, %v1528
    %1530 = vst [vmem:[#allocation2] sm:$0xff] %v1529
    %1531 = vst [vmem:[#allocation3] sm:$0xff] %v1527
    // Predicated region
    $region34: #{tpu_custom_call.1} parent=1 // pred_check
      %p1532 = pneg %p59
    $region35: #{tpu_custom_call.1} parent=1 // pred_check_branch
      %1534 = sbr.rel (%p1532) target = $region37
    $region36: #{tpu_custom_call.1} parent=1 // pred_region
      %v1535 = vld [vmem:[#allocation9] sm:$0xff]
      %v1536 = vld [vmem:[#allocation9 + $0x8] sm:$0xff]
      %v1537 = vld [vmem:[#allocation9 + $0x10] sm:$0xff]
      %v1538 = vld [vmem:[#allocation9 + $0x18] sm:$0xff]
      %v1539 = vld [vmem:[#allocation9 + $0x20] sm:$0xff]
      %v1540 = vld [vmem:[#allocation9 + $0x28] sm:$0xff]
      %v1541 = vld [vmem:[#allocation9 + $0x30] sm:$0xff]
      %v1542 = vld [vmem:[#allocation9 + $0x38] sm:$0xff]
      %v1543 = vld [vmem:[#allocation9 + $0x40] sm:$0xff]
      %v1544 = vld [vmem:[#allocation9 + $0x48] sm:$0xff]
      %v1545 = vld [vmem:[#allocation9 + $0x50] sm:$0xff]
      %v1546 = vld [vmem:[#allocation9 + $0x58] sm:$0xff]
      %v1547 = vld [vmem:[#allocation9 + $0x60] sm:$0xff]
      %v1548 = vld [vmem:[#allocation9 + $0x68] sm:$0xff]
      %v1549 = vld [vmem:[#allocation9 + $0x70] sm:$0xff]
      %v1550 = vld [vmem:[#allocation9 + $0x78] sm:$0xff]
      %v1551 = vld [vmem:[%s3] sm:$0x1]
      %v1553 = vlaneseq
      %v1554 = vshrl.u32 %v1553, 7
      %v1555 = vsub.s32 0, %v1554
      %v1556 = vrot.slane %v1551, %v1555
      %1558 = vmatprep.subr.mxu0 0.0
      %1559 = vmatpush1.msra.mxu0 %v1550
      %1560 = vmatprep.subr.mxu0 0.0
      %1561 = vmatpush1.msra.mxu0 %v1549
      %1562 = vmatprep.subr.mxu0 0.0
      %1563 = vmatpush1.msra.mxu0 %v1548
      %1564 = vmatprep.subr.mxu0 0.0
      %1565 = vmatpush1.msra.mxu0 %v1547
      %1566 = vmatprep.subr.mxu0 0.0
      %1567 = vmatpush1.msra.mxu0 %v1546
      %1568 = vmatprep.subr.mxu0 0.0
      %1569 = vmatpush1.msra.mxu0 %v1545
      %1570 = vmatprep.subr.mxu0 0.0
      %1571 = vmatpush1.msra.mxu0 %v1544
      %1572 = vmatprep.subr.mxu0 0.0
      %1573 = vmatpush1.msra.mxu0 %v1543
      %1574 = vmatprep.subr.mxu0 0.0
      %1575 = vmatpush1.msra.mxu0 %v1542
      %1576 = vmatprep.subr.mxu0 0.0
      %1577 = vmatpush1.msra.mxu0 %v1541
      %1578 = vmatprep.subr.mxu0 0.0
      %1579 = vmatpush1.msra.mxu0 %v1540
      %1580 = vmatprep.subr.mxu0 0.0
      %1581 = vmatpush1.msra.mxu0 %v1539
      %1582 = vmatprep.subr.mxu0 0.0
      %1583 = vmatpush1.msra.mxu0 %v1538
      %1584 = vmatprep.subr.mxu0 0.0
      %1585 = vmatpush1.msra.mxu0 %v1537
      %1586 = vmatprep.subr.mxu0 0.0
      %1587 = vmatpush1.msra.mxu0 %v1536
      %1588 = vmatprep.subr.mxu0 0.0
      %1589 = vmatpush1.msra.mxu0 %v1535
      %1590 = vmatprep.subr.mxu0 0.0
      %1591 = vmatpush2.msra.mxu0 0.0
      %1592 = vmatprep.subr.mxu0 0.0
      %1593 = vmatpush2.msra.mxu0 0.0
      %1594 = vmatprep.subr.mxu0 0.0
      %1595 = vmatpush2.msra.mxu0 0.0
      %1596 = vmatprep.subr.mxu0 0.0
      %1597 = vmatpush2.msra.mxu0 0.0
      %1598 = vmatprep.subr.mxu0 0.0
      %1599 = vmatpush2.msra.mxu0 0.0
      %1600 = vmatprep.subr.mxu0 0.0
      %1601 = vmatpush2.msra.mxu0 0.0
      %1602 = vmatprep.subr.mxu0 0.0
      %1603 = vmatpush2.msra.mxu0 0.0
      %1604 = vmatprep.subr.mxu0 0.0
      %1605 = vmatpush2.msra.mxu0 0.0
      %1606 = vmatprep.subr.mxu0 0.0
      %1607 = vmatpush2.msra.mxu0 0.0
      %1608 = vmatprep.subr.mxu0 0.0
      %1609 = vmatpush2.msra.mxu0 0.0
      %1610 = vmatprep.subr.mxu0 0.0
      %1611 = vmatpush2.msra.mxu0 0.0
      %1612 = vmatprep.subr.mxu0 0.0
      %1613 = vmatpush2.msra.mxu0 0.0
      %1614 = vmatprep.subr.mxu0 0.0
      %1615 = vmatpush2.msra.mxu0 0.0
      %1616 = vmatprep.subr.mxu0 0.0
      %1617 = vmatpush2.msra.mxu0 0.0
      %1618 = vmatprep.subr.mxu0 0.0
      %1619 = vmatpush2.msra.mxu0 0.0
      %1620 = vmatprep.subr.mxu0 0.0
      %1621 = vmatpush2.msra.mxu0 0.0
      %1622 = vmatprep.mubr.f32.mxu0 0.0
      %1623 = vmatmul.mubr.f32.gmra.mxu0 %v1529
      %v1624 = vpop.f32.mrf.mxu0
      %v1625 = vadd.f32 %v1556, %v1624
      %v1626 = vpop.f32.mrf.mxu0
      %1627 = vdwg.mxu0
      %1628 = vst [vmem:[#allocation10] sm:$0xff] %v1625
    $region37: #{tpu_custom_call.1} parent=1 // pred_fallthru
      _
    // Predicated region
    $region38: #{tpu_custom_call.1} parent=1 // pred_check
      _
    $region39: #{tpu_custom_call.1} parent=1 // pred_check_branch
      %1630 = sbr.rel (0) target = $region41
    $region40: #{tpu_custom_call.1} parent=1 // pred_region
      %s1632 = ssub.s32 128, 128
      %1633 = vsyncadd [#allocation6], %s1632
      %s1635 = sshll.u32 [#allocation10], 4
      %s1636 = int_to_ptr.vmem [resolvable:$true] %s1635
      %1638 = dma.vmem_to_hbm [thread:$0]  %s1636, 128, %s4, [#allocation6]
    $region41: #{tpu_custom_call.1} parent=1 // pred_fallthru
      _
    // Predicated region
    $region42: #{tpu_custom_call.1} parent=1 // pred_check
      _
    $region43: #{tpu_custom_call.1} parent=1 // pred_check_branch
      %1640 = sbr.rel (0) target = $region45
    $region44: #{tpu_custom_call.1} parent=1 // pred_region
      %1641 = dma.done [#allocation6], 128
    $region45: #{tpu_custom_call.1} parent=1 // pred_fallthru
      _
    %1642 = vsyncpa [#allocation5], 1
    %1643 = vsyncpa [#allocation8], 1
    %1644 = vsyncpa [#allocation6], 1

</llo_original>
